<compile_context>
chip_gen: v5e
topology: v5e:2x2
jax: 0.10.0
libtpu: 0.0.40
codegen_flags: <defaults>
</compile_context>

<pallas_src>
import jax
import jax.numpy as jnp
from jax.experimental import pallas as pl
from jax.experimental.pallas import tpu as pltpu

LANE = 128
SUBLANE = 8


def _round_up(x, m):
    return (x + m - 1) // m * m


def _largest_divisor_leq(n, cap):
    for r in range(min(n, cap), 0, -1):
        if n % r == 0:
            return r
    return 1


def _make_fused_kernel(rows_per_strip, w_padded, cmid_padded):
    """Fused 3x3 conv + ReLU + 1x1 conv on one row-strip of pixels."""
    strip_px = rows_per_strip * w_padded          # pixels produced per strip
    load_px = strip_px + SUBLANE                  # +2 needed for dx shifts, rounded up

    def kernel(x_ref, w1_ref, b1_ref, w2_ref, b2_ref, out_ref):
        # x_ref  : (Hp*Wp, Cin_p)   flattened zero-padded image (whole image, resident)
        # w1_ref : (9, Cin_p, Cmid_p)   3x3 taps in HWIO order
        # b1_ref : (1, Cmid_p)
        # w2_ref : (Cmid_p, Cout_p)
        # b2_ref : (1, Cout_p)
        # out_ref: (strip_px, Cout_p)
        strip = pl.program_id(1)
        base = pl.multiple_of(strip * strip_px, SUBLANE)   # Wp % 8 == 0 -> aligned

        acc = jnp.zeros((strip_px, cmid_padded), jnp.float32)
        for dy in range(3):                                # statically unrolled taps
            row0 = pl.multiple_of(base + dy * w_padded, SUBLANE)
            band = x_ref[pl.ds(row0, load_px), :]          # aligned dynamic load
            for dx in range(3):
                tap = dy * 3 + dx
                acc = acc + jnp.dot(band[dx:dx + strip_px, :], w1_ref[tap],
                                    preferred_element_type=jnp.float32)

        acc = acc + b1_ref[...].astype(jnp.float32)        # conv bias
        hidden = jnp.maximum(acc, 0.0)                     # ReLU on f32 accumulator
        # Dropout2d -> identity at inference.
        hidden = hidden.astype(w2_ref.dtype)
        logits = jnp.dot(hidden, w2_ref[...], preferred_element_type=jnp.float32)
        logits = logits + b2_ref[...].astype(jnp.float32)  # conv_seg bias
        out_ref[...] = logits.astype(out_ref.dtype)        # lane-dense (Cout_p % 128 == 0)

    return kernel


def fcn_head_forward(inputs, params, *, in_index=2, max_strip_rows=64,
                     vmem_limit_bytes=48 * 1024 * 1024):
    """FCNHead.forward: inputs is a list of NCHW feature maps; returns NCHW logits."""
    x = inputs[in_index]                       # (N, Cin, H, W)
    w1 = params["conv_w"]                      # (Cmid, Cin, 3, 3)  OIHW
    b1 = params["conv_b"]                      # (Cmid,)
    w2 = params["seg_w"]                       # (Ncls, Cmid, 1, 1)
    b2 = params["seg_b"]                       # (Ncls,)

    N, Cin, H, W = x.shape
    Cmid = w1.shape[0]
    Ncls = w2.shape[0]

    Cin_p = _round_up(Cin, LANE)
    Cmid_p = _round_up(Cmid, LANE)
    Cout_p = _round_up(Ncls, LANE)
    Wp = _round_up(W + 2, SUBLANE)             # padded width (>= W+2, 8-aligned)
    Hp = H + 3                                 # 1 top pad + 2 bottom pad rows

    # --- layout plumbing (single input transpose; logits transpose-back is Ncls-cheap) ---
    x_nhwc = jnp.transpose(x, (0, 2, 3, 1))
    x_pad = jnp.pad(x_nhwc, ((0, 0), (1, 2), (1, Wp - W - 1), (0, Cin_p - Cin)))
    x_flat = x_pad.reshape(N, Hp * Wp, Cin_p)

    # OIHW -> HWIO taps, channel-padded.
    w1_t = jnp.transpose(w1, (2, 3, 1, 0)).reshape(9, Cin, Cmid)
    w1_t = jnp.pad(w1_t, ((0, 0), (0, Cin_p - Cin), (0, Cmid_p - Cmid)))
    b1_p = jnp.pad(b1, (0, Cmid_p - Cmid)).reshape(1, Cmid_p)
    w2_t = jnp.transpose(w2.reshape(Ncls, Cmid), (1, 0))
    w2_t = jnp.pad(w2_t, ((0, Cmid_p - Cmid), (0, Cout_p - Ncls)))
    b2_p = jnp.pad(b2, (0, Cout_p - Ncls)).reshape(1, Cout_p)

    rows_per_strip = _largest_divisor_leq(H, max_strip_rows)
    n_strips = H // rows_per_strip
    strip_px = rows_per_strip * Wp

    kernel = _make_fused_kernel(rows_per_strip, Wp, Cmid_p)

    out_flat = pl.pallas_call(
        kernel,
        out_shape=jax.ShapeDtypeStruct((N, H * Wp, Cout_p), x.dtype),
        grid_spec=pltpu.PrefetchScalarGridSpec(
            num_scalar_prefetch=0,
            grid=(N, n_strips),
            in_specs=[
                # Whole padded image; index map ignores the strip axis -> resident, one DMA / image.
                pl.BlockSpec((None, Hp * Wp, Cin_p), lambda n, i: (n, 0, 0)),
                # Weights / biases: constant block -> VMEM-resident for the whole grid.
                pl.BlockSpec((9, Cin_p, Cmid_p), lambda n, i: (0, 0, 0)),
                pl.BlockSpec((1, Cmid_p), lambda n, i: (0, 0)),
                pl.BlockSpec((Cmid_p, Cout_p), lambda n, i: (0, 0)),
                pl.BlockSpec((1, Cout_p), lambda n, i: (0, 0)),
            ],
            out_specs=pl.BlockSpec((None, strip_px, Cout_p), lambda n, i: (n, i, 0)),
        ),
        compiler_params=pltpu.CompilerParams(
            dimension_semantics=("parallel", "parallel"),
            vmem_limit_bytes=vmem_limit_bytes,
        ),
    )(x_flat, w1_t, b1_p, w2_t, b2_p)

    # Drop padded/garbage columns + padded classes, back to NCHW logits.
    out = out_flat.reshape(N, H, Wp, Cout_p)[:, :, :W, :Ncls]
    return jnp.transpose(out, (0, 3, 1, 2))


def _reference_forward(x, params):
    """Pure-JAX reference matching the PyTorch module (eval mode)."""
    y = jax.lax.conv_general_dilated(
        x, params["conv_w"], window_strides=(1, 1), padding=((1, 1), (1, 1)),
        dimension_numbers=("NCHW", "OIHW", "NCHW"),
        precision=jax.lax.Precision.HIGHEST)
    y = y + params["conv_b"][None, :, None, None]
    y = jnp.maximum(y, 0.0)
    z = jax.lax.conv_general_dilated(
        y, params["seg_w"], window_strides=(1, 1), padding="VALID",
        dimension_numbers=("NCHW", "OIHW", "NCHW"),
        precision=jax.lax.Precision.HIGHEST)
    z = z + params["seg_b"][None, :, None, None]
    return z


if __name__ == "__main__":
    key = jax.random.PRNGKey(0)
    N, Cin, H, W = 2, 24, 16, 16
    Cmid, Ncls, in_index = 32, 6, 2
    ks = jax.random.split(key, 8)

    # List of backbone feature maps; only inputs[in_index] is consumed by this head.
    inputs = [
        jax.random.normal(ks[0], (N, 8, 32, 32), jnp.float32),
        jax.random.normal(ks[1], (N, 16, 32, 32), jnp.float32),
        jax.random.normal(ks[2], (N, Cin, H, W), jnp.float32),
        jax.random.normal(ks[3], (N, 48, 8, 8), jnp.float32),
    ]
    params = {
        "conv_w": 0.05 * jax.random.normal(ks[4], (Cmid, Cin, 3, 3), jnp.float32),
        "conv_b": 0.05 * jax.random.normal(ks[5], (Cmid,), jnp.float32),
        "seg_w": 0.05 * jax.random.normal(ks[6], (Ncls, Cmid, 1, 1), jnp.float32),
        "seg_b": 0.05 * jax.random.normal(ks[7], (Ncls,), jnp.float32),
    }

    out = fcn_head_forward(inputs, params, in_index=in_index)
    out = jax.block_until_ready(out)

    ref = _reference_forward(inputs[in_index], params)
    assert out.shape == (N, Ncls, H, W), out.shape
    assert jnp.allclose(out, ref, rtol=2e-3, atol=2e-3), \
        float(jnp.max(jnp.abs(out - ref)))
    print("KERNEL_OK")
</pallas_src>

<mosaic_0001>
module attributes {stable_mosaic.version = 11 : i64} {
  func.func @kernel(%arg0: i32, %arg1: i32, %arg2: memref<1x456x128xf32, #tpu.memory_space<vmem>>, %arg3: memref<9x128x128xf32, #tpu.memory_space<vmem>>, %arg4: memref<1x128xf32, #tpu.memory_space<vmem>>, %arg5: memref<128x128xf32, #tpu.memory_space<vmem>>, %arg6: memref<1x128xf32, #tpu.memory_space<vmem>>, %arg7: memref<1x384x128xf32, #tpu.memory_space<vmem>>) attributes {dimension_semantics = [#tpu.dimension_semantics<parallel>, #tpu.dimension_semantics<parallel>], iteration_bounds = array<i64: 2, 1>, scalar_prefetch = 0 : i64, scratch_operands = 0 : i64, tpu.core_type = #tpu.core_type<tc>, window_params = [{transform_indices = @transform_0, window_bounds = array<i64: 1, 456, 128>}, {pipeline_mode = #tpu.pipeline_mode<synchronous>, transform_indices = @transform_1, window_bounds = array<i64: 9, 128, 128>}, {pipeline_mode = #tpu.pipeline_mode<synchronous>, transform_indices = @transform_2, window_bounds = array<i64: 1, 128>}, {pipeline_mode = #tpu.pipeline_mode<synchronous>, transform_indices = @transform_3, window_bounds = array<i64: 128, 128>}, {pipeline_mode = #tpu.pipeline_mode<synchronous>, transform_indices = @transform_4, window_bounds = array<i64: 1, 128>}, {transform_indices = @transform_5, window_bounds = array<i64: 1, 384, 128>}]} {
    %c384_i32 = arith.constant 384 : i32
    %0 = arith.muli %arg1, %c384_i32 : i32
    %1 = tpu.assume_multiple %0, 8 : i32
    %cst = arith.constant 0.000000e+00 : f32
    %2 = vector.broadcast %cst : f32 to vector<384x128xf32>
    %c0_i32 = arith.constant 0 : i32
    %3 = arith.addi %1, %c0_i32 : i32
    %4 = tpu.assume_multiple %3, 8 : i32
    %c0 = arith.constant 0 : index
    %5 = arith.index_cast %4 : i32 to index
    %c0_0 = arith.constant 0 : index
    %6 = vector.load %arg2[%c0, %5, %c0_0] : memref<1x456x128xf32, #tpu.memory_space<vmem>>, vector<1x392x128xf32>
    %7 = vector.shape_cast %6 : vector<1x392x128xf32> to vector<392x128xf32>
    %8 = vector.extract_strided_slice %7 {offsets = [0, 0], sizes = [384, 128], strides = [1, 1]} : vector<392x128xf32> to vector<384x128xf32>
    %c0_1 = arith.constant 0 : index
    %c0_2 = arith.constant 0 : index
    %c0_3 = arith.constant 0 : index
    %9 = vector.load %arg3[%c0_1, %c0_2, %c0_3] : memref<9x128x128xf32, #tpu.memory_space<vmem>>, vector<1x128x128xf32>
    %10 = vector.shape_cast %9 : vector<1x128x128xf32> to vector<128x128xf32>
    %cst_4 = arith.constant dense<0.000000e+00> : vector<384x128xf32>
    %11 = tpu.matmul %8, %10, %cst_4 {dimension_numbers = #tpu.dot_dimension_numbers<[1], [0], [0], [1], [0, 0, 1, 1], [], []>} : vector<384x128xf32>, vector<128x128xf32>, vector<384x128xf32> -> vector<384x128xf32>
    %12 = arith.addf %2, %11 : vector<384x128xf32>
    %13 = vector.extract_strided_slice %7 {offsets = [1, 0], sizes = [384, 128], strides = [1, 1]} : vector<392x128xf32> to vector<384x128xf32>
    %c1 = arith.constant 1 : index
    %c0_5 = arith.constant 0 : index
    %c0_6 = arith.constant 0 : index
    %14 = vector.load %arg3[%c1, %c0_5, %c0_6] : memref<9x128x128xf32, #tpu.memory_space<vmem>>, vector<1x128x128xf32>
    %15 = vector.shape_cast %14 : vector<1x128x128xf32> to vector<128x128xf32>
    %cst_7 = arith.constant dense<0.000000e+00> : vector<384x128xf32>
    %16 = tpu.matmul %13, %15, %cst_7 {dimension_numbers = #tpu.dot_dimension_numbers<[1], [0], [0], [1], [0, 0, 1, 1], [], []>} : vector<384x128xf32>, vector<128x128xf32>, vector<384x128xf32> -> vector<384x128xf32>
    %17 = arith.addf %12, %16 : vector<384x128xf32>
    %18 = vector.extract_strided_slice %7 {offsets = [2, 0], sizes = [384, 128], strides = [1, 1]} : vector<392x128xf32> to vector<384x128xf32>
    %c2 = arith.constant 2 : index
    %c0_8 = arith.constant 0 : index
    %c0_9 = arith.constant 0 : index
    %19 = vector.load %arg3[%c2, %c0_8, %c0_9] : memref<9x128x128xf32, #tpu.memory_space<vmem>>, vector<1x128x128xf32>
    %20 = vector.shape_cast %19 : vector<1x128x128xf32> to vector<128x128xf32>
    %cst_10 = arith.constant dense<0.000000e+00> : vector<384x128xf32>
    %21 = tpu.matmul %18, %20, %cst_10 {dimension_numbers = #tpu.dot_dimension_numbers<[1], [0], [0], [1], [0, 0, 1, 1], [], []>} : vector<384x128xf32>, vector<128x128xf32>, vector<384x128xf32> -> vector<384x128xf32>
    %22 = arith.addf %17, %21 : vector<384x128xf32>
    %c24_i32 = arith.constant 24 : i32
    %23 = arith.addi %1, %c24_i32 : i32
    %24 = tpu.assume_multiple %23, 8 : i32
    %c0_11 = arith.constant 0 : index
    %25 = arith.index_cast %24 : i32 to index
    %c0_12 = arith.constant 0 : index
    %26 = vector.load %arg2[%c0_11, %25, %c0_12] : memref<1x456x128xf32, #tpu.memory_space<vmem>>, vector<1x392x128xf32>
    %27 = vector.shape_cast %26 : vector<1x392x128xf32> to vector<392x128xf32>
    %28 = vector.extract_strided_slice %27 {offsets = [0, 0], sizes = [384, 128], strides = [1, 1]} : vector<392x128xf32> to vector<384x128xf32>
    %c3 = arith.constant 3 : index
    %c0_13 = arith.constant 0 : index
    %c0_14 = arith.constant 0 : index
    %29 = vector.load %arg3[%c3, %c0_13, %c0_14] : memref<9x128x128xf32, #tpu.memory_space<vmem>>, vector<1x128x128xf32>
    %30 = vector.shape_cast %29 : vector<1x128x128xf32> to vector<128x128xf32>
    %cst_15 = arith.constant dense<0.000000e+00> : vector<384x128xf32>
    %31 = tpu.matmul %28, %30, %cst_15 {dimension_numbers = #tpu.dot_dimension_numbers<[1], [0], [0], [1], [0, 0, 1, 1], [], []>} : vector<384x128xf32>, vector<128x128xf32>, vector<384x128xf32> -> vector<384x128xf32>
    %32 = arith.addf %22, %31 : vector<384x128xf32>
    %33 = vector.extract_strided_slice %27 {offsets = [1, 0], sizes = [384, 128], strides = [1, 1]} : vector<392x128xf32> to vector<384x128xf32>
    %c4 = arith.constant 4 : index
    %c0_16 = arith.constant 0 : index
    %c0_17 = arith.constant 0 : index
    %34 = vector.load %arg3[%c4, %c0_16, %c0_17] : memref<9x128x128xf32, #tpu.memory_space<vmem>>, vector<1x128x128xf32>
    %35 = vector.shape_cast %34 : vector<1x128x128xf32> to vector<128x128xf32>
    %cst_18 = arith.constant dense<0.000000e+00> : vector<384x128xf32>
    %36 = tpu.matmul %33, %35, %cst_18 {dimension_numbers = #tpu.dot_dimension_numbers<[1], [0], [0], [1], [0, 0, 1, 1], [], []>} : vector<384x128xf32>, vector<128x128xf32>, vector<384x128xf32> -> vector<384x128xf32>
    %37 = arith.addf %32, %36 : vector<384x128xf32>
    %38 = vector.extract_strided_slice %27 {offsets = [2, 0], sizes = [384, 128], strides = [1, 1]} : vector<392x128xf32> to vector<384x128xf32>
    %c5 = arith.constant 5 : index
    %c0_19 = arith.constant 0 : index
    %c0_20 = arith.constant 0 : index
    %39 = vector.load %arg3[%c5, %c0_19, %c0_20] : memref<9x128x128xf32, #tpu.memory_space<vmem>>, vector<1x128x128xf32>
    %40 = vector.shape_cast %39 : vector<1x128x128xf32> to vector<128x128xf32>
    %cst_21 = arith.constant dense<0.000000e+00> : vector<384x128xf32>
    %41 = tpu.matmul %38, %40, %cst_21 {dimension_numbers = #tpu.dot_dimension_numbers<[1], [0], [0], [1], [0, 0, 1, 1], [], []>} : vector<384x128xf32>, vector<128x128xf32>, vector<384x128xf32> -> vector<384x128xf32>
    %42 = arith.addf %37, %41 : vector<384x128xf32>
    %c48_i32 = arith.constant 48 : i32
    %43 = arith.addi %1, %c48_i32 : i32
    %44 = tpu.assume_multiple %43, 8 : i32
    %c0_22 = arith.constant 0 : index
    %45 = arith.index_cast %44 : i32 to index
    %c0_23 = arith.constant 0 : index
    %46 = vector.load %arg2[%c0_22, %45, %c0_23] : memref<1x456x128xf32, #tpu.memory_space<vmem>>, vector<1x392x128xf32>
    %47 = vector.shape_cast %46 : vector<1x392x128xf32> to vector<392x128xf32>
    %48 = vector.extract_strided_slice %47 {offsets = [0, 0], sizes = [384, 128], strides = [1, 1]} : vector<392x128xf32> to vector<384x128xf32>
    %c6 = arith.constant 6 : index
    %c0_24 = arith.constant 0 : index
    %c0_25 = arith.constant 0 : index
    %49 = vector.load %arg3[%c6, %c0_24, %c0_25] : memref<9x128x128xf32, #tpu.memory_space<vmem>>, vector<1x128x128xf32>
    %50 = vector.shape_cast %49 : vector<1x128x128xf32> to vector<128x128xf32>
    %cst_26 = arith.constant dense<0.000000e+00> : vector<384x128xf32>
    %51 = tpu.matmul %48, %50, %cst_26 {dimension_numbers = #tpu.dot_dimension_numbers<[1], [0], [0], [1], [0, 0, 1, 1], [], []>} : vector<384x128xf32>, vector<128x128xf32>, vector<384x128xf32> -> vector<384x128xf32>
    %52 = arith.addf %42, %51 : vector<384x128xf32>
    %53 = vector.extract_strided_slice %47 {offsets = [1, 0], sizes = [384, 128], strides = [1, 1]} : vector<392x128xf32> to vector<384x128xf32>
    %c7 = arith.constant 7 : index
    %c0_27 = arith.constant 0 : index
    %c0_28 = arith.constant 0 : index
    %54 = vector.load %arg3[%c7, %c0_27, %c0_28] : memref<9x128x128xf32, #tpu.memory_space<vmem>>, vector<1x128x128xf32>
    %55 = vector.shape_cast %54 : vector<1x128x128xf32> to vector<128x128xf32>
    %cst_29 = arith.constant dense<0.000000e+00> : vector<384x128xf32>
    %56 = tpu.matmul %53, %55, %cst_29 {dimension_numbers = #tpu.dot_dimension_numbers<[1], [0], [0], [1], [0, 0, 1, 1], [], []>} : vector<384x128xf32>, vector<128x128xf32>, vector<384x128xf32> -> vector<384x128xf32>
    %57 = arith.addf %52, %56 : vector<384x128xf32>
    %58 = vector.extract_strided_slice %47 {offsets = [2, 0], sizes = [384, 128], strides = [1, 1]} : vector<392x128xf32> to vector<384x128xf32>
    %c8 = arith.constant 8 : index
    %c0_30 = arith.constant 0 : index
    %c0_31 = arith.constant 0 : index
    %59 = vector.load %arg3[%c8, %c0_30, %c0_31] : memref<9x128x128xf32, #tpu.memory_space<vmem>>, vector<1x128x128xf32>
    %60 = vector.shape_cast %59 : vector<1x128x128xf32> to vector<128x128xf32>
    %cst_32 = arith.constant dense<0.000000e+00> : vector<384x128xf32>
    %61 = tpu.matmul %58, %60, %cst_32 {dimension_numbers = #tpu.dot_dimension_numbers<[1], [0], [0], [1], [0, 0, 1, 1], [], []>} : vector<384x128xf32>, vector<128x128xf32>, vector<384x128xf32> -> vector<384x128xf32>
    %62 = arith.addf %57, %61 : vector<384x128xf32>
    %c0_33 = arith.constant 0 : index
    %c0_34 = arith.constant 0 : index
    %63 = vector.load %arg4[%c0_33, %c0_34] : memref<1x128xf32, #tpu.memory_space<vmem>>, vector<1x128xf32>
    %64 = vector.broadcast %63 : vector<1x128xf32> to vector<384x128xf32>
    %65 = arith.addf %62, %64 : vector<384x128xf32>
    %cst_35 = arith.constant 0.000000e+00 : f32
    %66 = vector.broadcast %cst_35 : f32 to vector<384x128xf32>
    %67 = arith.maximumf %65, %66 : vector<384x128xf32>
    %c0_36 = arith.constant 0 : index
    %c0_37 = arith.constant 0 : index
    %68 = vector.load %arg5[%c0_36, %c0_37] : memref<128x128xf32, #tpu.memory_space<vmem>>, vector<128x128xf32>
    %cst_38 = arith.constant dense<0.000000e+00> : vector<384x128xf32>
    %69 = tpu.matmul %67, %68, %cst_38 {dimension_numbers = #tpu.dot_dimension_numbers<[1], [0], [0], [1], [0, 0, 1, 1], [], []>} : vector<384x128xf32>, vector<128x128xf32>, vector<384x128xf32> -> vector<384x128xf32>
    %c0_39 = arith.constant 0 : index
    %c0_40 = arith.constant 0 : index
    %70 = vector.load %arg6[%c0_39, %c0_40] : memref<1x128xf32, #tpu.memory_space<vmem>>, vector<1x128xf32>
    %71 = vector.broadcast %70 : vector<1x128xf32> to vector<384x128xf32>
    %72 = arith.addf %69, %71 : vector<384x128xf32>
    %c0_41 = arith.constant 0 : index
    %c0_42 = arith.constant 0 : index
    %c0_43 = arith.constant 0 : index
    %73 = vector.load %arg7[%c0_41, %c0_42, %c0_43] : memref<1x384x128xf32, #tpu.memory_space<vmem>>, vector<1x384x128xf32>
    %74 = vector.shape_cast %73 : vector<1x384x128xf32> to vector<384x128xf32>
    %75 = vector.shape_cast %72 : vector<384x128xf32> to vector<1x384x128xf32>
    tpu.vector_store %arg7[%c0_41, %c0_42, %c0_43], %75 {strides = array<i32>} : memref<1x384x128xf32, #tpu.memory_space<vmem>>, vector<1x384x128xf32>,
    return
  }
  func.func @transform_0(%arg0: i32, %arg1: i32) -> (i32, i32, i32) {
    %c0_i32 = arith.constant 0 : i32
    %c0_i32_0 = arith.constant 0 : i32
    %c0_i32_1 = arith.constant 0 : i32
    return %arg0, %c0_i32, %c0_i32_0 : i32, i32, i32
  }
  func.func @transform_1(%arg0: i32, %arg1: i32) -> (i32, i32, i32) {
    %c0_i32 = arith.constant 0 : i32
    %c0_i32_0 = arith.constant 0 : i32
    %c0_i32_1 = arith.constant 0 : i32
    %c0_i32_2 = arith.constant 0 : i32
    return %c0_i32, %c0_i32_0, %c0_i32_1 : i32, i32, i32
  }
  func.func @transform_2(%arg0: i32, %arg1: i32) -> (i32, i32) {
    %c0_i32 = arith.constant 0 : i32
    %c0_i32_0 = arith.constant 0 : i32
    %c0_i32_1 = arith.constant 0 : i32
    return %c0_i32, %c0_i32_0 : i32, i32
  }
  func.func @transform_3(%arg0: i32, %arg1: i32) -> (i32, i32) {
    %c0_i32 = arith.constant 0 : i32
    %c0_i32_0 = arith.constant 0 : i32
    %c0_i32_1 = arith.constant 0 : i32
    return %c0_i32, %c0_i32_0 : i32, i32
  }
  func.func @transform_4(%arg0: i32, %arg1: i32) -> (i32, i32) {
    %c0_i32 = arith.constant 0 : i32
    %c0_i32_0 = arith.constant 0 : i32
    %c0_i32_1 = arith.constant 0 : i32
    return %c0_i32, %c0_i32_0 : i32, i32
  }
  func.func @transform_5(%arg0: i32, %arg1: i32) -> (i32, i32, i32) {
    %c0_i32 = arith.constant 0 : i32
    %c0_i32_0 = arith.constant 0 : i32
    return %arg0, %arg1, %c0_i32 : i32, i32, i32
  }
}

</mosaic_0001>

<llo_original>
// kernel: tpu_custom_call.1
$region0: #{tpu_custom_call.1}
  #allocation0 [shape = 'u32[]', space=smem, size = 0x4, offset = 0x4, fixed_abs, tag = 'smem constant byte address 0x4 - core index']
  #allocation1 [shape = 'u32[72,128]{1,0:T(1,128)}', space=vmem, size = 0x9000, scoped, tag = 'internal scratch']
  %s0 = inlined_call_operand.hbm [shape: f32[2,456,128], index: 0, kind: input, shape index: {}]
  %s1 = inlined_call_operand.hbm [shape: f32[9,128,128], index: 1, kind: input, shape index: {}]
  %s2 = inlined_call_operand.vmem [shape: f32[1,128], index: 2, kind: input, shape index: {}]
  %s3 = inlined_call_operand.hbm [shape: f32[128,128], index: 3, kind: input, shape index: {}]
  %s4 = inlined_call_operand.vmem [shape: f32[1,128], index: 4, kind: input, shape index: {}]
  %s5 = inlined_call_operand.hbm [shape: f32[2,384,128], index: 5, kind: output, shape index: {}]
  %s6 = sld [smem:[#allocation0]]
  $region65: #{tpu_custom_call.1} parent=0
    _
  %s8 = ssub.s32 1, %s6
  %s9 = scalar_select 0, %s8, %s6
  $region1: #{tpu_custom_call.1} parent=0
    #allocation2 [shape = 'u8[466944]{0}', space=vmem, size = 0x72000, scoped, tag = 'input window, operand 0']
    #allocation3 [shape = 's32[2]{0}', space=sflag, size = 0x8, scoped, tag = 'scoped memory for tpu_custom_call.1']
    #allocation4 [shape = 's32[2]{0}', space=sflag, size = 0x8, scoped, tag = 'scoped memory for tpu_custom_call.1']
    #allocation5 [shape = 'u8[589824]{0}', space=vmem, size = 0x90000, scoped, tag = 'input window, operand 1, single buffered']
    #allocation6 [shape = 's32[1]{0}', space=sflag, size = 0x4, scoped, tag = 'scoped memory for tpu_custom_call.1']
    #allocation7 [shape = 'u8[65536]{0}', space=vmem, size = 0x10000, scoped, tag = 'input window, operand 3, single buffered']
    #allocation8 [shape = 'u8[393216]{0}', space=vmem, size = 0x60000, scoped, tag = 'output window, operand 0']
    %10 = vsyncpa [#allocation3], 0
    %s11 = scalar_lea.sflag [#allocation3], 1
    %12 = vsyncpa %s11, 0
    %13 = vsyncpa [#allocation6], 0
    %14 = vsyncpa [#allocation4], 0
    %s15 = scalar_lea.sflag [#allocation4], 1
    %16 = vsyncpa %s15, 0
    loop: start=0, step=1, limit=4
    $region2: #{tpu_custom_call.1} parent=1 // loop_pre_header
      _
    $region3: #{tpu_custom_call.1} parent=1 // loop_header
      %s18 = sphi 0, %s22
      %p19 = scmp.ge.s32.totalorder %s18, 4
      %s25 = sphi 0, %s37
      %s26 = sphi 0, %s33
      %s27 = sphi 0, %s25
      %s28 = sphi 0, %s26
      %s29 = sphi 0, %s27
      %s30 = sphi 0, %s28
      %s40 = sphi 0, %s42
      %s43 = sphi 0, %s40
      %s44 = sphi 0, %s43
      %s60 = sphi 0, %s44
      %s64 = sphi 0, %s64
      %s66 = sphi 0, %s64
      %s67 = sphi 0, %s66
      %s81 = sphi 0, %s67
      %s85 = sphi 0, %s85
      %s87 = sphi 0, %s85
      %s88 = sphi 0, %s87
      %s102 = sphi 0, %s88
      %s106 = sphi 0, %s106
      %s108 = sphi 0, %s106
      %s109 = sphi 0, %s108
      %s123 = sphi 0, %s109
      %s127 = sphi 0, %s127
      %s129 = sphi 0, %s127
      %s130 = sphi 0, %s129
      %s144 = sphi 0, %s130
      %s152 = sphi 0, %s154
      %s155 = sphi 0, %s152
      %s156 = sphi 0, %s155
      %s172 = sphi 0, %s156
    $region4: #{tpu_custom_call.1} parent=1 // loop_header_branch
      %21 = sbr.rel (%p19) target = $region8
    $region5: #{tpu_custom_call.1} parent=1 // loop_body
      %s23 = ssub.s32 %s18, 1
      %s24 = ssub.s32 %s18, 2
      %s31 = sadd.s32 1, %s26
      %p32 = scmp.ge.s32.totalorder %s31, 1
      %s33 = scalar_select %p32, 0, %s31
      %s34 = sadd.s32 1, %s25
      %s35 = scalar_select %p32, %s34, %s25
      %p36 = scmp.ge.s32.totalorder %s35, 2
      %s37 = scalar_select %p36, 0, %s35
      %s38 = ssub.s32 %s25, %s37
      %p39 = scmp.eq.s32.totalorder %s38, 0
      %s41 = sadd.s32 %s40, 1
      %s42 = scalar_select %p39, %s40, %s41
      %p45 = pneg %p39
      %p46 = scmp.eq.s32.totalorder %s18, 1
      %p47 = por %p45, %p46
      %p48 = scmp.ne.s32.totalorder %s40, %s43
      %p49 = scmp.eq.s32.totalorder %s18, 0
      %p50 = por %p48, %p49
      %p51 = scmp.ne.s32.totalorder %s40, %s43
      %p52 = scmp.eq.s32.totalorder %s23, 1
      %p53 = por %p51, %p52
      %p54 = scmp.ne.s32.totalorder %s43, %s44
      %p55 = scmp.eq.s32.totalorder %s23, 0
      %p56 = por %p54, %p55
      %p57 = scmp.ne.s32.totalorder %s43, %s44
      %p58 = scmp.eq.s32.totalorder %s24, 1
      %p59 = por %p57, %p58
      %p61 = scmp.ne.s32.totalorder %s44, %s60
      %p62 = scmp.eq.s32.totalorder %s24, 0
      %p63 = por %p61, %p62
      %s65 = sadd.s32 %s64, 1
      %p68 = scmp.eq.s32.totalorder %s18, 1
      %p69 = scmp.ne.s32.totalorder %s64, %s66
      %p70 = scmp.eq.s32.totalorder %s18, 0
      %p71 = por %p69, %p70
      %p72 = scmp.ne.s32.totalorder %s64, %s66
      %p73 = scmp.eq.s32.totalorder %s23, 1
      %p74 = por %p72, %p73
      %p75 = scmp.ne.s32.totalorder %s66, %s67
      %p76 = scmp.eq.s32.totalorder %s23, 0
      %p77 = por %p75, %p76
      %p78 = scmp.ne.s32.totalorder %s66, %s67
      %p79 = scmp.eq.s32.totalorder %s24, 1
      %p80 = por %p78, %p79
      %p82 = scmp.ne.s32.totalorder %s67, %s81
      %p83 = scmp.eq.s32.totalorder %s24, 0
      %p84 = por %p82, %p83
      %s86 = sadd.s32 %s85, 1
      %p89 = scmp.eq.s32.totalorder %s18, 1
      %p90 = scmp.ne.s32.totalorder %s85, %s87
      %p91 = scmp.eq.s32.totalorder %s18, 0
      %p92 = por %p90, %p91
      %p93 = scmp.ne.s32.totalorder %s85, %s87
      %p94 = scmp.eq.s32.totalorder %s23, 1
      %p95 = por %p93, %p94
      %p96 = scmp.ne.s32.totalorder %s87, %s88
      %p97 = scmp.eq.s32.totalorder %s23, 0
      %p98 = por %p96, %p97
      %p99 = scmp.ne.s32.totalorder %s87, %s88
      %p100 = scmp.eq.s32.totalorder %s24, 1
      %p101 = por %p99, %p100
      %p103 = scmp.ne.s32.totalorder %s88, %s102
      %p104 = scmp.eq.s32.totalorder %s24, 0
      %p105 = por %p103, %p104
      %s107 = sadd.s32 %s106, 1
      %p110 = scmp.eq.s32.totalorder %s18, 1
      %p111 = scmp.ne.s32.totalorder %s106, %s108
      %p112 = scmp.eq.s32.totalorder %s18, 0
      %p113 = por %p111, %p112
      %p114 = scmp.ne.s32.totalorder %s106, %s108
      %p115 = scmp.eq.s32.totalorder %s23, 1
      %p116 = por %p114, %p115
      %p117 = scmp.ne.s32.totalorder %s108, %s109
      %p118 = scmp.eq.s32.totalorder %s23, 0
      %p119 = por %p117, %p118
      %p120 = scmp.ne.s32.totalorder %s108, %s109
      %p121 = scmp.eq.s32.totalorder %s24, 1
      %p122 = por %p120, %p121
      %p124 = scmp.ne.s32.totalorder %s109, %s123
      %p125 = scmp.eq.s32.totalorder %s24, 0
      %p126 = por %p124, %p125
      %s128 = sadd.s32 %s127, 1
      %p131 = scmp.eq.s32.totalorder %s18, 1
      %p132 = scmp.ne.s32.totalorder %s127, %s129
      %p133 = scmp.eq.s32.totalorder %s18, 0
      %p134 = por %p132, %p133
      %p135 = scmp.ne.s32.totalorder %s127, %s129
      %p136 = scmp.eq.s32.totalorder %s23, 1
      %p137 = por %p135, %p136
      %p138 = scmp.ne.s32.totalorder %s129, %s130
      %p139 = scmp.eq.s32.totalorder %s23, 0
      %p140 = por %p138, %p139
      %p141 = scmp.ne.s32.totalorder %s129, %s130
      %p142 = scmp.eq.s32.totalorder %s24, 1
      %p143 = por %p141, %p142
      %p145 = scmp.ne.s32.totalorder %s130, %s144
      %p146 = scmp.eq.s32.totalorder %s24, 0
      %p147 = por %p145, %p146
      %s148 = ssub.s32 %s25, %s37
      %s149 = ssub.s32 %s26, %s33
      %s150 = sor.u32 %s148, %s149
      %p151 = scmp.eq.s32.totalorder %s150, 0
      %s153 = sadd.s32 %s152, 1
      %s154 = scalar_select %p151, %s152, %s153
      %p157 = pneg %p151
      %p158 = scmp.eq.s32.totalorder %s18, 1
      %p159 = por %p157, %p158
      %p160 = scmp.ne.s32.totalorder %s152, %s155
      %p161 = scmp.eq.s32.totalorder %s18, 0
      %p162 = por %p160, %p161
      %p163 = scmp.ne.s32.totalorder %s152, %s155
      %p164 = scmp.eq.s32.totalorder %s23, 1
      %p165 = por %p163, %p164
      %p166 = scmp.ne.s32.totalorder %s155, %s156
      %p167 = scmp.eq.s32.totalorder %s23, 0
      %p168 = por %p166, %p167
      %p169 = scmp.ne.s32.totalorder %s155, %s156
      %p170 = scmp.eq.s32.totalorder %s24, 1
      %p171 = por %p169, %p170
      %p173 = scmp.ne.s32.totalorder %s156, %s172
      %p174 = scmp.eq.s32.totalorder %s24, 0
      %p175 = por %p173, %p174
      %p176 = scmp.le.s32.totalorder 1, %s18
      %p177 = scmp.lt.s32.totalorder %s18, 3
      %p178 = pnand %p176, %p177
      %p179 = pneg %p178
      // Predicated region
      $region9: #{tpu_custom_call.1} parent=5 // pred_check
        _
      $region10: #{tpu_custom_call.1} parent=5 // pred_check_branch
        %181 = sbr.rel (%p178) target = $region12
      $region11: #{tpu_custom_call.1} parent=5 // pred_region
        %s182 = ssub.s32 %s18, 1
        // Predicated region
        $region13: #{tpu_custom_call.1} parent=11 // pred_check
          %p183 = pneg %p77
        $region14: #{tpu_custom_call.1} parent=11 // pred_check_branch
          %185 = sbr.rel (%p183) target = $region16
        $region15: #{tpu_custom_call.1} parent=11 // pred_region
          %187 = vsyncadd [#allocation6], 0
          %s188 = sshll.u32 %s1, 4
          %s189 = int_to_ptr.hbm [resolvable:$true] %s188
          %s190 = sshll.u32 [#allocation5], 4
          %s191 = int_to_ptr.vmem [resolvable:$true] %s190
          %196 = dma.hbm_to_vmem [thread:$0]  %s189, 18432, %s191, [#allocation6], 128, 128, 8
        $region16: #{tpu_custom_call.1} parent=11 // pred_fallthru
          _
        // Predicated region
        $region17: #{tpu_custom_call.1} parent=11 // pred_check
          %p197 = pneg %p98
        $region18: #{tpu_custom_call.1} parent=11 // pred_check_branch
          %199 = sbr.rel (%p197) target = $region20
        $region19: #{tpu_custom_call.1} parent=11 // pred_region
          _
        $region20: #{tpu_custom_call.1} parent=11 // pred_fallthru
          _
        // Predicated region
        $region21: #{tpu_custom_call.1} parent=11 // pred_check
          %p200 = pneg %p119
        $region22: #{tpu_custom_call.1} parent=11 // pred_check_branch
          %202 = sbr.rel (%p200) target = $region24
        $region23: #{tpu_custom_call.1} parent=11 // pred_region
          %204 = vsyncadd [#allocation6], 0
          %s205 = sshll.u32 %s3, 4
          %s206 = int_to_ptr.hbm [resolvable:$true] %s205
          %s207 = sshll.u32 [#allocation7], 4
          %s208 = int_to_ptr.vmem [resolvable:$true] %s207
          %213 = dma.hbm_to_vmem [thread:$0]  %s206, 2048, %s208, [#allocation6], 128, 128, 8
        $region24: #{tpu_custom_call.1} parent=11 // pred_fallthru
          _
        // Predicated region
        $region25: #{tpu_custom_call.1} parent=11 // pred_check
          %p214 = pneg %p140
        $region26: #{tpu_custom_call.1} parent=11 // pred_check_branch
          %216 = sbr.rel (%p214) target = $region28
        $region27: #{tpu_custom_call.1} parent=11 // pred_region
          _
        $region28: #{tpu_custom_call.1} parent=11 // pred_fallthru
          _
      $region12: #{tpu_custom_call.1} parent=5 // pred_fallthru
        _
      %p217 = scmp.lt.s32.totalorder %s18, 2
      // Predicated region
      $region29: #{tpu_custom_call.1} parent=5 // pred_check
        %p218 = pneg %p217
      $region30: #{tpu_custom_call.1} parent=5 // pred_check_branch
        %220 = sbr.rel (%p218) target = $region32
      $region31: #{tpu_custom_call.1} parent=5 // pred_region
        // Predicated region
        $region33: #{tpu_custom_call.1} parent=31 // pred_check
          %p221 = pneg %p50
        $region34: #{tpu_custom_call.1} parent=31 // pred_check_branch
          %223 = sbr.rel (%p221) target = $region36
        $region35: #{tpu_custom_call.1} parent=31 // pred_region
          %s224 = sand.u32 %s40, 1
          %s225 = scalar_lea.sflag [#allocation3], %s224
          %s226 = sand.u32 %s40, 1
          %s227 = smul.addr %s226, 456
          %s228 = scalar_lea.vmem [#allocation2], %s227
          %230 = vsyncadd %s225, 0
          %s231 = smul.addr %s25, 57
          %s232 = smul.addr %s231, 8
          %s233 = scalar_lea.hbm %s0, %s232
          %s234 = sshll.u32 %s233, 4
          %s235 = int_to_ptr.hbm [resolvable:$true] %s234
          %s236 = sshll.u32 %s228, 4
          %s237 = int_to_ptr.vmem [resolvable:$true] %s236
          %242 = dma.hbm_to_vmem [thread:$0]  %s235, 7296, %s237, %s225, 128, 128, 8
        $region36: #{tpu_custom_call.1} parent=31 // pred_fallthru
          _
      $region32: #{tpu_custom_call.1} parent=5 // pred_fallthru
        _
      %p243 = scmp.le.s32.totalorder 1, %s18
      %p244 = scmp.lt.s32.totalorder %s18, 3
      %p245 = pnand %p243, %p244
      %p246 = pneg %p245
      // Predicated region
      $region37: #{tpu_custom_call.1} parent=5 // pred_check
        _
      $region38: #{tpu_custom_call.1} parent=5 // pred_check_branch
        %248 = sbr.rel (%p245) target = $region40
      $region39: #{tpu_custom_call.1} parent=5 // pred_region
        %s249 = ssub.s32 %s18, 1
        %s250 = sand.u32 %s43, 1
        %s251 = scalar_lea.sflag [#allocation3], %s250
        %s252 = sand.u32 %s43, 1
        %s253 = smul.addr %s252, 456
        %s254 = scalar_lea.vmem [#allocation2], %s253
        // Predicated region
        $region41: #{tpu_custom_call.1} parent=39 // pred_check
          %p255 = pneg %p56
        $region42: #{tpu_custom_call.1} parent=39 // pred_check_branch
          %257 = sbr.rel (%p255) target = $region44
        $region43: #{tpu_custom_call.1} parent=39 // pred_region
          %259 = dma.done %s251, 7296
        $region44: #{tpu_custom_call.1} parent=39 // pred_fallthru
          _
        // Predicated region
        $region45: #{tpu_custom_call.1} parent=39 // pred_check
          %p260 = pneg %p77
        $region46: #{tpu_custom_call.1} parent=39 // pred_check_branch
          %262 = sbr.rel (%p260) target = $region48
        $region47: #{tpu_custom_call.1} parent=39 // pred_region
          %264 = dma.done [#allocation6], 18432
        $region48: #{tpu_custom_call.1} parent=39 // pred_fallthru
          _
        // Predicated region
        $region49: #{tpu_custom_call.1} parent=39 // pred_check
          %p265 = pneg %p119
        $region50: #{tpu_custom_call.1} parent=39 // pred_check_branch
          %267 = sbr.rel (%p265) target = $region52
        $region51: #{tpu_custom_call.1} parent=39 // pred_region
          %269 = dma.done [#allocation6], 2048
        $region52: #{tpu_custom_call.1} parent=39 // pred_fallthru
          _
        %s270 = sand.u32 %s43, 1
        %s271 = scalar_lea.sflag [#allocation3], %s270
        %s272 = sand.u32 %s43, 1
        %s273 = smul.addr %s272, 456
        %s274 = scalar_lea.vmem [#allocation2], %s273
        %p275 = pneg %p56
        %p276 = pneg %p53
        %p277 = pneg %p77
        %p278 = pneg %p74
        %p279 = pneg %p98
        %p280 = pneg %p95
        %p281 = pneg %p119
        %p282 = pneg %p116
        %p283 = pneg %p140
        %p284 = pneg %p137
        %p285 = pneg %p168
        %p286 = pneg %p165
        %s287 = sand.u32 %s155, 1
        %s288 = scalar_lea.sflag [#allocation4], %s287
        %s289 = sand.u32 %s155, 1
        %s290 = smul.addr %s289, 384
        %s291 = scalar_lea.vmem [#allocation8], %s290
        %s292 = smul.u32 48, %s28
        %s293 = smul.u32 %s28, 384
        %s294 = scalar_lea.vmem %s254, %s293 [#allocation2]
        %v295 = vld [vmem:[%s294] sm:$0xff]
        %v296 = vld [vmem:[%s294 + $0x8] sm:$0xff]
        %v297 = vld [vmem:[%s294 + $0x10] sm:$0xff]
        %v298 = vld [vmem:[%s294 + $0x18] sm:$0xff]
        %v299 = vld [vmem:[%s294 + $0x20] sm:$0xff]
        %v300 = vld [vmem:[%s294 + $0x28] sm:$0xff]
        %v301 = vld [vmem:[%s294 + $0x30] sm:$0xff]
        %v302 = vld [vmem:[%s294 + $0x38] sm:$0xff]
        %v303 = vld [vmem:[%s294 + $0x40] sm:$0xff]
        %v304 = vld [vmem:[%s294 + $0x48] sm:$0xff]
        %v305 = vld [vmem:[%s294 + $0x50] sm:$0xff]
        %v306 = vld [vmem:[%s294 + $0x58] sm:$0xff]
        %v307 = vld [vmem:[%s294 + $0x60] sm:$0xff]
        %v308 = vld [vmem:[%s294 + $0x68] sm:$0xff]
        %v309 = vld [vmem:[%s294 + $0x70] sm:$0xff]
        %v310 = vld [vmem:[%s294 + $0x78] sm:$0xff]
        %v311 = vld [vmem:[%s294 + $0x80] sm:$0xff]
        %v312 = vld [vmem:[%s294 + $0x88] sm:$0xff]
        %v313 = vld [vmem:[%s294 + $0x90] sm:$0xff]
        %v314 = vld [vmem:[%s294 + $0x98] sm:$0xff]
        %v315 = vld [vmem:[%s294 + $0xa0] sm:$0xff]
        %v316 = vld [vmem:[%s294 + $0xa8] sm:$0xff]
        %v317 = vld [vmem:[%s294 + $0xb0] sm:$0xff]
        %v318 = vld [vmem:[%s294 + $0xb8] sm:$0xff]
        %v319 = vld [vmem:[%s294 + $0xc0] sm:$0xff]
        %v320 = vld [vmem:[%s294 + $0xc8] sm:$0xff]
        %v321 = vld [vmem:[%s294 + $0xd0] sm:$0xff]
        %v322 = vld [vmem:[%s294 + $0xd8] sm:$0xff]
        %v323 = vld [vmem:[%s294 + $0xe0] sm:$0xff]
        %v324 = vld [vmem:[%s294 + $0xe8] sm:$0xff]
        %v325 = vld [vmem:[%s294 + $0xf0] sm:$0xff]
        %v326 = vld [vmem:[%s294 + $0xf8] sm:$0xff]
        %v327 = vld [vmem:[%s294 + $0x100] sm:$0xff]
        %v328 = vld [vmem:[%s294 + $0x108] sm:$0xff]
        %v329 = vld [vmem:[%s294 + $0x110] sm:$0xff]
        %v330 = vld [vmem:[%s294 + $0x118] sm:$0xff]
        %v331 = vld [vmem:[%s294 + $0x120] sm:$0xff]
        %v332 = vld [vmem:[%s294 + $0x128] sm:$0xff]
        %v333 = vld [vmem:[%s294 + $0x130] sm:$0xff]
        %v334 = vld [vmem:[%s294 + $0x138] sm:$0xff]
        %v335 = vld [vmem:[%s294 + $0x140] sm:$0xff]
        %v336 = vld [vmem:[%s294 + $0x148] sm:$0xff]
        %v337 = vld [vmem:[%s294 + $0x150] sm:$0xff]
        %v338 = vld [vmem:[%s294 + $0x158] sm:$0xff]
        %v339 = vld [vmem:[%s294 + $0x160] sm:$0xff]
        %v340 = vld [vmem:[%s294 + $0x168] sm:$0xff]
        %v341 = vld [vmem:[%s294 + $0x170] sm:$0xff]
        %v342 = vld [vmem:[%s294 + $0x178] sm:$0xff]
        %v343 = vld [vmem:[%s294 + $0x180] sm:$0xff]
        %v344 = vld [vmem:[#allocation5] sm:$0xff]
        %v345 = vld [vmem:[#allocation5 + $0x8] sm:$0xff]
        %v346 = vld [vmem:[#allocation5 + $0x10] sm:$0xff]
        %v347 = vld [vmem:[#allocation5 + $0x18] sm:$0xff]
        %v348 = vld [vmem:[#allocation5 + $0x20] sm:$0xff]
        %v349 = vld [vmem:[#allocation5 + $0x28] sm:$0xff]
        %v350 = vld [vmem:[#allocation5 + $0x30] sm:$0xff]
        %v351 = vld [vmem:[#allocation5 + $0x38] sm:$0xff]
        %v352 = vld [vmem:[#allocation5 + $0x40] sm:$0xff]
        %v353 = vld [vmem:[#allocation5 + $0x48] sm:$0xff]
        %v354 = vld [vmem:[#allocation5 + $0x50] sm:$0xff]
        %v355 = vld [vmem:[#allocation5 + $0x58] sm:$0xff]
        %v356 = vld [vmem:[#allocation5 + $0x60] sm:$0xff]
        %v357 = vld [vmem:[#allocation5 + $0x68] sm:$0xff]
        %v358 = vld [vmem:[#allocation5 + $0x70] sm:$0xff]
        %v359 = vld [vmem:[#allocation5 + $0x78] sm:$0xff]
        %s360 = scalar_lea.vmem [#allocation5], 128
        %v361 = vld [vmem:[%s360] sm:$0xff]
        %v362 = vld [vmem:[%s360 + $0x8] sm:$0xff]
        %v363 = vld [vmem:[%s360 + $0x10] sm:$0xff]
        %v364 = vld [vmem:[%s360 + $0x18] sm:$0xff]
        %v365 = vld [vmem:[%s360 + $0x20] sm:$0xff]
        %v366 = vld [vmem:[%s360 + $0x28] sm:$0xff]
        %v367 = vld [vmem:[%s360 + $0x30] sm:$0xff]
        %v368 = vld [vmem:[%s360 + $0x38] sm:$0xff]
        %v369 = vld [vmem:[%s360 + $0x40] sm:$0xff]
        %v370 = vld [vmem:[%s360 + $0x48] sm:$0xff]
        %v371 = vld [vmem:[%s360 + $0x50] sm:$0xff]
        %v372 = vld [vmem:[%s360 + $0x58] sm:$0xff]
        %v373 = vld [vmem:[%s360 + $0x60] sm:$0xff]
        %v374 = vld [vmem:[%s360 + $0x68] sm:$0xff]
        %v375 = vld [vmem:[%s360 + $0x70] sm:$0xff]
        %v376 = vld [vmem:[%s360 + $0x78] sm:$0xff]
        %vm426 = vcmask 1046528
        %v427 = vrot.slane %v295, 1
        %v428 = vrot.slane %v296, 1
        %v429 = vsel %vm426, %v427, %v428
        %v430 = vrot.slane %v297, 1
        %v431 = vsel %vm426, %v428, %v430
        %v432 = vrot.slane %v298, 1
        %v433 = vsel %vm426, %v430, %v432
        %v434 = vrot.slane %v299, 1
        %v435 = vsel %vm426, %v432, %v434
        %v436 = vrot.slane %v300, 1
        %v437 = vsel %vm426, %v434, %v436
        %v438 = vrot.slane %v301, 1
        %v439 = vsel %vm426, %v436, %v438
        %v440 = vrot.slane %v302, 1
        %v441 = vsel %vm426, %v438, %v440
        %v442 = vrot.slane %v303, 1
        %v443 = vsel %vm426, %v440, %v442
        %v444 = vrot.slane %v304, 1
        %v445 = vsel %vm426, %v442, %v444
        %v446 = vrot.slane %v305, 1
        %v447 = vsel %vm426, %v444, %v446
        %v448 = vrot.slane %v306, 1
        %v449 = vsel %vm426, %v446, %v448
        %v450 = vrot.slane %v307, 1
        %v451 = vsel %vm426, %v448, %v450
        %v452 = vrot.slane %v308, 1
        %v453 = vsel %vm426, %v450, %v452
        %v454 = vrot.slane %v309, 1
        %v455 = vsel %vm426, %v452, %v454
        %v456 = vrot.slane %v310, 1
        %v457 = vsel %vm426, %v454, %v456
        %v458 = vrot.slane %v311, 1
        %v459 = vsel %vm426, %v456, %v458
        %v460 = vrot.slane %v312, 1
        %v461 = vsel %vm426, %v458, %v460
        %v462 = vrot.slane %v313, 1
        %v463 = vsel %vm426, %v460, %v462
        %v464 = vrot.slane %v314, 1
        %v465 = vsel %vm426, %v462, %v464
        %v466 = vrot.slane %v315, 1
        %v467 = vsel %vm426, %v464, %v466
        %v468 = vrot.slane %v316, 1
        %v469 = vsel %vm426, %v466, %v468
        %v470 = vrot.slane %v317, 1
        %v471 = vsel %vm426, %v468, %v470
        %v472 = vrot.slane %v318, 1
        %v473 = vsel %vm426, %v470, %v472
        %v474 = vrot.slane %v319, 1
        %v475 = vsel %vm426, %v472, %v474
        %v476 = vrot.slane %v320, 1
        %v477 = vsel %vm426, %v474, %v476
        %v478 = vrot.slane %v321, 1
        %v479 = vsel %vm426, %v476, %v478
        %v480 = vrot.slane %v322, 1
        %v481 = vsel %vm426, %v478, %v480
        %v482 = vrot.slane %v323, 1
        %v483 = vsel %vm426, %v480, %v482
        %v484 = vrot.slane %v324, 1
        %v485 = vsel %vm426, %v482, %v484
        %v486 = vrot.slane %v325, 1
        %v487 = vsel %vm426, %v484, %v486
        %v488 = vrot.slane %v326, 1
        %v489 = vsel %vm426, %v486, %v488
        %v490 = vrot.slane %v327, 1
        %v491 = vsel %vm426, %v488, %v490
        %v492 = vrot.slane %v328, 1
        %v493 = vsel %vm426, %v490, %v492
        %v494 = vrot.slane %v329, 1
        %v495 = vsel %vm426, %v492, %v494
        %v496 = vrot.slane %v330, 1
        %v497 = vsel %vm426, %v494, %v496
        %v498 = vrot.slane %v331, 1
        %v499 = vsel %vm426, %v496, %v498
        %v500 = vrot.slane %v332, 1
        %v501 = vsel %vm426, %v498, %v500
        %v502 = vrot.slane %v333, 1
        %v503 = vsel %vm426, %v500, %v502
        %v504 = vrot.slane %v334, 1
        %v505 = vsel %vm426, %v502, %v504
        %v506 = vrot.slane %v335, 1
        %v507 = vsel %vm426, %v504, %v506
        %v508 = vrot.slane %v336, 1
        %v509 = vsel %vm426, %v506, %v508
        %v510 = vrot.slane %v337, 1
        %v511 = vsel %vm426, %v508, %v510
        %v512 = vrot.slane %v338, 1
        %v513 = vsel %vm426, %v510, %v512
        %v514 = vrot.slane %v339, 1
        %v515 = vsel %vm426, %v512, %v514
        %v516 = vrot.slane %v340, 1
        %v517 = vsel %vm426, %v514, %v516
        %v518 = vrot.slane %v341, 1
        %v519 = vsel %vm426, %v516, %v518
        %v520 = vrot.slane %v342, 1
        %v521 = vsel %vm426, %v518, %v520
        %v522 = vrot.slane %v343, 1
        %v523 = vsel %vm426, %v520, %v522
        %572 = vmatpush.msra.mxu0 %v376
        %573 = vmatpush.msra.mxu0 %v375
        %574 = vmatpush.msra.mxu0 %v374
        %575 = vmatpush.msra.mxu0 %v373
        %576 = vmatpush.msra.mxu0 %v372
        %577 = vmatpush.msra.mxu0 %v371
        %578 = vmatpush.msra.mxu0 %v370
        %579 = vmatpush.msra.mxu0 %v369
        %580 = vmatpush.msra.mxu0 %v368
        %581 = vmatpush.msra.mxu0 %v367
        %582 = vmatpush.msra.mxu0 %v366
        %583 = vmatpush.msra.mxu0 %v365
        %584 = vmatpush.msra.mxu0 %v364
        %585 = vmatpush.msra.mxu0 %v363
        %586 = vmatpush.msra.mxu0 %v362
        %587 = vmatpush.msra.mxu0 %v361
        %588 = vmatmul.f32.gmra.mxu0 %v429
        %v589 = vpop.f32.mrf.mxu0
        %v590 = vadd.f32 0.0, %v589
        %591 = vmatmul.f32.gmra.mxu0 %v431
        %v592 = vpop.f32.mrf.mxu0
        %v593 = vadd.f32 0.0, %v592
        %594 = vmatmul.f32.gmra.mxu0 %v433
        %v595 = vpop.f32.mrf.mxu0
        %v596 = vadd.f32 0.0, %v595
        %597 = vmatmul.f32.gmra.mxu0 %v435
        %v598 = vpop.f32.mrf.mxu0
        %v599 = vadd.f32 0.0, %v598
        %600 = vmatmul.f32.gmra.mxu0 %v437
        %v601 = vpop.f32.mrf.mxu0
        %v602 = vadd.f32 0.0, %v601
        %603 = vmatmul.f32.gmra.mxu0 %v439
        %v604 = vpop.f32.mrf.mxu0
        %v605 = vadd.f32 0.0, %v604
        %606 = vmatmul.f32.gmra.mxu0 %v441
        %v607 = vpop.f32.mrf.mxu0
        %v608 = vadd.f32 0.0, %v607
        %609 = vmatmul.f32.gmra.mxu0 %v443
        %v610 = vpop.f32.mrf.mxu0
        %v611 = vadd.f32 0.0, %v610
        %612 = vmatmul.f32.gmra.mxu0 %v445
        %v613 = vpop.f32.mrf.mxu0
        %v614 = vadd.f32 0.0, %v613
        %615 = vmatmul.f32.gmra.mxu0 %v447
        %v616 = vpop.f32.mrf.mxu0
        %v617 = vadd.f32 0.0, %v616
        %618 = vmatmul.f32.gmra.mxu0 %v449
        %v619 = vpop.f32.mrf.mxu0
        %v620 = vadd.f32 0.0, %v619
        %621 = vmatmul.f32.gmra.mxu0 %v451
        %v622 = vpop.f32.mrf.mxu0
        %v623 = vadd.f32 0.0, %v622
        %624 = vmatmul.f32.gmra.mxu0 %v453
        %v625 = vpop.f32.mrf.mxu0
        %v626 = vadd.f32 0.0, %v625
        %627 = vmatmul.f32.gmra.mxu0 %v455
        %v628 = vpop.f32.mrf.mxu0
        %v629 = vadd.f32 0.0, %v628
        %630 = vmatmul.f32.gmra.mxu0 %v457
        %v631 = vpop.f32.mrf.mxu0
        %v632 = vadd.f32 0.0, %v631
        %633 = vmatmul.f32.gmra.mxu0 %v459
        %v634 = vpop.f32.mrf.mxu0
        %v635 = vadd.f32 0.0, %v634
        %636 = vmatmul.f32.gmra.mxu0 %v461
        %v637 = vpop.f32.mrf.mxu0
        %v638 = vadd.f32 0.0, %v637
        %639 = vmatmul.f32.gmra.mxu0 %v463
        %v640 = vpop.f32.mrf.mxu0
        %v641 = vadd.f32 0.0, %v640
        %642 = vmatmul.f32.gmra.mxu0 %v465
        %v643 = vpop.f32.mrf.mxu0
        %v644 = vadd.f32 0.0, %v643
        %645 = vmatmul.f32.gmra.mxu0 %v467
        %v646 = vpop.f32.mrf.mxu0
        %v647 = vadd.f32 0.0, %v646
        %648 = vmatmul.f32.gmra.mxu0 %v469
        %v649 = vpop.f32.mrf.mxu0
        %v650 = vadd.f32 0.0, %v649
        %651 = vmatmul.f32.gmra.mxu0 %v471
        %v652 = vpop.f32.mrf.mxu0
        %v653 = vadd.f32 0.0, %v652
        %654 = vmatmul.f32.gmra.mxu0 %v473
        %v655 = vpop.f32.mrf.mxu0
        %v656 = vadd.f32 0.0, %v655
        %657 = vmatmul.f32.gmra.mxu0 %v475
        %v658 = vpop.f32.mrf.mxu0
        %v659 = vadd.f32 0.0, %v658
        %660 = vmatmul.f32.gmra.mxu0 %v477
        %v661 = vpop.f32.mrf.mxu0
        %v662 = vadd.f32 0.0, %v661
        %663 = vmatmul.f32.gmra.mxu0 %v479
        %v664 = vpop.f32.mrf.mxu0
        %v665 = vadd.f32 0.0, %v664
        %666 = vmatmul.f32.gmra.mxu0 %v481
        %v667 = vpop.f32.mrf.mxu0
        %v668 = vadd.f32 0.0, %v667
        %669 = vmatmul.f32.gmra.mxu0 %v483
        %v670 = vpop.f32.mrf.mxu0
        %v671 = vadd.f32 0.0, %v670
        %672 = vmatmul.f32.gmra.mxu0 %v485
        %v673 = vpop.f32.mrf.mxu0
        %v674 = vadd.f32 0.0, %v673
        %675 = vmatmul.f32.gmra.mxu0 %v487
        %v676 = vpop.f32.mrf.mxu0
        %v677 = vadd.f32 0.0, %v676
        %678 = vmatmul.f32.gmra.mxu0 %v489
        %v679 = vpop.f32.mrf.mxu0
        %v680 = vadd.f32 0.0, %v679
        %681 = vmatmul.f32.gmra.mxu0 %v491
        %v682 = vpop.f32.mrf.mxu0
        %v683 = vadd.f32 0.0, %v682
        %684 = vmatmul.f32.gmra.mxu0 %v493
        %v685 = vpop.f32.mrf.mxu0
        %v686 = vadd.f32 0.0, %v685
        %687 = vmatmul.f32.gmra.mxu0 %v495
        %v688 = vpop.f32.mrf.mxu0
        %v689 = vadd.f32 0.0, %v688
        %690 = vmatmul.f32.gmra.mxu0 %v497
        %v691 = vpop.f32.mrf.mxu0
        %v692 = vadd.f32 0.0, %v691
        %693 = vmatmul.f32.gmra.mxu0 %v499
        %v694 = vpop.f32.mrf.mxu0
        %v695 = vadd.f32 0.0, %v694
        %696 = vmatmul.f32.gmra.mxu0 %v501
        %v697 = vpop.f32.mrf.mxu0
        %v698 = vadd.f32 0.0, %v697
        %699 = vmatmul.f32.gmra.mxu0 %v503
        %v700 = vpop.f32.mrf.mxu0
        %v701 = vadd.f32 0.0, %v700
        %702 = vmatmul.f32.gmra.mxu0 %v505
        %v703 = vpop.f32.mrf.mxu0
        %v704 = vadd.f32 0.0, %v703
        %705 = vmatmul.f32.gmra.mxu0 %v507
        %v706 = vpop.f32.mrf.mxu0
        %v707 = vadd.f32 0.0, %v706
        %708 = vmatmul.f32.gmra.mxu0 %v509
        %v709 = vpop.f32.mrf.mxu0
        %v710 = vadd.f32 0.0, %v709
        %711 = vmatmul.f32.gmra.mxu0 %v511
        %v712 = vpop.f32.mrf.mxu0
        %v713 = vadd.f32 0.0, %v712
        %714 = vmatmul.f32.gmra.mxu0 %v513
        %v715 = vpop.f32.mrf.mxu0
        %v716 = vadd.f32 0.0, %v715
        %717 = vmatmul.f32.gmra.mxu0 %v515
        %v718 = vpop.f32.mrf.mxu0
        %v719 = vadd.f32 0.0, %v718
        %720 = vmatmul.f32.gmra.mxu0 %v517
        %v721 = vpop.f32.mrf.mxu0
        %v722 = vadd.f32 0.0, %v721
        %723 = vmatmul.f32.gmra.mxu0 %v519
        %v724 = vpop.f32.mrf.mxu0
        %v725 = vadd.f32 0.0, %v724
        %726 = vmatmul.f32.gmra.mxu0 %v521
        %v727 = vpop.f32.mrf.mxu0
        %v728 = vadd.f32 0.0, %v727
        %729 = vmatmul.f32.gmra.mxu0 %v523
        %v730 = vpop.f32.mrf.mxu0
        %v731 = vadd.f32 0.0, %v730
        %732 = vdwg.mxu0
        %733 = vmatpush.msra.mxu0 %v359
        %734 = vmatpush.msra.mxu0 %v358
        %735 = vmatpush.msra.mxu0 %v357
        %736 = vmatpush.msra.mxu0 %v356
        %737 = vmatpush.msra.mxu0 %v355
        %738 = vmatpush.msra.mxu0 %v354
        %739 = vmatpush.msra.mxu0 %v353
        %740 = vmatpush.msra.mxu0 %v352
        %741 = vmatpush.msra.mxu0 %v351
        %742 = vmatpush.msra.mxu0 %v350
        %743 = vmatpush.msra.mxu0 %v349
        %744 = vmatpush.msra.mxu0 %v348
        %745 = vmatpush.msra.mxu0 %v347
        %746 = vmatpush.msra.mxu0 %v346
        %747 = vmatpush.msra.mxu0 %v345
        %748 = vmatpush.msra.mxu0 %v344
        %749 = vmatmul.f32.gmra.mxu0 %v295
        %v750 = vpop.f32.mrf.mxu0
        %v751 = vadd.f32 %v590, %v750
        %752 = vmatmul.f32.gmra.mxu0 %v296
        %v753 = vpop.f32.mrf.mxu0
        %v754 = vadd.f32 %v593, %v753
        %755 = vmatmul.f32.gmra.mxu0 %v297
        %v756 = vpop.f32.mrf.mxu0
        %v757 = vadd.f32 %v596, %v756
        %758 = vmatmul.f32.gmra.mxu0 %v298
        %v759 = vpop.f32.mrf.mxu0
        %v760 = vadd.f32 %v599, %v759
        %761 = vmatmul.f32.gmra.mxu0 %v299
        %v762 = vpop.f32.mrf.mxu0
        %v763 = vadd.f32 %v602, %v762
        %764 = vmatmul.f32.gmra.mxu0 %v300
        %v765 = vpop.f32.mrf.mxu0
        %v766 = vadd.f32 %v605, %v765
        %767 = vmatmul.f32.gmra.mxu0 %v301
        %v768 = vpop.f32.mrf.mxu0
        %v769 = vadd.f32 %v608, %v768
        %770 = vmatmul.f32.gmra.mxu0 %v302
        %v771 = vpop.f32.mrf.mxu0
        %v772 = vadd.f32 %v611, %v771
        %773 = vmatmul.f32.gmra.mxu0 %v303
        %v774 = vpop.f32.mrf.mxu0
        %v775 = vadd.f32 %v614, %v774
        %776 = vmatmul.f32.gmra.mxu0 %v304
        %v777 = vpop.f32.mrf.mxu0
        %v778 = vadd.f32 %v617, %v777
        %779 = vmatmul.f32.gmra.mxu0 %v305
        %v780 = vpop.f32.mrf.mxu0
        %v781 = vadd.f32 %v620, %v780
        %782 = vmatmul.f32.gmra.mxu0 %v306
        %v783 = vpop.f32.mrf.mxu0
        %v784 = vadd.f32 %v623, %v783
        %785 = vmatmul.f32.gmra.mxu0 %v307
        %v786 = vpop.f32.mrf.mxu0
        %v787 = vadd.f32 %v626, %v786
        %788 = vmatmul.f32.gmra.mxu0 %v308
        %v789 = vpop.f32.mrf.mxu0
        %v790 = vadd.f32 %v629, %v789
        %791 = vmatmul.f32.gmra.mxu0 %v309
        %v792 = vpop.f32.mrf.mxu0
        %v793 = vadd.f32 %v632, %v792
        %794 = vmatmul.f32.gmra.mxu0 %v310
        %v795 = vpop.f32.mrf.mxu0
        %v796 = vadd.f32 %v635, %v795
        %797 = vmatmul.f32.gmra.mxu0 %v311
        %v798 = vpop.f32.mrf.mxu0
        %v799 = vadd.f32 %v638, %v798
        %800 = vmatmul.f32.gmra.mxu0 %v312
        %v801 = vpop.f32.mrf.mxu0
        %v802 = vadd.f32 %v641, %v801
        %803 = vmatmul.f32.gmra.mxu0 %v313
        %v804 = vpop.f32.mrf.mxu0
        %v805 = vadd.f32 %v644, %v804
        %806 = vmatmul.f32.gmra.mxu0 %v314
        %v807 = vpop.f32.mrf.mxu0
        %v808 = vadd.f32 %v647, %v807
        %809 = vmatmul.f32.gmra.mxu0 %v315
        %v810 = vpop.f32.mrf.mxu0
        %v811 = vadd.f32 %v650, %v810
        %812 = vmatmul.f32.gmra.mxu0 %v316
        %v813 = vpop.f32.mrf.mxu0
        %v814 = vadd.f32 %v653, %v813
        %815 = vmatmul.f32.gmra.mxu0 %v317
        %v816 = vpop.f32.mrf.mxu0
        %v817 = vadd.f32 %v656, %v816
        %818 = vmatmul.f32.gmra.mxu0 %v318
        %v819 = vpop.f32.mrf.mxu0
        %v820 = vadd.f32 %v659, %v819
        %821 = vmatmul.f32.gmra.mxu0 %v319
        %v822 = vpop.f32.mrf.mxu0
        %v823 = vadd.f32 %v662, %v822
        %824 = vmatmul.f32.gmra.mxu0 %v320
        %v825 = vpop.f32.mrf.mxu0
        %v826 = vadd.f32 %v665, %v825
        %827 = vmatmul.f32.gmra.mxu0 %v321
        %v828 = vpop.f32.mrf.mxu0
        %v829 = vadd.f32 %v668, %v828
        %830 = vmatmul.f32.gmra.mxu0 %v322
        %v831 = vpop.f32.mrf.mxu0
        %v832 = vadd.f32 %v671, %v831
        %833 = vmatmul.f32.gmra.mxu0 %v323
        %v834 = vpop.f32.mrf.mxu0
        %v835 = vadd.f32 %v674, %v834
        %836 = vmatmul.f32.gmra.mxu0 %v324
        %v837 = vpop.f32.mrf.mxu0
        %v838 = vadd.f32 %v677, %v837
        %839 = vmatmul.f32.gmra.mxu0 %v325
        %v840 = vpop.f32.mrf.mxu0
        %v841 = vadd.f32 %v680, %v840
        %842 = vmatmul.f32.gmra.mxu0 %v326
        %v843 = vpop.f32.mrf.mxu0
        %v844 = vadd.f32 %v683, %v843
        %845 = vmatmul.f32.gmra.mxu0 %v327
        %v846 = vpop.f32.mrf.mxu0
        %v847 = vadd.f32 %v686, %v846
        %848 = vmatmul.f32.gmra.mxu0 %v328
        %v849 = vpop.f32.mrf.mxu0
        %v850 = vadd.f32 %v689, %v849
        %851 = vmatmul.f32.gmra.mxu0 %v329
        %v852 = vpop.f32.mrf.mxu0
        %v853 = vadd.f32 %v692, %v852
        %854 = vmatmul.f32.gmra.mxu0 %v330
        %v855 = vpop.f32.mrf.mxu0
        %v856 = vadd.f32 %v695, %v855
        %857 = vmatmul.f32.gmra.mxu0 %v331
        %v858 = vpop.f32.mrf.mxu0
        %v859 = vadd.f32 %v698, %v858
        %860 = vmatmul.f32.gmra.mxu0 %v332
        %v861 = vpop.f32.mrf.mxu0
        %v862 = vadd.f32 %v701, %v861
        %863 = vmatmul.f32.gmra.mxu0 %v333
        %v864 = vpop.f32.mrf.mxu0
        %v865 = vadd.f32 %v704, %v864
        %866 = vmatmul.f32.gmra.mxu0 %v334
        %v867 = vpop.f32.mrf.mxu0
        %v868 = vadd.f32 %v707, %v867
        %869 = vmatmul.f32.gmra.mxu0 %v335
        %v870 = vpop.f32.mrf.mxu0
        %v871 = vadd.f32 %v710, %v870
        %872 = vmatmul.f32.gmra.mxu0 %v336
        %v873 = vpop.f32.mrf.mxu0
        %v874 = vadd.f32 %v713, %v873
        %875 = vmatmul.f32.gmra.mxu0 %v337
        %v876 = vpop.f32.mrf.mxu0
        %v877 = vadd.f32 %v716, %v876
        %878 = vmatmul.f32.gmra.mxu0 %v338
        %v879 = vpop.f32.mrf.mxu0
        %v880 = vadd.f32 %v719, %v879
        %881 = vmatmul.f32.gmra.mxu0 %v339
        %v882 = vpop.f32.mrf.mxu0
        %v883 = vadd.f32 %v722, %v882
        %884 = vmatmul.f32.gmra.mxu0 %v340
        %v885 = vpop.f32.mrf.mxu0
        %v886 = vadd.f32 %v725, %v885
        %887 = vmatmul.f32.gmra.mxu0 %v341
        %v888 = vpop.f32.mrf.mxu0
        %v889 = vadd.f32 %v728, %v888
        %890 = vmatmul.f32.gmra.mxu0 %v342
        %v891 = vpop.f32.mrf.mxu0
        %v892 = vadd.f32 %v731, %v891
        %893 = vdwg.mxu0
        %s894 = scalar_lea.vmem [#allocation5], 256
        %v895 = vld [vmem:[%s894] sm:$0xff]
        %v896 = vld [vmem:[%s894 + $0x8] sm:$0xff]
        %v897 = vld [vmem:[%s894 + $0x10] sm:$0xff]
        %v898 = vld [vmem:[%s894 + $0x18] sm:$0xff]
        %v899 = vld [vmem:[%s894 + $0x20] sm:$0xff]
        %v900 = vld [vmem:[%s894 + $0x28] sm:$0xff]
        %v901 = vld [vmem:[%s894 + $0x30] sm:$0xff]
        %v902 = vld [vmem:[%s894 + $0x38] sm:$0xff]
        %v903 = vld [vmem:[%s894 + $0x40] sm:$0xff]
        %v904 = vld [vmem:[%s894 + $0x48] sm:$0xff]
        %v905 = vld [vmem:[%s894 + $0x50] sm:$0xff]
        %v906 = vld [vmem:[%s894 + $0x58] sm:$0xff]
        %v907 = vld [vmem:[%s894 + $0x60] sm:$0xff]
        %v908 = vld [vmem:[%s894 + $0x68] sm:$0xff]
        %v909 = vld [vmem:[%s894 + $0x70] sm:$0xff]
        %v910 = vld [vmem:[%s894 + $0x78] sm:$0xff]
        %vm911 = vcmask 1045504
        %v912 = vrot.slane %v295, 2
        %v913 = vrot.slane %v296, 2
        %v914 = vsel %vm911, %v912, %v913
        %v915 = vrot.slane %v297, 2
        %v916 = vsel %vm911, %v913, %v915
        %v917 = vrot.slane %v298, 2
        %v918 = vsel %vm911, %v915, %v917
        %v919 = vrot.slane %v299, 2
        %v920 = vsel %vm911, %v917, %v919
        %v921 = vrot.slane %v300, 2
        %v922 = vsel %vm911, %v919, %v921
        %v923 = vrot.slane %v301, 2
        %v924 = vsel %vm911, %v921, %v923
        %v925 = vrot.slane %v302, 2
        %v926 = vsel %vm911, %v923, %v925
        %v927 = vrot.slane %v303, 2
        %v928 = vsel %vm911, %v925, %v927
        %v929 = vrot.slane %v304, 2
        %v930 = vsel %vm911, %v927, %v929
        %v931 = vrot.slane %v305, 2
        %v932 = vsel %vm911, %v929, %v931
        %v933 = vrot.slane %v306, 2
        %v934 = vsel %vm911, %v931, %v933
        %v935 = vrot.slane %v307, 2
        %v936 = vsel %vm911, %v933, %v935
        %v937 = vrot.slane %v308, 2
        %v938 = vsel %vm911, %v935, %v937
        %v939 = vrot.slane %v309, 2
        %v940 = vsel %vm911, %v937, %v939
        %v941 = vrot.slane %v310, 2
        %v942 = vsel %vm911, %v939, %v941
        %v943 = vrot.slane %v311, 2
        %v944 = vsel %vm911, %v941, %v943
        %v945 = vrot.slane %v312, 2
        %v946 = vsel %vm911, %v943, %v945
        %v947 = vrot.slane %v313, 2
        %v948 = vsel %vm911, %v945, %v947
        %v949 = vrot.slane %v314, 2
        %v950 = vsel %vm911, %v947, %v949
        %v951 = vrot.slane %v315, 2
        %v952 = vsel %vm911, %v949, %v951
        %v953 = vrot.slane %v316, 2
        %v954 = vsel %vm911, %v951, %v953
        %v955 = vrot.slane %v317, 2
        %v956 = vsel %vm911, %v953, %v955
        %v957 = vrot.slane %v318, 2
        %v958 = vsel %vm911, %v955, %v957
        %v959 = vrot.slane %v319, 2
        %v960 = vsel %vm911, %v957, %v959
        %v961 = vrot.slane %v320, 2
        %v962 = vsel %vm911, %v959, %v961
        %v963 = vrot.slane %v321, 2
        %v964 = vsel %vm911, %v961, %v963
        %v965 = vrot.slane %v322, 2
        %v966 = vsel %vm911, %v963, %v965
        %v967 = vrot.slane %v323, 2
        %v968 = vsel %vm911, %v965, %v967
        %v969 = vrot.slane %v324, 2
        %v970 = vsel %vm911, %v967, %v969
        %v971 = vrot.slane %v325, 2
        %v972 = vsel %vm911, %v969, %v971
        %v973 = vrot.slane %v326, 2
        %v974 = vsel %vm911, %v971, %v973
        %v975 = vrot.slane %v327, 2
        %v976 = vsel %vm911, %v973, %v975
        %v977 = vrot.slane %v328, 2
        %v978 = vsel %vm911, %v975, %v977
        %v979 = vrot.slane %v329, 2
        %v980 = vsel %vm911, %v977, %v979
        %v981 = vrot.slane %v330, 2
        %v982 = vsel %vm911, %v979, %v981
        %v983 = vrot.slane %v331, 2
        %v984 = vsel %vm911, %v981, %v983
        %v985 = vrot.slane %v332, 2
        %v986 = vsel %vm911, %v983, %v985
        %v987 = vrot.slane %v333, 2
        %v988 = vsel %vm911, %v985, %v987
        %v989 = vrot.slane %v334, 2
        %v990 = vsel %vm911, %v987, %v989
        %v991 = vrot.slane %v335, 2
        %v992 = vsel %vm911, %v989, %v991
        %v993 = vrot.slane %v336, 2
        %v994 = vsel %vm911, %v991, %v993
        %v995 = vrot.slane %v337, 2
        %v996 = vsel %vm911, %v993, %v995
        %v997 = vrot.slane %v338, 2
        %v998 = vsel %vm911, %v995, %v997
        %v999 = vrot.slane %v339, 2
        %v1000 = vsel %vm911, %v997, %v999
        %v1001 = vrot.slane %v340, 2
        %v1002 = vsel %vm911, %v999, %v1001
        %v1003 = vrot.slane %v341, 2
        %v1004 = vsel %vm911, %v1001, %v1003
        %v1005 = vrot.slane %v342, 2
        %v1006 = vsel %vm911, %v1003, %v1005
        %v1007 = vrot.slane %v343, 2
        %v1008 = vsel %vm911, %v1005, %v1007
        %1057 = vmatpush.msra.mxu0 %v910
        %1058 = vmatpush.msra.mxu0 %v909
        %1059 = vmatpush.msra.mxu0 %v908
        %1060 = vmatpush.msra.mxu0 %v907
        %1061 = vmatpush.msra.mxu0 %v906
        %1062 = vmatpush.msra.mxu0 %v905
        %1063 = vmatpush.msra.mxu0 %v904
        %1064 = vmatpush.msra.mxu0 %v903
        %1065 = vmatpush.msra.mxu0 %v902
        %1066 = vmatpush.msra.mxu0 %v901
        %1067 = vmatpush.msra.mxu0 %v900
        %1068 = vmatpush.msra.mxu0 %v899
        %1069 = vmatpush.msra.mxu0 %v898
        %1070 = vmatpush.msra.mxu0 %v897
        %1071 = vmatpush.msra.mxu0 %v896
        %1072 = vmatpush.msra.mxu0 %v895
        %1073 = vmatmul.f32.gmra.mxu0 %v914
        %v1074 = vpop.f32.mrf.mxu0
        %v1075 = vadd.f32 0.0, %v1074
        %1076 = vmatmul.f32.gmra.mxu0 %v916
        %v1077 = vpop.f32.mrf.mxu0
        %v1078 = vadd.f32 0.0, %v1077
        %1079 = vmatmul.f32.gmra.mxu0 %v918
        %v1080 = vpop.f32.mrf.mxu0
        %v1081 = vadd.f32 0.0, %v1080
        %1082 = vmatmul.f32.gmra.mxu0 %v920
        %v1083 = vpop.f32.mrf.mxu0
        %v1084 = vadd.f32 0.0, %v1083
        %1085 = vmatmul.f32.gmra.mxu0 %v922
        %v1086 = vpop.f32.mrf.mxu0
        %v1087 = vadd.f32 0.0, %v1086
        %1088 = vmatmul.f32.gmra.mxu0 %v924
        %v1089 = vpop.f32.mrf.mxu0
        %v1090 = vadd.f32 0.0, %v1089
        %1091 = vmatmul.f32.gmra.mxu0 %v926
        %v1092 = vpop.f32.mrf.mxu0
        %v1093 = vadd.f32 0.0, %v1092
        %1094 = vmatmul.f32.gmra.mxu0 %v928
        %v1095 = vpop.f32.mrf.mxu0
        %v1096 = vadd.f32 0.0, %v1095
        %1097 = vmatmul.f32.gmra.mxu0 %v930
        %v1098 = vpop.f32.mrf.mxu0
        %v1099 = vadd.f32 0.0, %v1098
        %1100 = vmatmul.f32.gmra.mxu0 %v932
        %v1101 = vpop.f32.mrf.mxu0
        %v1102 = vadd.f32 0.0, %v1101
        %1103 = vmatmul.f32.gmra.mxu0 %v934
        %v1104 = vpop.f32.mrf.mxu0
        %v1105 = vadd.f32 0.0, %v1104
        %1106 = vmatmul.f32.gmra.mxu0 %v936
        %v1107 = vpop.f32.mrf.mxu0
        %v1108 = vadd.f32 0.0, %v1107
        %1109 = vmatmul.f32.gmra.mxu0 %v938
        %v1110 = vpop.f32.mrf.mxu0
        %v1111 = vadd.f32 0.0, %v1110
        %1112 = vmatmul.f32.gmra.mxu0 %v940
        %v1113 = vpop.f32.mrf.mxu0
        %v1114 = vadd.f32 0.0, %v1113
        %1115 = vmatmul.f32.gmra.mxu0 %v942
        %v1116 = vpop.f32.mrf.mxu0
        %v1117 = vadd.f32 0.0, %v1116
        %1118 = vmatmul.f32.gmra.mxu0 %v944
        %v1119 = vpop.f32.mrf.mxu0
        %v1120 = vadd.f32 0.0, %v1119
        %1121 = vmatmul.f32.gmra.mxu0 %v946
        %v1122 = vpop.f32.mrf.mxu0
        %v1123 = vadd.f32 0.0, %v1122
        %1124 = vmatmul.f32.gmra.mxu0 %v948
        %v1125 = vpop.f32.mrf.mxu0
        %v1126 = vadd.f32 0.0, %v1125
        %1127 = vmatmul.f32.gmra.mxu0 %v950
        %v1128 = vpop.f32.mrf.mxu0
        %v1129 = vadd.f32 0.0, %v1128
        %1130 = vmatmul.f32.gmra.mxu0 %v952
        %v1131 = vpop.f32.mrf.mxu0
        %v1132 = vadd.f32 0.0, %v1131
        %1133 = vmatmul.f32.gmra.mxu0 %v954
        %v1134 = vpop.f32.mrf.mxu0
        %v1135 = vadd.f32 0.0, %v1134
        %1136 = vmatmul.f32.gmra.mxu0 %v956
        %v1137 = vpop.f32.mrf.mxu0
        %v1138 = vadd.f32 0.0, %v1137
        %1139 = vmatmul.f32.gmra.mxu0 %v958
        %v1140 = vpop.f32.mrf.mxu0
        %v1141 = vadd.f32 0.0, %v1140
        %1142 = vmatmul.f32.gmra.mxu0 %v960
        %v1143 = vpop.f32.mrf.mxu0
        %v1144 = vadd.f32 0.0, %v1143
        %1145 = vmatmul.f32.gmra.mxu0 %v962
        %v1146 = vpop.f32.mrf.mxu0
        %v1147 = vadd.f32 0.0, %v1146
        %1148 = vmatmul.f32.gmra.mxu0 %v964
        %v1149 = vpop.f32.mrf.mxu0
        %v1150 = vadd.f32 0.0, %v1149
        %1151 = vmatmul.f32.gmra.mxu0 %v966
        %v1152 = vpop.f32.mrf.mxu0
        %v1153 = vadd.f32 0.0, %v1152
        %1154 = vmatmul.f32.gmra.mxu0 %v968
        %v1155 = vpop.f32.mrf.mxu0
        %v1156 = vadd.f32 0.0, %v1155
        %1157 = vmatmul.f32.gmra.mxu0 %v970
        %v1158 = vpop.f32.mrf.mxu0
        %v1159 = vadd.f32 0.0, %v1158
        %1160 = vmatmul.f32.gmra.mxu0 %v972
        %v1161 = vpop.f32.mrf.mxu0
        %v1162 = vadd.f32 0.0, %v1161
        %1163 = vmatmul.f32.gmra.mxu0 %v974
        %v1164 = vpop.f32.mrf.mxu0
        %v1165 = vadd.f32 0.0, %v1164
        %1166 = vmatmul.f32.gmra.mxu0 %v976
        %v1167 = vpop.f32.mrf.mxu0
        %v1168 = vadd.f32 0.0, %v1167
        %1169 = vmatmul.f32.gmra.mxu0 %v978
        %v1170 = vpop.f32.mrf.mxu0
        %v1171 = vadd.f32 0.0, %v1170
        %1172 = vmatmul.f32.gmra.mxu0 %v980
        %v1173 = vpop.f32.mrf.mxu0
        %v1174 = vadd.f32 0.0, %v1173
        %1175 = vmatmul.f32.gmra.mxu0 %v982
        %v1176 = vpop.f32.mrf.mxu0
        %v1177 = vadd.f32 0.0, %v1176
        %1178 = vmatmul.f32.gmra.mxu0 %v984
        %v1179 = vpop.f32.mrf.mxu0
        %v1180 = vadd.f32 0.0, %v1179
        %1181 = vmatmul.f32.gmra.mxu0 %v986
        %v1182 = vpop.f32.mrf.mxu0
        %v1183 = vadd.f32 0.0, %v1182
        %1184 = vmatmul.f32.gmra.mxu0 %v988
        %v1185 = vpop.f32.mrf.mxu0
        %v1186 = vadd.f32 0.0, %v1185
        %1187 = vmatmul.f32.gmra.mxu0 %v990
        %v1188 = vpop.f32.mrf.mxu0
        %v1189 = vadd.f32 0.0, %v1188
        %1190 = vmatmul.f32.gmra.mxu0 %v992
        %v1191 = vpop.f32.mrf.mxu0
        %v1192 = vadd.f32 0.0, %v1191
        %1193 = vmatmul.f32.gmra.mxu0 %v994
        %v1194 = vpop.f32.mrf.mxu0
        %v1195 = vadd.f32 0.0, %v1194
        %1196 = vmatmul.f32.gmra.mxu0 %v996
        %v1197 = vpop.f32.mrf.mxu0
        %v1198 = vadd.f32 0.0, %v1197
        %1199 = vmatmul.f32.gmra.mxu0 %v998
        %v1200 = vpop.f32.mrf.mxu0
        %v1201 = vadd.f32 0.0, %v1200
        %1202 = vmatmul.f32.gmra.mxu0 %v1000
        %v1203 = vpop.f32.mrf.mxu0
        %v1204 = vadd.f32 0.0, %v1203
        %1205 = vmatmul.f32.gmra.mxu0 %v1002
        %v1206 = vpop.f32.mrf.mxu0
        %v1207 = vadd.f32 0.0, %v1206
        %1208 = vmatmul.f32.gmra.mxu0 %v1004
        %v1209 = vpop.f32.mrf.mxu0
        %v1210 = vadd.f32 0.0, %v1209
        %1211 = vmatmul.f32.gmra.mxu0 %v1006
        %v1212 = vpop.f32.mrf.mxu0
        %v1213 = vadd.f32 0.0, %v1212
        %1214 = vmatmul.f32.gmra.mxu0 %v1008
        %v1215 = vpop.f32.mrf.mxu0
        %v1216 = vadd.f32 0.0, %v1215
        %1217 = vdwg.mxu0
        %v1218 = vadd.f32 %v751, %v1075
        %v1219 = vadd.f32 %v754, %v1078
        %v1220 = vadd.f32 %v757, %v1081
        %v1221 = vadd.f32 %v760, %v1084
        %v1222 = vadd.f32 %v763, %v1087
        %v1223 = vadd.f32 %v766, %v1090
        %v1224 = vadd.f32 %v769, %v1093
        %v1225 = vadd.f32 %v772, %v1096
        %v1226 = vadd.f32 %v775, %v1099
        %v1227 = vadd.f32 %v778, %v1102
        %v1228 = vadd.f32 %v781, %v1105
        %v1229 = vadd.f32 %v784, %v1108
        %v1230 = vadd.f32 %v787, %v1111
        %v1231 = vadd.f32 %v790, %v1114
        %v1232 = vadd.f32 %v793, %v1117
        %v1233 = vadd.f32 %v796, %v1120
        %v1234 = vadd.f32 %v799, %v1123
        %v1235 = vadd.f32 %v802, %v1126
        %v1236 = vadd.f32 %v805, %v1129
        %v1237 = vadd.f32 %v808, %v1132
        %v1238 = vadd.f32 %v811, %v1135
        %v1239 = vadd.f32 %v814, %v1138
        %v1240 = vadd.f32 %v817, %v1141
        %v1241 = vadd.f32 %v820, %v1144
        %v1242 = vadd.f32 %v823, %v1147
        %v1243 = vadd.f32 %v826, %v1150
        %v1244 = vadd.f32 %v829, %v1153
        %v1245 = vadd.f32 %v832, %v1156
        %v1246 = vadd.f32 %v835, %v1159
        %v1247 = vadd.f32 %v838, %v1162
        %v1248 = vadd.f32 %v841, %v1165
        %v1249 = vadd.f32 %v844, %v1168
        %v1250 = vadd.f32 %v847, %v1171
        %v1251 = vadd.f32 %v850, %v1174
        %v1252 = vadd.f32 %v853, %v1177
        %v1253 = vadd.f32 %v856, %v1180
        %v1254 = vadd.f32 %v859, %v1183
        %v1255 = vadd.f32 %v862, %v1186
        %v1256 = vadd.f32 %v865, %v1189
        %v1257 = vadd.f32 %v868, %v1192
        %v1258 = vadd.f32 %v871, %v1195
        %v1259 = vadd.f32 %v874, %v1198
        %v1260 = vadd.f32 %v877, %v1201
        %v1261 = vadd.f32 %v880, %v1204
        %v1262 = vadd.f32 %v883, %v1207
        %v1263 = vadd.f32 %v886, %v1210
        %v1264 = vadd.f32 %v889, %v1213
        %v1265 = vadd.f32 %v892, %v1216
        %s1266 = sadd.s32 %s293, 24
        %s1267 = scalar_lea.vmem %s254, %s1266 [#allocation2]
        %v1268 = vld [vmem:[%s1267] sm:$0xff]
        %v1269 = vld [vmem:[%s1267 + $0x8] sm:$0xff]
        %v1270 = vld [vmem:[%s1267 + $0x10] sm:$0xff]
        %v1271 = vld [vmem:[%s1267 + $0x18] sm:$0xff]
        %v1272 = vld [vmem:[%s1267 + $0x20] sm:$0xff]
        %v1273 = vld [vmem:[%s1267 + $0x28] sm:$0xff]
        %v1274 = vld [vmem:[%s1267 + $0x30] sm:$0xff]
        %v1275 = vld [vmem:[%s1267 + $0x38] sm:$0xff]
        %v1276 = vld [vmem:[%s1267 + $0x40] sm:$0xff]
        %v1277 = vld [vmem:[%s1267 + $0x48] sm:$0xff]
        %v1278 = vld [vmem:[%s1267 + $0x50] sm:$0xff]
        %v1279 = vld [vmem:[%s1267 + $0x58] sm:$0xff]
        %v1280 = vld [vmem:[%s1267 + $0x60] sm:$0xff]
        %v1281 = vld [vmem:[%s1267 + $0x68] sm:$0xff]
        %v1282 = vld [vmem:[%s1267 + $0x70] sm:$0xff]
        %v1283 = vld [vmem:[%s1267 + $0x78] sm:$0xff]
        %v1284 = vld [vmem:[%s1267 + $0x80] sm:$0xff]
        %v1285 = vld [vmem:[%s1267 + $0x88] sm:$0xff]
        %v1286 = vld [vmem:[%s1267 + $0x90] sm:$0xff]
        %v1287 = vld [vmem:[%s1267 + $0x98] sm:$0xff]
        %v1288 = vld [vmem:[%s1267 + $0xa0] sm:$0xff]
        %v1289 = vld [vmem:[%s1267 + $0xa8] sm:$0xff]
        %v1290 = vld [vmem:[%s1267 + $0xb0] sm:$0xff]
        %v1291 = vld [vmem:[%s1267 + $0xb8] sm:$0xff]
        %v1292 = vld [vmem:[%s1267 + $0xc0] sm:$0xff]
        %v1293 = vld [vmem:[%s1267 + $0xc8] sm:$0xff]
        %v1294 = vld [vmem:[%s1267 + $0xd0] sm:$0xff]
        %v1295 = vld [vmem:[%s1267 + $0xd8] sm:$0xff]
        %v1296 = vld [vmem:[%s1267 + $0xe0] sm:$0xff]
        %v1297 = vld [vmem:[%s1267 + $0xe8] sm:$0xff]
        %v1298 = vld [vmem:[%s1267 + $0xf0] sm:$0xff]
        %v1299 = vld [vmem:[%s1267 + $0xf8] sm:$0xff]
        %v1300 = vld [vmem:[%s1267 + $0x100] sm:$0xff]
        %v1301 = vld [vmem:[%s1267 + $0x108] sm:$0xff]
        %v1302 = vld [vmem:[%s1267 + $0x110] sm:$0xff]
        %v1303 = vld [vmem:[%s1267 + $0x118] sm:$0xff]
        %v1304 = vld [vmem:[%s1267 + $0x120] sm:$0xff]
        %v1305 = vld [vmem:[%s1267 + $0x128] sm:$0xff]
        %v1306 = vld [vmem:[%s1267 + $0x130] sm:$0xff]
        %v1307 = vld [vmem:[%s1267 + $0x138] sm:$0xff]
        %v1308 = vld [vmem:[%s1267 + $0x140] sm:$0xff]
        %v1309 = vld [vmem:[%s1267 + $0x148] sm:$0xff]
        %v1310 = vld [vmem:[%s1267 + $0x150] sm:$0xff]
        %v1311 = vld [vmem:[%s1267 + $0x158] sm:$0xff]
        %v1312 = vld [vmem:[%s1267 + $0x160] sm:$0xff]
        %v1313 = vld [vmem:[%s1267 + $0x168] sm:$0xff]
        %v1314 = vld [vmem:[%s1267 + $0x170] sm:$0xff]
        %v1315 = vld [vmem:[%s1267 + $0x178] sm:$0xff]
        %v1316 = vld [vmem:[%s1267 + $0x180] sm:$0xff]
        %s1317 = scalar_lea.vmem [#allocation5], 384
        %v1318 = vld [vmem:[%s1317] sm:$0xff]
        %v1319 = vld [vmem:[%s1317 + $0x8] sm:$0xff]
        %v1320 = vld [vmem:[%s1317 + $0x10] sm:$0xff]
        %v1321 = vld [vmem:[%s1317 + $0x18] sm:$0xff]
        %v1322 = vld [vmem:[%s1317 + $0x20] sm:$0xff]
        %v1323 = vld [vmem:[%s1317 + $0x28] sm:$0xff]
        %v1324 = vld [vmem:[%s1317 + $0x30] sm:$0xff]
        %v1325 = vld [vmem:[%s1317 + $0x38] sm:$0xff]
        %v1326 = vld [vmem:[%s1317 + $0x40] sm:$0xff]
        %v1327 = vld [vmem:[%s1317 + $0x48] sm:$0xff]
        %v1328 = vld [vmem:[%s1317 + $0x50] sm:$0xff]
        %v1329 = vld [vmem:[%s1317 + $0x58] sm:$0xff]
        %v1330 = vld [vmem:[%s1317 + $0x60] sm:$0xff]
        %v1331 = vld [vmem:[%s1317 + $0x68] sm:$0xff]
        %v1332 = vld [vmem:[%s1317 + $0x70] sm:$0xff]
        %v1333 = vld [vmem:[%s1317 + $0x78] sm:$0xff]
        %1334 = vmatpush.msra.mxu0 %v1333
        %1335 = vmatpush.msra.mxu0 %v1332
        %1336 = vmatpush.msra.mxu0 %v1331
        %1337 = vmatpush.msra.mxu0 %v1330
        %1338 = vmatpush.msra.mxu0 %v1329
        %1339 = vmatpush.msra.mxu0 %v1328
        %1340 = vmatpush.msra.mxu0 %v1327
        %1341 = vmatpush.msra.mxu0 %v1326
        %1342 = vmatpush.msra.mxu0 %v1325
        %1343 = vmatpush.msra.mxu0 %v1324
        %1344 = vmatpush.msra.mxu0 %v1323
        %1345 = vmatpush.msra.mxu0 %v1322
        %1346 = vmatpush.msra.mxu0 %v1321
        %1347 = vmatpush.msra.mxu0 %v1320
        %1348 = vmatpush.msra.mxu0 %v1319
        %1349 = vmatpush.msra.mxu0 %v1318
        %1350 = vmatmul.f32.gmra.mxu0 %v1268
        %v1351 = vpop.f32.mrf.mxu0
        %v1352 = vadd.f32 0.0, %v1351
        %1353 = vmatmul.f32.gmra.mxu0 %v1269
        %v1354 = vpop.f32.mrf.mxu0
        %v1355 = vadd.f32 0.0, %v1354
        %1356 = vmatmul.f32.gmra.mxu0 %v1270
        %v1357 = vpop.f32.mrf.mxu0
        %v1358 = vadd.f32 0.0, %v1357
        %1359 = vmatmul.f32.gmra.mxu0 %v1271
        %v1360 = vpop.f32.mrf.mxu0
        %v1361 = vadd.f32 0.0, %v1360
        %1362 = vmatmul.f32.gmra.mxu0 %v1272
        %v1363 = vpop.f32.mrf.mxu0
        %v1364 = vadd.f32 0.0, %v1363
        %1365 = vmatmul.f32.gmra.mxu0 %v1273
        %v1366 = vpop.f32.mrf.mxu0
        %v1367 = vadd.f32 0.0, %v1366
        %1368 = vmatmul.f32.gmra.mxu0 %v1274
        %v1369 = vpop.f32.mrf.mxu0
        %v1370 = vadd.f32 0.0, %v1369
        %1371 = vmatmul.f32.gmra.mxu0 %v1275
        %v1372 = vpop.f32.mrf.mxu0
        %v1373 = vadd.f32 0.0, %v1372
        %1374 = vmatmul.f32.gmra.mxu0 %v1276
        %v1375 = vpop.f32.mrf.mxu0
        %v1376 = vadd.f32 0.0, %v1375
        %1377 = vmatmul.f32.gmra.mxu0 %v1277
        %v1378 = vpop.f32.mrf.mxu0
        %v1379 = vadd.f32 0.0, %v1378
        %1380 = vmatmul.f32.gmra.mxu0 %v1278
        %v1381 = vpop.f32.mrf.mxu0
        %v1382 = vadd.f32 0.0, %v1381
        %1383 = vmatmul.f32.gmra.mxu0 %v1279
        %v1384 = vpop.f32.mrf.mxu0
        %v1385 = vadd.f32 0.0, %v1384
        %1386 = vmatmul.f32.gmra.mxu0 %v1280
        %v1387 = vpop.f32.mrf.mxu0
        %v1388 = vadd.f32 0.0, %v1387
        %1389 = vmatmul.f32.gmra.mxu0 %v1281
        %v1390 = vpop.f32.mrf.mxu0
        %v1391 = vadd.f32 0.0, %v1390
        %1392 = vmatmul.f32.gmra.mxu0 %v1282
        %v1393 = vpop.f32.mrf.mxu0
        %v1394 = vadd.f32 0.0, %v1393
        %1395 = vmatmul.f32.gmra.mxu0 %v1283
        %v1396 = vpop.f32.mrf.mxu0
        %v1397 = vadd.f32 0.0, %v1396
        %1398 = vmatmul.f32.gmra.mxu0 %v1284
        %v1399 = vpop.f32.mrf.mxu0
        %v1400 = vadd.f32 0.0, %v1399
        %1401 = vmatmul.f32.gmra.mxu0 %v1285
        %v1402 = vpop.f32.mrf.mxu0
        %v1403 = vadd.f32 0.0, %v1402
        %1404 = vmatmul.f32.gmra.mxu0 %v1286
        %v1405 = vpop.f32.mrf.mxu0
        %v1406 = vadd.f32 0.0, %v1405
        %1407 = vmatmul.f32.gmra.mxu0 %v1287
        %v1408 = vpop.f32.mrf.mxu0
        %v1409 = vadd.f32 0.0, %v1408
        %1410 = vmatmul.f32.gmra.mxu0 %v1288
        %v1411 = vpop.f32.mrf.mxu0
        %v1412 = vadd.f32 0.0, %v1411
        %1413 = vmatmul.f32.gmra.mxu0 %v1289
        %v1414 = vpop.f32.mrf.mxu0
        %v1415 = vadd.f32 0.0, %v1414
        %1416 = vmatmul.f32.gmra.mxu0 %v1290
        %v1417 = vpop.f32.mrf.mxu0
        %v1418 = vadd.f32 0.0, %v1417
        %1419 = vmatmul.f32.gmra.mxu0 %v1291
        %v1420 = vpop.f32.mrf.mxu0
        %v1421 = vadd.f32 0.0, %v1420
        %1422 = vmatmul.f32.gmra.mxu0 %v1292
        %v1423 = vpop.f32.mrf.mxu0
        %v1424 = vadd.f32 0.0, %v1423
        %1425 = vmatmul.f32.gmra.mxu0 %v1293
        %v1426 = vpop.f32.mrf.mxu0
        %v1427 = vadd.f32 0.0, %v1426
        %1428 = vmatmul.f32.gmra.mxu0 %v1294
        %v1429 = vpop.f32.mrf.mxu0
        %v1430 = vadd.f32 0.0, %v1429
        %1431 = vmatmul.f32.gmra.mxu0 %v1295
        %v1432 = vpop.f32.mrf.mxu0
        %v1433 = vadd.f32 0.0, %v1432
        %1434 = vmatmul.f32.gmra.mxu0 %v1296
        %v1435 = vpop.f32.mrf.mxu0
        %v1436 = vadd.f32 0.0, %v1435
        %1437 = vmatmul.f32.gmra.mxu0 %v1297
        %v1438 = vpop.f32.mrf.mxu0
        %v1439 = vadd.f32 0.0, %v1438
        %1440 = vmatmul.f32.gmra.mxu0 %v1298
        %v1441 = vpop.f32.mrf.mxu0
        %v1442 = vadd.f32 0.0, %v1441
        %1443 = vmatmul.f32.gmra.mxu0 %v1299
        %v1444 = vpop.f32.mrf.mxu0
        %v1445 = vadd.f32 0.0, %v1444
        %1446 = vmatmul.f32.gmra.mxu0 %v1300
        %v1447 = vpop.f32.mrf.mxu0
        %v1448 = vadd.f32 0.0, %v1447
        %1449 = vmatmul.f32.gmra.mxu0 %v1301
        %v1450 = vpop.f32.mrf.mxu0
        %v1451 = vadd.f32 0.0, %v1450
        %1452 = vmatmul.f32.gmra.mxu0 %v1302
        %v1453 = vpop.f32.mrf.mxu0
        %v1454 = vadd.f32 0.0, %v1453
        %1455 = vmatmul.f32.gmra.mxu0 %v1303
        %v1456 = vpop.f32.mrf.mxu0
        %v1457 = vadd.f32 0.0, %v1456
        %1458 = vmatmul.f32.gmra.mxu0 %v1304
        %v1459 = vpop.f32.mrf.mxu0
        %v1460 = vadd.f32 0.0, %v1459
        %1461 = vmatmul.f32.gmra.mxu0 %v1305
        %v1462 = vpop.f32.mrf.mxu0
        %v1463 = vadd.f32 0.0, %v1462
        %1464 = vmatmul.f32.gmra.mxu0 %v1306
        %v1465 = vpop.f32.mrf.mxu0
        %v1466 = vadd.f32 0.0, %v1465
        %1467 = vmatmul.f32.gmra.mxu0 %v1307
        %v1468 = vpop.f32.mrf.mxu0
        %v1469 = vadd.f32 0.0, %v1468
        %1470 = vmatmul.f32.gmra.mxu0 %v1308
        %v1471 = vpop.f32.mrf.mxu0
        %v1472 = vadd.f32 0.0, %v1471
        %1473 = vmatmul.f32.gmra.mxu0 %v1309
        %v1474 = vpop.f32.mrf.mxu0
        %v1475 = vadd.f32 0.0, %v1474
        %1476 = vmatmul.f32.gmra.mxu0 %v1310
        %v1477 = vpop.f32.mrf.mxu0
        %v1478 = vadd.f32 0.0, %v1477
        %1479 = vmatmul.f32.gmra.mxu0 %v1311
        %v1480 = vpop.f32.mrf.mxu0
        %v1481 = vadd.f32 0.0, %v1480
        %1482 = vmatmul.f32.gmra.mxu0 %v1312
        %v1483 = vpop.f32.mrf.mxu0
        %v1484 = vadd.f32 0.0, %v1483
        %1485 = vmatmul.f32.gmra.mxu0 %v1313
        %v1486 = vpop.f32.mrf.mxu0
        %v1487 = vadd.f32 0.0, %v1486
        %1488 = vmatmul.f32.gmra.mxu0 %v1314
        %v1489 = vpop.f32.mrf.mxu0
        %v1490 = vadd.f32 0.0, %v1489
        %1491 = vmatmul.f32.gmra.mxu0 %v1315
        %v1492 = vpop.f32.mrf.mxu0
        %v1493 = vadd.f32 0.0, %v1492
        %1494 = vdwg.mxu0
        %v1495 = vadd.f32 %v1218, %v1352
        %v1496 = vadd.f32 %v1219, %v1355
        %v1497 = vadd.f32 %v1220, %v1358
        %v1498 = vadd.f32 %v1221, %v1361
        %v1499 = vadd.f32 %v1222, %v1364
        %v1500 = vadd.f32 %v1223, %v1367
        %v1501 = vadd.f32 %v1224, %v1370
        %v1502 = vadd.f32 %v1225, %v1373
        %v1503 = vadd.f32 %v1226, %v1376
        %v1504 = vadd.f32 %v1227, %v1379
        %v1505 = vadd.f32 %v1228, %v1382
        %v1506 = vadd.f32 %v1229, %v1385
        %v1507 = vadd.f32 %v1230, %v1388
        %v1508 = vadd.f32 %v1231, %v1391
        %v1509 = vadd.f32 %v1232, %v1394
        %v1510 = vadd.f32 %v1233, %v1397
        %v1511 = vadd.f32 %v1234, %v1400
        %v1512 = vadd.f32 %v1235, %v1403
        %v1513 = vadd.f32 %v1236, %v1406
        %v1514 = vadd.f32 %v1237, %v1409
        %v1515 = vadd.f32 %v1238, %v1412
        %v1516 = vadd.f32 %v1239, %v1415
        %v1517 = vadd.f32 %v1240, %v1418
        %v1518 = vadd.f32 %v1241, %v1421
        %v1519 = vadd.f32 %v1242, %v1424
        %v1520 = vadd.f32 %v1243, %v1427
        %v1521 = vadd.f32 %v1244, %v1430
        %v1522 = vadd.f32 %v1245, %v1433
        %v1523 = vadd.f32 %v1246, %v1436
        %v1524 = vadd.f32 %v1247, %v1439
        %v1525 = vadd.f32 %v1248, %v1442
        %v1526 = vadd.f32 %v1249, %v1445
        %v1527 = vadd.f32 %v1250, %v1448
        %v1528 = vadd.f32 %v1251, %v1451
        %v1529 = vadd.f32 %v1252, %v1454
        %v1530 = vadd.f32 %v1253, %v1457
        %v1531 = vadd.f32 %v1254, %v1460
        %v1532 = vadd.f32 %v1255, %v1463
        %v1533 = vadd.f32 %v1256, %v1466
        %v1534 = vadd.f32 %v1257, %v1469
        %v1535 = vadd.f32 %v1258, %v1472
        %v1536 = vadd.f32 %v1259, %v1475
        %v1537 = vadd.f32 %v1260, %v1478
        %v1538 = vadd.f32 %v1261, %v1481
        %v1539 = vadd.f32 %v1262, %v1484
        %v1540 = vadd.f32 %v1263, %v1487
        %v1541 = vadd.f32 %v1264, %v1490
        %v1542 = vadd.f32 %v1265, %v1493
        %s1543 = scalar_lea.vmem [#allocation5], 512
        %v1544 = vld [vmem:[%s1543] sm:$0xff]
        %v1545 = vld [vmem:[%s1543 + $0x8] sm:$0xff]
        %v1546 = vld [vmem:[%s1543 + $0x10] sm:$0xff]
        %v1547 = vld [vmem:[%s1543 + $0x18] sm:$0xff]
        %v1548 = vld [vmem:[%s1543 + $0x20] sm:$0xff]
        %v1549 = vld [vmem:[%s1543 + $0x28] sm:$0xff]
        %v1550 = vld [vmem:[%s1543 + $0x30] sm:$0xff]
        %v1551 = vld [vmem:[%s1543 + $0x38] sm:$0xff]
        %v1552 = vld [vmem:[%s1543 + $0x40] sm:$0xff]
        %v1553 = vld [vmem:[%s1543 + $0x48] sm:$0xff]
        %v1554 = vld [vmem:[%s1543 + $0x50] sm:$0xff]
        %v1555 = vld [vmem:[%s1543 + $0x58] sm:$0xff]
        %v1556 = vld [vmem:[%s1543 + $0x60] sm:$0xff]
        %v1557 = vld [vmem:[%s1543 + $0x68] sm:$0xff]
        %v1558 = vld [vmem:[%s1543 + $0x70] sm:$0xff]
        %v1559 = vld [vmem:[%s1543 + $0x78] sm:$0xff]
        %v1609 = vrot.slane %v1268, 1
        %v1610 = vrot.slane %v1269, 1
        %v1611 = vsel %vm426, %v1609, %v1610
        %v1612 = vrot.slane %v1270, 1
        %v1613 = vsel %vm426, %v1610, %v1612
        %v1614 = vrot.slane %v1271, 1
        %v1615 = vsel %vm426, %v1612, %v1614
        %v1616 = vrot.slane %v1272, 1
        %v1617 = vsel %vm426, %v1614, %v1616
        %v1618 = vrot.slane %v1273, 1
        %v1619 = vsel %vm426, %v1616, %v1618
        %v1620 = vrot.slane %v1274, 1
        %v1621 = vsel %vm426, %v1618, %v1620
        %v1622 = vrot.slane %v1275, 1
        %v1623 = vsel %vm426, %v1620, %v1622
        %v1624 = vrot.slane %v1276, 1
        %v1625 = vsel %vm426, %v1622, %v1624
        %v1626 = vrot.slane %v1277, 1
        %v1627 = vsel %vm426, %v1624, %v1626
        %v1628 = vrot.slane %v1278, 1
        %v1629 = vsel %vm426, %v1626, %v1628
        %v1630 = vrot.slane %v1279, 1
        %v1631 = vsel %vm426, %v1628, %v1630
        %v1632 = vrot.slane %v1280, 1
        %v1633 = vsel %vm426, %v1630, %v1632
        %v1634 = vrot.slane %v1281, 1
        %v1635 = vsel %vm426, %v1632, %v1634
        %v1636 = vrot.slane %v1282, 1
        %v1637 = vsel %vm426, %v1634, %v1636
        %v1638 = vrot.slane %v1283, 1
        %v1639 = vsel %vm426, %v1636, %v1638
        %v1640 = vrot.slane %v1284, 1
        %v1641 = vsel %vm426, %v1638, %v1640
        %v1642 = vrot.slane %v1285, 1
        %v1643 = vsel %vm426, %v1640, %v1642
        %v1644 = vrot.slane %v1286, 1
        %v1645 = vsel %vm426, %v1642, %v1644
        %v1646 = vrot.slane %v1287, 1
        %v1647 = vsel %vm426, %v1644, %v1646
        %v1648 = vrot.slane %v1288, 1
        %v1649 = vsel %vm426, %v1646, %v1648
        %v1650 = vrot.slane %v1289, 1
        %v1651 = vsel %vm426, %v1648, %v1650
        %v1652 = vrot.slane %v1290, 1
        %v1653 = vsel %vm426, %v1650, %v1652
        %v1654 = vrot.slane %v1291, 1
        %v1655 = vsel %vm426, %v1652, %v1654
        %v1656 = vrot.slane %v1292, 1
        %v1657 = vsel %vm426, %v1654, %v1656
        %v1658 = vrot.slane %v1293, 1
        %v1659 = vsel %vm426, %v1656, %v1658
        %v1660 = vrot.slane %v1294, 1
        %v1661 = vsel %vm426, %v1658, %v1660
        %v1662 = vrot.slane %v1295, 1
        %v1663 = vsel %vm426, %v1660, %v1662
        %v1664 = vrot.slane %v1296, 1
        %v1665 = vsel %vm426, %v1662, %v1664
        %v1666 = vrot.slane %v1297, 1
        %v1667 = vsel %vm426, %v1664, %v1666
        %v1668 = vrot.slane %v1298, 1
        %v1669 = vsel %vm426, %v1666, %v1668
        %v1670 = vrot.slane %v1299, 1
        %v1671 = vsel %vm426, %v1668, %v1670
        %v1672 = vrot.slane %v1300, 1
        %v1673 = vsel %vm426, %v1670, %v1672
        %v1674 = vrot.slane %v1301, 1
        %v1675 = vsel %vm426, %v1672, %v1674
        %v1676 = vrot.slane %v1302, 1
        %v1677 = vsel %vm426, %v1674, %v1676
        %v1678 = vrot.slane %v1303, 1
        %v1679 = vsel %vm426, %v1676, %v1678
        %v1680 = vrot.slane %v1304, 1
        %v1681 = vsel %vm426, %v1678, %v1680
        %v1682 = vrot.slane %v1305, 1
        %v1683 = vsel %vm426, %v1680, %v1682
        %v1684 = vrot.slane %v1306, 1
        %v1685 = vsel %vm426, %v1682, %v1684
        %v1686 = vrot.slane %v1307, 1
        %v1687 = vsel %vm426, %v1684, %v1686
        %v1688 = vrot.slane %v1308, 1
        %v1689 = vsel %vm426, %v1686, %v1688
        %v1690 = vrot.slane %v1309, 1
        %v1691 = vsel %vm426, %v1688, %v1690
        %v1692 = vrot.slane %v1310, 1
        %v1693 = vsel %vm426, %v1690, %v1692
        %v1694 = vrot.slane %v1311, 1
        %v1695 = vsel %vm426, %v1692, %v1694
        %v1696 = vrot.slane %v1312, 1
        %v1697 = vsel %vm426, %v1694, %v1696
        %v1698 = vrot.slane %v1313, 1
        %v1699 = vsel %vm426, %v1696, %v1698
        %v1700 = vrot.slane %v1314, 1
        %v1701 = vsel %vm426, %v1698, %v1700
        %v1702 = vrot.slane %v1315, 1
        %v1703 = vsel %vm426, %v1700, %v1702
        %v1704 = vrot.slane %v1316, 1
        %v1705 = vsel %vm426, %v1702, %v1704
        %1754 = vmatpush.msra.mxu0 %v1559
        %1755 = vmatpush.msra.mxu0 %v1558
        %1756 = vmatpush.msra.mxu0 %v1557
        %1757 = vmatpush.msra.mxu0 %v1556
        %1758 = vmatpush.msra.mxu0 %v1555
        %1759 = vmatpush.msra.mxu0 %v1554
        %1760 = vmatpush.msra.mxu0 %v1553
        %1761 = vmatpush.msra.mxu0 %v1552
        %1762 = vmatpush.msra.mxu0 %v1551
        %1763 = vmatpush.msra.mxu0 %v1550
        %1764 = vmatpush.msra.mxu0 %v1549
        %1765 = vmatpush.msra.mxu0 %v1548
        %1766 = vmatpush.msra.mxu0 %v1547
        %1767 = vmatpush.msra.mxu0 %v1546
        %1768 = vmatpush.msra.mxu0 %v1545
        %1769 = vmatpush.msra.mxu0 %v1544
        %1770 = vmatmul.f32.gmra.mxu0 %v1611
        %v1771 = vpop.f32.mrf.mxu0
        %v1772 = vadd.f32 0.0, %v1771
        %1773 = vmatmul.f32.gmra.mxu0 %v1613
        %v1774 = vpop.f32.mrf.mxu0
        %v1775 = vadd.f32 0.0, %v1774
        %1776 = vmatmul.f32.gmra.mxu0 %v1615
        %v1777 = vpop.f32.mrf.mxu0
        %v1778 = vadd.f32 0.0, %v1777
        %1779 = vmatmul.f32.gmra.mxu0 %v1617
        %v1780 = vpop.f32.mrf.mxu0
        %v1781 = vadd.f32 0.0, %v1780
        %1782 = vmatmul.f32.gmra.mxu0 %v1619
        %v1783 = vpop.f32.mrf.mxu0
        %v1784 = vadd.f32 0.0, %v1783
        %1785 = vmatmul.f32.gmra.mxu0 %v1621
        %v1786 = vpop.f32.mrf.mxu0
        %v1787 = vadd.f32 0.0, %v1786
        %1788 = vmatmul.f32.gmra.mxu0 %v1623
        %v1789 = vpop.f32.mrf.mxu0
        %v1790 = vadd.f32 0.0, %v1789
        %1791 = vmatmul.f32.gmra.mxu0 %v1625
        %v1792 = vpop.f32.mrf.mxu0
        %v1793 = vadd.f32 0.0, %v1792
        %1794 = vmatmul.f32.gmra.mxu0 %v1627
        %v1795 = vpop.f32.mrf.mxu0
        %v1796 = vadd.f32 0.0, %v1795
        %1797 = vmatmul.f32.gmra.mxu0 %v1629
        %v1798 = vpop.f32.mrf.mxu0
        %v1799 = vadd.f32 0.0, %v1798
        %1800 = vmatmul.f32.gmra.mxu0 %v1631
        %v1801 = vpop.f32.mrf.mxu0
        %v1802 = vadd.f32 0.0, %v1801
        %1803 = vmatmul.f32.gmra.mxu0 %v1633
        %v1804 = vpop.f32.mrf.mxu0
        %v1805 = vadd.f32 0.0, %v1804
        %1806 = vmatmul.f32.gmra.mxu0 %v1635
        %v1807 = vpop.f32.mrf.mxu0
        %v1808 = vadd.f32 0.0, %v1807
        %1809 = vmatmul.f32.gmra.mxu0 %v1637
        %v1810 = vpop.f32.mrf.mxu0
        %v1811 = vadd.f32 0.0, %v1810
        %1812 = vmatmul.f32.gmra.mxu0 %v1639
        %v1813 = vpop.f32.mrf.mxu0
        %v1814 = vadd.f32 0.0, %v1813
        %1815 = vmatmul.f32.gmra.mxu0 %v1641
        %v1816 = vpop.f32.mrf.mxu0
        %v1817 = vadd.f32 0.0, %v1816
        %1818 = vmatmul.f32.gmra.mxu0 %v1643
        %v1819 = vpop.f32.mrf.mxu0
        %v1820 = vadd.f32 0.0, %v1819
        %1821 = vmatmul.f32.gmra.mxu0 %v1645
        %v1822 = vpop.f32.mrf.mxu0
        %v1823 = vadd.f32 0.0, %v1822
        %1824 = vmatmul.f32.gmra.mxu0 %v1647
        %v1825 = vpop.f32.mrf.mxu0
        %v1826 = vadd.f32 0.0, %v1825
        %1827 = vmatmul.f32.gmra.mxu0 %v1649
        %v1828 = vpop.f32.mrf.mxu0
        %v1829 = vadd.f32 0.0, %v1828
        %1830 = vmatmul.f32.gmra.mxu0 %v1651
        %v1831 = vpop.f32.mrf.mxu0
        %v1832 = vadd.f32 0.0, %v1831
        %1833 = vmatmul.f32.gmra.mxu0 %v1653
        %v1834 = vpop.f32.mrf.mxu0
        %v1835 = vadd.f32 0.0, %v1834
        %1836 = vmatmul.f32.gmra.mxu0 %v1655
        %v1837 = vpop.f32.mrf.mxu0
        %v1838 = vadd.f32 0.0, %v1837
        %1839 = vmatmul.f32.gmra.mxu0 %v1657
        %v1840 = vpop.f32.mrf.mxu0
        %v1841 = vadd.f32 0.0, %v1840
        %1842 = vmatmul.f32.gmra.mxu0 %v1659
        %v1843 = vpop.f32.mrf.mxu0
        %v1844 = vadd.f32 0.0, %v1843
        %1845 = vmatmul.f32.gmra.mxu0 %v1661
        %v1846 = vpop.f32.mrf.mxu0
        %v1847 = vadd.f32 0.0, %v1846
        %1848 = vmatmul.f32.gmra.mxu0 %v1663
        %v1849 = vpop.f32.mrf.mxu0
        %v1850 = vadd.f32 0.0, %v1849
        %1851 = vmatmul.f32.gmra.mxu0 %v1665
        %v1852 = vpop.f32.mrf.mxu0
        %v1853 = vadd.f32 0.0, %v1852
        %1854 = vmatmul.f32.gmra.mxu0 %v1667
        %v1855 = vpop.f32.mrf.mxu0
        %v1856 = vadd.f32 0.0, %v1855
        %1857 = vmatmul.f32.gmra.mxu0 %v1669
        %v1858 = vpop.f32.mrf.mxu0
        %v1859 = vadd.f32 0.0, %v1858
        %1860 = vmatmul.f32.gmra.mxu0 %v1671
        %v1861 = vpop.f32.mrf.mxu0
        %v1862 = vadd.f32 0.0, %v1861
        %1863 = vmatmul.f32.gmra.mxu0 %v1673
        %v1864 = vpop.f32.mrf.mxu0
        %v1865 = vadd.f32 0.0, %v1864
        %1866 = vmatmul.f32.gmra.mxu0 %v1675
        %v1867 = vpop.f32.mrf.mxu0
        %v1868 = vadd.f32 0.0, %v1867
        %1869 = vmatmul.f32.gmra.mxu0 %v1677
        %v1870 = vpop.f32.mrf.mxu0
        %v1871 = vadd.f32 0.0, %v1870
        %1872 = vmatmul.f32.gmra.mxu0 %v1679
        %v1873 = vpop.f32.mrf.mxu0
        %v1874 = vadd.f32 0.0, %v1873
        %1875 = vmatmul.f32.gmra.mxu0 %v1681
        %v1876 = vpop.f32.mrf.mxu0
        %v1877 = vadd.f32 0.0, %v1876
        %1878 = vmatmul.f32.gmra.mxu0 %v1683
        %v1879 = vpop.f32.mrf.mxu0
        %v1880 = vadd.f32 0.0, %v1879
        %1881 = vmatmul.f32.gmra.mxu0 %v1685
        %v1882 = vpop.f32.mrf.mxu0
        %v1883 = vadd.f32 0.0, %v1882
        %1884 = vmatmul.f32.gmra.mxu0 %v1687
        %v1885 = vpop.f32.mrf.mxu0
        %v1886 = vadd.f32 0.0, %v1885
        %1887 = vmatmul.f32.gmra.mxu0 %v1689
        %v1888 = vpop.f32.mrf.mxu0
        %v1889 = vadd.f32 0.0, %v1888
        %1890 = vmatmul.f32.gmra.mxu0 %v1691
        %v1891 = vpop.f32.mrf.mxu0
        %v1892 = vadd.f32 0.0, %v1891
        %1893 = vmatmul.f32.gmra.mxu0 %v1693
        %v1894 = vpop.f32.mrf.mxu0
        %v1895 = vadd.f32 0.0, %v1894
        %1896 = vmatmul.f32.gmra.mxu0 %v1695
        %v1897 = vpop.f32.mrf.mxu0
        %v1898 = vadd.f32 0.0, %v1897
        %1899 = vmatmul.f32.gmra.mxu0 %v1697
        %v1900 = vpop.f32.mrf.mxu0
        %v1901 = vadd.f32 0.0, %v1900
        %1902 = vmatmul.f32.gmra.mxu0 %v1699
        %v1903 = vpop.f32.mrf.mxu0
        %v1904 = vadd.f32 0.0, %v1903
        %1905 = vmatmul.f32.gmra.mxu0 %v1701
        %v1906 = vpop.f32.mrf.mxu0
        %v1907 = vadd.f32 0.0, %v1906
        %1908 = vmatmul.f32.gmra.mxu0 %v1703
        %v1909 = vpop.f32.mrf.mxu0
        %v1910 = vadd.f32 0.0, %v1909
        %1911 = vmatmul.f32.gmra.mxu0 %v1705
        %v1912 = vpop.f32.mrf.mxu0
        %v1913 = vadd.f32 0.0, %v1912
        %1914 = vdwg.mxu0
        %v1915 = vadd.f32 %v1495, %v1772
        %v1916 = vadd.f32 %v1496, %v1775
        %v1917 = vadd.f32 %v1497, %v1778
        %v1918 = vadd.f32 %v1498, %v1781
        %v1919 = vadd.f32 %v1499, %v1784
        %v1920 = vadd.f32 %v1500, %v1787
        %v1921 = vadd.f32 %v1501, %v1790
        %v1922 = vadd.f32 %v1502, %v1793
        %v1923 = vadd.f32 %v1503, %v1796
        %v1924 = vadd.f32 %v1504, %v1799
        %v1925 = vadd.f32 %v1505, %v1802
        %v1926 = vadd.f32 %v1506, %v1805
        %v1927 = vadd.f32 %v1507, %v1808
        %v1928 = vadd.f32 %v1508, %v1811
        %v1929 = vadd.f32 %v1509, %v1814
        %v1930 = vadd.f32 %v1510, %v1817
        %v1931 = vadd.f32 %v1511, %v1820
        %v1932 = vadd.f32 %v1512, %v1823
        %v1933 = vadd.f32 %v1513, %v1826
        %v1934 = vadd.f32 %v1514, %v1829
        %v1935 = vadd.f32 %v1515, %v1832
        %v1936 = vadd.f32 %v1516, %v1835
        %v1937 = vadd.f32 %v1517, %v1838
        %v1938 = vadd.f32 %v1518, %v1841
        %v1939 = vadd.f32 %v1519, %v1844
        %v1940 = vadd.f32 %v1520, %v1847
        %v1941 = vadd.f32 %v1521, %v1850
        %v1942 = vadd.f32 %v1522, %v1853
        %v1943 = vadd.f32 %v1523, %v1856
        %v1944 = vadd.f32 %v1524, %v1859
        %v1945 = vadd.f32 %v1525, %v1862
        %v1946 = vadd.f32 %v1526, %v1865
        %v1947 = vadd.f32 %v1527, %v1868
        %v1948 = vadd.f32 %v1528, %v1871
        %v1949 = vadd.f32 %v1529, %v1874
        %v1950 = vadd.f32 %v1530, %v1877
        %v1951 = vadd.f32 %v1531, %v1880
        %v1952 = vadd.f32 %v1532, %v1883
        %v1953 = vadd.f32 %v1533, %v1886
        %v1954 = vadd.f32 %v1534, %v1889
        %v1955 = vadd.f32 %v1535, %v1892
        %v1956 = vadd.f32 %v1536, %v1895
        %v1957 = vadd.f32 %v1537, %v1898
        %v1958 = vadd.f32 %v1538, %v1901
        %v1959 = vadd.f32 %v1539, %v1904
        %v1960 = vadd.f32 %v1540, %v1907
        %v1961 = vadd.f32 %v1541, %v1910
        %v1962 = vadd.f32 %v1542, %v1913
        %s1963 = scalar_lea.vmem [#allocation5], 640
        %v1964 = vld [vmem:[%s1963] sm:$0xff]
        %v1965 = vld [vmem:[%s1963 + $0x8] sm:$0xff]
        %v1966 = vld [vmem:[%s1963 + $0x10] sm:$0xff]
        %v1967 = vld [vmem:[%s1963 + $0x18] sm:$0xff]
        %v1968 = vld [vmem:[%s1963 + $0x20] sm:$0xff]
        %v1969 = vld [vmem:[%s1963 + $0x28] sm:$0xff]
        %v1970 = vld [vmem:[%s1963 + $0x30] sm:$0xff]
        %v1971 = vld [vmem:[%s1963 + $0x38] sm:$0xff]
        %v1972 = vld [vmem:[%s1963 + $0x40] sm:$0xff]
        %v1973 = vld [vmem:[%s1963 + $0x48] sm:$0xff]
        %v1974 = vld [vmem:[%s1963 + $0x50] sm:$0xff]
        %v1975 = vld [vmem:[%s1963 + $0x58] sm:$0xff]
        %v1976 = vld [vmem:[%s1963 + $0x60] sm:$0xff]
        %v1977 = vld [vmem:[%s1963 + $0x68] sm:$0xff]
        %v1978 = vld [vmem:[%s1963 + $0x70] sm:$0xff]
        %v1979 = vld [vmem:[%s1963 + $0x78] sm:$0xff]
        %v1980 = vrot.slane %v1268, 2
        %v1981 = vrot.slane %v1269, 2
        %v1982 = vsel %vm911, %v1980, %v1981
        %v1983 = vrot.slane %v1270, 2
        %v1984 = vsel %vm911, %v1981, %v1983
        %v1985 = vrot.slane %v1271, 2
        %v1986 = vsel %vm911, %v1983, %v1985
        %v1987 = vrot.slane %v1272, 2
        %v1988 = vsel %vm911, %v1985, %v1987
        %v1989 = vrot.slane %v1273, 2
        %v1990 = vsel %vm911, %v1987, %v1989
        %v1991 = vrot.slane %v1274, 2
        %v1992 = vsel %vm911, %v1989, %v1991
        %v1993 = vrot.slane %v1275, 2
        %v1994 = vsel %vm911, %v1991, %v1993
        %v1995 = vrot.slane %v1276, 2
        %v1996 = vsel %vm911, %v1993, %v1995
        %v1997 = vrot.slane %v1277, 2
        %v1998 = vsel %vm911, %v1995, %v1997
        %v1999 = vrot.slane %v1278, 2
        %v2000 = vsel %vm911, %v1997, %v1999
        %v2001 = vrot.slane %v1279, 2
        %v2002 = vsel %vm911, %v1999, %v2001
        %v2003 = vrot.slane %v1280, 2
        %v2004 = vsel %vm911, %v2001, %v2003
        %v2005 = vrot.slane %v1281, 2
        %v2006 = vsel %vm911, %v2003, %v2005
        %v2007 = vrot.slane %v1282, 2
        %v2008 = vsel %vm911, %v2005, %v2007
        %v2009 = vrot.slane %v1283, 2
        %v2010 = vsel %vm911, %v2007, %v2009
        %v2011 = vrot.slane %v1284, 2
        %v2012 = vsel %vm911, %v2009, %v2011
        %v2013 = vrot.slane %v1285, 2
        %v2014 = vsel %vm911, %v2011, %v2013
        %v2015 = vrot.slane %v1286, 2
        %v2016 = vsel %vm911, %v2013, %v2015
        %v2017 = vrot.slane %v1287, 2
        %v2018 = vsel %vm911, %v2015, %v2017
        %v2019 = vrot.slane %v1288, 2
        %v2020 = vsel %vm911, %v2017, %v2019
        %v2021 = vrot.slane %v1289, 2
        %v2022 = vsel %vm911, %v2019, %v2021
        %v2023 = vrot.slane %v1290, 2
        %v2024 = vsel %vm911, %v2021, %v2023
        %v2025 = vrot.slane %v1291, 2
        %v2026 = vsel %vm911, %v2023, %v2025
        %v2027 = vrot.slane %v1292, 2
        %v2028 = vsel %vm911, %v2025, %v2027
        %v2029 = vrot.slane %v1293, 2
        %v2030 = vsel %vm911, %v2027, %v2029
        %v2031 = vrot.slane %v1294, 2
        %v2032 = vsel %vm911, %v2029, %v2031
        %v2033 = vrot.slane %v1295, 2
        %v2034 = vsel %vm911, %v2031, %v2033
        %v2035 = vrot.slane %v1296, 2
        %v2036 = vsel %vm911, %v2033, %v2035
        %v2037 = vrot.slane %v1297, 2
        %v2038 = vsel %vm911, %v2035, %v2037
        %v2039 = vrot.slane %v1298, 2
        %v2040 = vsel %vm911, %v2037, %v2039
        %v2041 = vrot.slane %v1299, 2
        %v2042 = vsel %vm911, %v2039, %v2041
        %v2043 = vrot.slane %v1300, 2
        %v2044 = vsel %vm911, %v2041, %v2043
        %v2045 = vrot.slane %v1301, 2
        %v2046 = vsel %vm911, %v2043, %v2045
        %v2047 = vrot.slane %v1302, 2
        %v2048 = vsel %vm911, %v2045, %v2047
        %v2049 = vrot.slane %v1303, 2
        %v2050 = vsel %vm911, %v2047, %v2049
        %v2051 = vrot.slane %v1304, 2
        %v2052 = vsel %vm911, %v2049, %v2051
        %v2053 = vrot.slane %v1305, 2
        %v2054 = vsel %vm911, %v2051, %v2053
        %v2055 = vrot.slane %v1306, 2
        %v2056 = vsel %vm911, %v2053, %v2055
        %v2057 = vrot.slane %v1307, 2
        %v2058 = vsel %vm911, %v2055, %v2057
        %v2059 = vrot.slane %v1308, 2
        %v2060 = vsel %vm911, %v2057, %v2059
        %v2061 = vrot.slane %v1309, 2
        %v2062 = vsel %vm911, %v2059, %v2061
        %v2063 = vrot.slane %v1310, 2
        %v2064 = vsel %vm911, %v2061, %v2063
        %v2065 = vrot.slane %v1311, 2
        %v2066 = vsel %vm911, %v2063, %v2065
        %v2067 = vrot.slane %v1312, 2
        %v2068 = vsel %vm911, %v2065, %v2067
        %v2069 = vrot.slane %v1313, 2
        %v2070 = vsel %vm911, %v2067, %v2069
        %v2071 = vrot.slane %v1314, 2
        %v2072 = vsel %vm911, %v2069, %v2071
        %v2073 = vrot.slane %v1315, 2
        %v2074 = vsel %vm911, %v2071, %v2073
        %v2075 = vrot.slane %v1316, 2
        %v2076 = vsel %vm911, %v2073, %v2075
        %2125 = vmatpush.msra.mxu0 %v1979
        %2126 = vmatpush.msra.mxu0 %v1978
        %2127 = vmatpush.msra.mxu0 %v1977
        %2128 = vmatpush.msra.mxu0 %v1976
        %2129 = vmatpush.msra.mxu0 %v1975
        %2130 = vmatpush.msra.mxu0 %v1974
        %2131 = vmatpush.msra.mxu0 %v1973
        %2132 = vmatpush.msra.mxu0 %v1972
        %2133 = vmatpush.msra.mxu0 %v1971
        %2134 = vmatpush.msra.mxu0 %v1970
        %2135 = vmatpush.msra.mxu0 %v1969
        %2136 = vmatpush.msra.mxu0 %v1968
        %2137 = vmatpush.msra.mxu0 %v1967
        %2138 = vmatpush.msra.mxu0 %v1966
        %2139 = vmatpush.msra.mxu0 %v1965
        %2140 = vmatpush.msra.mxu0 %v1964
        %2141 = vmatmul.f32.gmra.mxu0 %v1982
        %v2142 = vpop.f32.mrf.mxu0
        %v2143 = vadd.f32 0.0, %v2142
        %2144 = vmatmul.f32.gmra.mxu0 %v1984
        %v2145 = vpop.f32.mrf.mxu0
        %v2146 = vadd.f32 0.0, %v2145
        %2147 = vmatmul.f32.gmra.mxu0 %v1986
        %v2148 = vpop.f32.mrf.mxu0
        %v2149 = vadd.f32 0.0, %v2148
        %2150 = vmatmul.f32.gmra.mxu0 %v1988
        %v2151 = vpop.f32.mrf.mxu0
        %v2152 = vadd.f32 0.0, %v2151
        %2153 = vmatmul.f32.gmra.mxu0 %v1990
        %v2154 = vpop.f32.mrf.mxu0
        %v2155 = vadd.f32 0.0, %v2154
        %2156 = vmatmul.f32.gmra.mxu0 %v1992
        %v2157 = vpop.f32.mrf.mxu0
        %v2158 = vadd.f32 0.0, %v2157
        %2159 = vmatmul.f32.gmra.mxu0 %v1994
        %v2160 = vpop.f32.mrf.mxu0
        %v2161 = vadd.f32 0.0, %v2160
        %2162 = vmatmul.f32.gmra.mxu0 %v1996
        %v2163 = vpop.f32.mrf.mxu0
        %v2164 = vadd.f32 0.0, %v2163
        %2165 = vmatmul.f32.gmra.mxu0 %v1998
        %v2166 = vpop.f32.mrf.mxu0
        %v2167 = vadd.f32 0.0, %v2166
        %2168 = vmatmul.f32.gmra.mxu0 %v2000
        %v2169 = vpop.f32.mrf.mxu0
        %v2170 = vadd.f32 0.0, %v2169
        %2171 = vmatmul.f32.gmra.mxu0 %v2002
        %v2172 = vpop.f32.mrf.mxu0
        %v2173 = vadd.f32 0.0, %v2172
        %2174 = vmatmul.f32.gmra.mxu0 %v2004
        %v2175 = vpop.f32.mrf.mxu0
        %v2176 = vadd.f32 0.0, %v2175
        %2177 = vmatmul.f32.gmra.mxu0 %v2006
        %v2178 = vpop.f32.mrf.mxu0
        %v2179 = vadd.f32 0.0, %v2178
        %2180 = vmatmul.f32.gmra.mxu0 %v2008
        %v2181 = vpop.f32.mrf.mxu0
        %v2182 = vadd.f32 0.0, %v2181
        %2183 = vmatmul.f32.gmra.mxu0 %v2010
        %v2184 = vpop.f32.mrf.mxu0
        %v2185 = vadd.f32 0.0, %v2184
        %2186 = vmatmul.f32.gmra.mxu0 %v2012
        %v2187 = vpop.f32.mrf.mxu0
        %v2188 = vadd.f32 0.0, %v2187
        %2189 = vmatmul.f32.gmra.mxu0 %v2014
        %v2190 = vpop.f32.mrf.mxu0
        %v2191 = vadd.f32 0.0, %v2190
        %2192 = vmatmul.f32.gmra.mxu0 %v2016
        %v2193 = vpop.f32.mrf.mxu0
        %v2194 = vadd.f32 0.0, %v2193
        %2195 = vmatmul.f32.gmra.mxu0 %v2018
        %v2196 = vpop.f32.mrf.mxu0
        %v2197 = vadd.f32 0.0, %v2196
        %2198 = vmatmul.f32.gmra.mxu0 %v2020
        %v2199 = vpop.f32.mrf.mxu0
        %v2200 = vadd.f32 0.0, %v2199
        %2201 = vmatmul.f32.gmra.mxu0 %v2022
        %v2202 = vpop.f32.mrf.mxu0
        %v2203 = vadd.f32 0.0, %v2202
        %2204 = vmatmul.f32.gmra.mxu0 %v2024
        %v2205 = vpop.f32.mrf.mxu0
        %v2206 = vadd.f32 0.0, %v2205
        %2207 = vmatmul.f32.gmra.mxu0 %v2026
        %v2208 = vpop.f32.mrf.mxu0
        %v2209 = vadd.f32 0.0, %v2208
        %2210 = vmatmul.f32.gmra.mxu0 %v2028
        %v2211 = vpop.f32.mrf.mxu0
        %v2212 = vadd.f32 0.0, %v2211
        %2213 = vmatmul.f32.gmra.mxu0 %v2030
        %v2214 = vpop.f32.mrf.mxu0
        %v2215 = vadd.f32 0.0, %v2214
        %2216 = vmatmul.f32.gmra.mxu0 %v2032
        %v2217 = vpop.f32.mrf.mxu0
        %v2218 = vadd.f32 0.0, %v2217
        %2219 = vmatmul.f32.gmra.mxu0 %v2034
        %v2220 = vpop.f32.mrf.mxu0
        %v2221 = vadd.f32 0.0, %v2220
        %2222 = vmatmul.f32.gmra.mxu0 %v2036
        %v2223 = vpop.f32.mrf.mxu0
        %v2224 = vadd.f32 0.0, %v2223
        %2225 = vmatmul.f32.gmra.mxu0 %v2038
        %v2226 = vpop.f32.mrf.mxu0
        %v2227 = vadd.f32 0.0, %v2226
        %2228 = vmatmul.f32.gmra.mxu0 %v2040
        %v2229 = vpop.f32.mrf.mxu0
        %v2230 = vadd.f32 0.0, %v2229
        %2231 = vmatmul.f32.gmra.mxu0 %v2042
        %v2232 = vpop.f32.mrf.mxu0
        %v2233 = vadd.f32 0.0, %v2232
        %2234 = vmatmul.f32.gmra.mxu0 %v2044
        %v2235 = vpop.f32.mrf.mxu0
        %v2236 = vadd.f32 0.0, %v2235
        %2237 = vmatmul.f32.gmra.mxu0 %v2046
        %v2238 = vpop.f32.mrf.mxu0
        %v2239 = vadd.f32 0.0, %v2238
        %2240 = vmatmul.f32.gmra.mxu0 %v2048
        %v2241 = vpop.f32.mrf.mxu0
        %v2242 = vadd.f32 0.0, %v2241
        %2243 = vmatmul.f32.gmra.mxu0 %v2050
        %v2244 = vpop.f32.mrf.mxu0
        %v2245 = vadd.f32 0.0, %v2244
        %2246 = vmatmul.f32.gmra.mxu0 %v2052
        %v2247 = vpop.f32.mrf.mxu0
        %v2248 = vadd.f32 0.0, %v2247
        %2249 = vmatmul.f32.gmra.mxu0 %v2054
        %v2250 = vpop.f32.mrf.mxu0
        %v2251 = vadd.f32 0.0, %v2250
        %2252 = vmatmul.f32.gmra.mxu0 %v2056
        %v2253 = vpop.f32.mrf.mxu0
        %v2254 = vadd.f32 0.0, %v2253
        %2255 = vmatmul.f32.gmra.mxu0 %v2058
        %v2256 = vpop.f32.mrf.mxu0
        %v2257 = vadd.f32 0.0, %v2256
        %2258 = vmatmul.f32.gmra.mxu0 %v2060
        %v2259 = vpop.f32.mrf.mxu0
        %v2260 = vadd.f32 0.0, %v2259
        %2261 = vmatmul.f32.gmra.mxu0 %v2062
        %v2262 = vpop.f32.mrf.mxu0
        %v2263 = vadd.f32 0.0, %v2262
        %2264 = vmatmul.f32.gmra.mxu0 %v2064
        %v2265 = vpop.f32.mrf.mxu0
        %v2266 = vadd.f32 0.0, %v2265
        %2267 = vmatmul.f32.gmra.mxu0 %v2066
        %v2268 = vpop.f32.mrf.mxu0
        %v2269 = vadd.f32 0.0, %v2268
        %2270 = vmatmul.f32.gmra.mxu0 %v2068
        %v2271 = vpop.f32.mrf.mxu0
        %v2272 = vadd.f32 0.0, %v2271
        %2273 = vmatmul.f32.gmra.mxu0 %v2070
        %v2274 = vpop.f32.mrf.mxu0
        %v2275 = vadd.f32 0.0, %v2274
        %2276 = vmatmul.f32.gmra.mxu0 %v2072
        %v2277 = vpop.f32.mrf.mxu0
        %v2278 = vadd.f32 0.0, %v2277
        %2279 = vmatmul.f32.gmra.mxu0 %v2074
        %v2280 = vpop.f32.mrf.mxu0
        %v2281 = vadd.f32 0.0, %v2280
        %2282 = vmatmul.f32.gmra.mxu0 %v2076
        %v2283 = vpop.f32.mrf.mxu0
        %v2284 = vadd.f32 0.0, %v2283
        %2285 = vdwg.mxu0
        %v2286 = vadd.f32 %v1915, %v2143
        %v2287 = vadd.f32 %v1916, %v2146
        %v2288 = vadd.f32 %v1917, %v2149
        %v2289 = vadd.f32 %v1918, %v2152
        %v2290 = vadd.f32 %v1919, %v2155
        %v2291 = vadd.f32 %v1920, %v2158
        %v2292 = vadd.f32 %v1921, %v2161
        %v2293 = vadd.f32 %v1922, %v2164
        %v2294 = vadd.f32 %v1923, %v2167
        %v2295 = vadd.f32 %v1924, %v2170
        %v2296 = vadd.f32 %v1925, %v2173
        %v2297 = vadd.f32 %v1926, %v2176
        %v2298 = vadd.f32 %v1927, %v2179
        %v2299 = vadd.f32 %v1928, %v2182
        %v2300 = vadd.f32 %v1929, %v2185
        %v2301 = vadd.f32 %v1930, %v2188
        %v2302 = vadd.f32 %v1931, %v2191
        %v2303 = vadd.f32 %v1932, %v2194
        %v2304 = vadd.f32 %v1933, %v2197
        %v2305 = vadd.f32 %v1934, %v2200
        %v2306 = vadd.f32 %v1935, %v2203
        %v2307 = vadd.f32 %v1936, %v2206
        %v2308 = vadd.f32 %v1937, %v2209
        %v2309 = vadd.f32 %v1938, %v2212
        %v2310 = vadd.f32 %v1939, %v2215
        %v2311 = vadd.f32 %v1940, %v2218
        %v2312 = vadd.f32 %v1941, %v2221
        %v2313 = vadd.f32 %v1942, %v2224
        %v2314 = vadd.f32 %v1943, %v2227
        %v2315 = vadd.f32 %v1944, %v2230
        %v2316 = vadd.f32 %v1945, %v2233
        %v2317 = vadd.f32 %v1946, %v2236
        %v2318 = vadd.f32 %v1947, %v2239
        %v2319 = vadd.f32 %v1948, %v2242
        %v2320 = vadd.f32 %v1949, %v2245
        %v2321 = vadd.f32 %v1950, %v2248
        %v2322 = vadd.f32 %v1951, %v2251
        %v2323 = vadd.f32 %v1952, %v2254
        %v2324 = vadd.f32 %v1953, %v2257
        %v2325 = vadd.f32 %v1954, %v2260
        %v2326 = vadd.f32 %v1955, %v2263
        %v2327 = vadd.f32 %v1956, %v2266
        %v2328 = vadd.f32 %v1957, %v2269
        %v2329 = vadd.f32 %v1958, %v2272
        %v2330 = vadd.f32 %v1959, %v2275
        %v2331 = vadd.f32 %v1960, %v2278
        %v2332 = vadd.f32 %v1961, %v2281
        %v2333 = vadd.f32 %v1962, %v2284
        %s2334 = sadd.s32 %s293, 48
        %s2335 = scalar_lea.vmem %s254, %s2334 [#allocation2]
        %v2336 = vld [vmem:[%s2335] sm:$0xff]
        %v2337 = vld [vmem:[%s2335 + $0x8] sm:$0xff]
        %v2338 = vld [vmem:[%s2335 + $0x10] sm:$0xff]
        %v2339 = vld [vmem:[%s2335 + $0x18] sm:$0xff]
        %v2340 = vld [vmem:[%s2335 + $0x20] sm:$0xff]
        %v2341 = vld [vmem:[%s2335 + $0x28] sm:$0xff]
        %v2342 = vld [vmem:[%s2335 + $0x30] sm:$0xff]
        %v2343 = vld [vmem:[%s2335 + $0x38] sm:$0xff]
        %v2344 = vld [vmem:[%s2335 + $0x40] sm:$0xff]
        %v2345 = vld [vmem:[%s2335 + $0x48] sm:$0xff]
        %v2346 = vld [vmem:[%s2335 + $0x50] sm:$0xff]
        %v2347 = vld [vmem:[%s2335 + $0x58] sm:$0xff]
        %v2348 = vld [vmem:[%s2335 + $0x60] sm:$0xff]
        %v2349 = vld [vmem:[%s2335 + $0x68] sm:$0xff]
        %v2350 = vld [vmem:[%s2335 + $0x70] sm:$0xff]
        %v2351 = vld [vmem:[%s2335 + $0x78] sm:$0xff]
        %v2352 = vld [vmem:[%s2335 + $0x80] sm:$0xff]
        %v2353 = vld [vmem:[%s2335 + $0x88] sm:$0xff]
        %v2354 = vld [vmem:[%s2335 + $0x90] sm:$0xff]
        %v2355 = vld [vmem:[%s2335 + $0x98] sm:$0xff]
        %v2356 = vld [vmem:[%s2335 + $0xa0] sm:$0xff]
        %v2357 = vld [vmem:[%s2335 + $0xa8] sm:$0xff]
        %v2358 = vld [vmem:[%s2335 + $0xb0] sm:$0xff]
        %v2359 = vld [vmem:[%s2335 + $0xb8] sm:$0xff]
        %v2360 = vld [vmem:[%s2335 + $0xc0] sm:$0xff]
        %v2361 = vld [vmem:[%s2335 + $0xc8] sm:$0xff]
        %v2362 = vld [vmem:[%s2335 + $0xd0] sm:$0xff]
        %v2363 = vld [vmem:[%s2335 + $0xd8] sm:$0xff]
        %v2364 = vld [vmem:[%s2335 + $0xe0] sm:$0xff]
        %v2365 = vld [vmem:[%s2335 + $0xe8] sm:$0xff]
        %v2366 = vld [vmem:[%s2335 + $0xf0] sm:$0xff]
        %v2367 = vld [vmem:[%s2335 + $0xf8] sm:$0xff]
        %v2368 = vld [vmem:[%s2335 + $0x100] sm:$0xff]
        %v2369 = vld [vmem:[%s2335 + $0x108] sm:$0xff]
        %v2370 = vld [vmem:[%s2335 + $0x110] sm:$0xff]
        %v2371 = vld [vmem:[%s2335 + $0x118] sm:$0xff]
        %v2372 = vld [vmem:[%s2335 + $0x120] sm:$0xff]
        %v2373 = vld [vmem:[%s2335 + $0x128] sm:$0xff]
        %v2374 = vld [vmem:[%s2335 + $0x130] sm:$0xff]
        %v2375 = vld [vmem:[%s2335 + $0x138] sm:$0xff]
        %v2376 = vld [vmem:[%s2335 + $0x140] sm:$0xff]
        %v2377 = vld [vmem:[%s2335 + $0x148] sm:$0xff]
        %v2378 = vld [vmem:[%s2335 + $0x150] sm:$0xff]
        %v2379 = vld [vmem:[%s2335 + $0x158] sm:$0xff]
        %v2380 = vld [vmem:[%s2335 + $0x160] sm:$0xff]
        %v2381 = vld [vmem:[%s2335 + $0x168] sm:$0xff]
        %v2382 = vld [vmem:[%s2335 + $0x170] sm:$0xff]
        %v2383 = vld [vmem:[%s2335 + $0x178] sm:$0xff]
        %v2384 = vld [vmem:[%s2335 + $0x180] sm:$0xff]
        %s2385 = scalar_lea.vmem [#allocation5], 768
        %v2386 = vld [vmem:[%s2385] sm:$0xff]
        %v2387 = vld [vmem:[%s2385 + $0x8] sm:$0xff]
        %v2388 = vld [vmem:[%s2385 + $0x10] sm:$0xff]
        %v2389 = vld [vmem:[%s2385 + $0x18] sm:$0xff]
        %v2390 = vld [vmem:[%s2385 + $0x20] sm:$0xff]
        %v2391 = vld [vmem:[%s2385 + $0x28] sm:$0xff]
        %v2392 = vld [vmem:[%s2385 + $0x30] sm:$0xff]
        %v2393 = vld [vmem:[%s2385 + $0x38] sm:$0xff]
        %v2394 = vld [vmem:[%s2385 + $0x40] sm:$0xff]
        %v2395 = vld [vmem:[%s2385 + $0x48] sm:$0xff]
        %v2396 = vld [vmem:[%s2385 + $0x50] sm:$0xff]
        %v2397 = vld [vmem:[%s2385 + $0x58] sm:$0xff]
        %v2398 = vld [vmem:[%s2385 + $0x60] sm:$0xff]
        %v2399 = vld [vmem:[%s2385 + $0x68] sm:$0xff]
        %v2400 = vld [vmem:[%s2385 + $0x70] sm:$0xff]
        %v2401 = vld [vmem:[%s2385 + $0x78] sm:$0xff]
        %2402 = vmatpush.msra.mxu0 %v2401
        %2403 = vmatpush.msra.mxu0 %v2400
        %2404 = vmatpush.msra.mxu0 %v2399
        %2405 = vmatpush.msra.mxu0 %v2398
        %2406 = vmatpush.msra.mxu0 %v2397
        %2407 = vmatpush.msra.mxu0 %v2396
        %2408 = vmatpush.msra.mxu0 %v2395
        %2409 = vmatpush.msra.mxu0 %v2394
        %2410 = vmatpush.msra.mxu0 %v2393
        %2411 = vmatpush.msra.mxu0 %v2392
        %2412 = vmatpush.msra.mxu0 %v2391
        %2413 = vmatpush.msra.mxu0 %v2390
        %2414 = vmatpush.msra.mxu0 %v2389
        %2415 = vmatpush.msra.mxu0 %v2388
        %2416 = vmatpush.msra.mxu0 %v2387
        %2417 = vmatpush.msra.mxu0 %v2386
        %2418 = vmatmul.f32.gmra.mxu0 %v2336
        %v2419 = vpop.f32.mrf.mxu0
        %v2420 = vadd.f32 0.0, %v2419
        %2421 = vmatmul.f32.gmra.mxu0 %v2337
        %v2422 = vpop.f32.mrf.mxu0
        %v2423 = vadd.f32 0.0, %v2422
        %2424 = vmatmul.f32.gmra.mxu0 %v2338
        %v2425 = vpop.f32.mrf.mxu0
        %v2426 = vadd.f32 0.0, %v2425
        %2427 = vmatmul.f32.gmra.mxu0 %v2339
        %v2428 = vpop.f32.mrf.mxu0
        %v2429 = vadd.f32 0.0, %v2428
        %2430 = vmatmul.f32.gmra.mxu0 %v2340
        %v2431 = vpop.f32.mrf.mxu0
        %v2432 = vadd.f32 0.0, %v2431
        %2433 = vmatmul.f32.gmra.mxu0 %v2341
        %v2434 = vpop.f32.mrf.mxu0
        %v2435 = vadd.f32 0.0, %v2434
        %2436 = vmatmul.f32.gmra.mxu0 %v2342
        %v2437 = vpop.f32.mrf.mxu0
        %v2438 = vadd.f32 0.0, %v2437
        %2439 = vmatmul.f32.gmra.mxu0 %v2343
        %v2440 = vpop.f32.mrf.mxu0
        %v2441 = vadd.f32 0.0, %v2440
        %2442 = vmatmul.f32.gmra.mxu0 %v2344
        %v2443 = vpop.f32.mrf.mxu0
        %v2444 = vadd.f32 0.0, %v2443
        %2445 = vmatmul.f32.gmra.mxu0 %v2345
        %v2446 = vpop.f32.mrf.mxu0
        %v2447 = vadd.f32 0.0, %v2446
        %2448 = vmatmul.f32.gmra.mxu0 %v2346
        %v2449 = vpop.f32.mrf.mxu0
        %v2450 = vadd.f32 0.0, %v2449
        %2451 = vmatmul.f32.gmra.mxu0 %v2347
        %v2452 = vpop.f32.mrf.mxu0
        %v2453 = vadd.f32 0.0, %v2452
        %2454 = vmatmul.f32.gmra.mxu0 %v2348
        %v2455 = vpop.f32.mrf.mxu0
        %v2456 = vadd.f32 0.0, %v2455
        %2457 = vmatmul.f32.gmra.mxu0 %v2349
        %v2458 = vpop.f32.mrf.mxu0
        %v2459 = vadd.f32 0.0, %v2458
        %2460 = vmatmul.f32.gmra.mxu0 %v2350
        %v2461 = vpop.f32.mrf.mxu0
        %v2462 = vadd.f32 0.0, %v2461
        %2463 = vmatmul.f32.gmra.mxu0 %v2351
        %v2464 = vpop.f32.mrf.mxu0
        %v2465 = vadd.f32 0.0, %v2464
        %2466 = vmatmul.f32.gmra.mxu0 %v2352
        %v2467 = vpop.f32.mrf.mxu0
        %v2468 = vadd.f32 0.0, %v2467
        %2469 = vmatmul.f32.gmra.mxu0 %v2353
        %v2470 = vpop.f32.mrf.mxu0
        %v2471 = vadd.f32 0.0, %v2470
        %2472 = vmatmul.f32.gmra.mxu0 %v2354
        %v2473 = vpop.f32.mrf.mxu0
        %v2474 = vadd.f32 0.0, %v2473
        %2475 = vmatmul.f32.gmra.mxu0 %v2355
        %v2476 = vpop.f32.mrf.mxu0
        %v2477 = vadd.f32 0.0, %v2476
        %2478 = vmatmul.f32.gmra.mxu0 %v2356
        %v2479 = vpop.f32.mrf.mxu0
        %v2480 = vadd.f32 0.0, %v2479
        %2481 = vmatmul.f32.gmra.mxu0 %v2357
        %v2482 = vpop.f32.mrf.mxu0
        %v2483 = vadd.f32 0.0, %v2482
        %2484 = vmatmul.f32.gmra.mxu0 %v2358
        %v2485 = vpop.f32.mrf.mxu0
        %v2486 = vadd.f32 0.0, %v2485
        %2487 = vmatmul.f32.gmra.mxu0 %v2359
        %v2488 = vpop.f32.mrf.mxu0
        %v2489 = vadd.f32 0.0, %v2488
        %2490 = vmatmul.f32.gmra.mxu0 %v2360
        %v2491 = vpop.f32.mrf.mxu0
        %v2492 = vadd.f32 0.0, %v2491
        %2493 = vmatmul.f32.gmra.mxu0 %v2361
        %v2494 = vpop.f32.mrf.mxu0
        %v2495 = vadd.f32 0.0, %v2494
        %2496 = vmatmul.f32.gmra.mxu0 %v2362
        %v2497 = vpop.f32.mrf.mxu0
        %v2498 = vadd.f32 0.0, %v2497
        %2499 = vmatmul.f32.gmra.mxu0 %v2363
        %v2500 = vpop.f32.mrf.mxu0
        %v2501 = vadd.f32 0.0, %v2500
        %2502 = vmatmul.f32.gmra.mxu0 %v2364
        %v2503 = vpop.f32.mrf.mxu0
        %v2504 = vadd.f32 0.0, %v2503
        %2505 = vmatmul.f32.gmra.mxu0 %v2365
        %v2506 = vpop.f32.mrf.mxu0
        %v2507 = vadd.f32 0.0, %v2506
        %2508 = vmatmul.f32.gmra.mxu0 %v2366
        %v2509 = vpop.f32.mrf.mxu0
        %v2510 = vadd.f32 0.0, %v2509
        %2511 = vmatmul.f32.gmra.mxu0 %v2367
        %v2512 = vpop.f32.mrf.mxu0
        %v2513 = vadd.f32 0.0, %v2512
        %2514 = vmatmul.f32.gmra.mxu0 %v2368
        %v2515 = vpop.f32.mrf.mxu0
        %v2516 = vadd.f32 0.0, %v2515
        %2517 = vmatmul.f32.gmra.mxu0 %v2369
        %v2518 = vpop.f32.mrf.mxu0
        %v2519 = vadd.f32 0.0, %v2518
        %2520 = vmatmul.f32.gmra.mxu0 %v2370
        %v2521 = vpop.f32.mrf.mxu0
        %v2522 = vadd.f32 0.0, %v2521
        %2523 = vmatmul.f32.gmra.mxu0 %v2371
        %v2524 = vpop.f32.mrf.mxu0
        %v2525 = vadd.f32 0.0, %v2524
        %2526 = vmatmul.f32.gmra.mxu0 %v2372
        %v2527 = vpop.f32.mrf.mxu0
        %v2528 = vadd.f32 0.0, %v2527
        %2529 = vmatmul.f32.gmra.mxu0 %v2373
        %v2530 = vpop.f32.mrf.mxu0
        %v2531 = vadd.f32 0.0, %v2530
        %2532 = vmatmul.f32.gmra.mxu0 %v2374
        %v2533 = vpop.f32.mrf.mxu0
        %v2534 = vadd.f32 0.0, %v2533
        %2535 = vmatmul.f32.gmra.mxu0 %v2375
        %v2536 = vpop.f32.mrf.mxu0
        %v2537 = vadd.f32 0.0, %v2536
        %2538 = vmatmul.f32.gmra.mxu0 %v2376
        %v2539 = vpop.f32.mrf.mxu0
        %v2540 = vadd.f32 0.0, %v2539
        %2541 = vmatmul.f32.gmra.mxu0 %v2377
        %v2542 = vpop.f32.mrf.mxu0
        %v2543 = vadd.f32 0.0, %v2542
        %2544 = vmatmul.f32.gmra.mxu0 %v2378
        %v2545 = vpop.f32.mrf.mxu0
        %v2546 = vadd.f32 0.0, %v2545
        %2547 = vmatmul.f32.gmra.mxu0 %v2379
        %v2548 = vpop.f32.mrf.mxu0
        %v2549 = vadd.f32 0.0, %v2548
        %2550 = vmatmul.f32.gmra.mxu0 %v2380
        %v2551 = vpop.f32.mrf.mxu0
        %v2552 = vadd.f32 0.0, %v2551
        %2553 = vmatmul.f32.gmra.mxu0 %v2381
        %v2554 = vpop.f32.mrf.mxu0
        %v2555 = vadd.f32 0.0, %v2554
        %2556 = vmatmul.f32.gmra.mxu0 %v2382
        %v2557 = vpop.f32.mrf.mxu0
        %v2558 = vadd.f32 0.0, %v2557
        %2559 = vmatmul.f32.gmra.mxu0 %v2383
        %v2560 = vpop.f32.mrf.mxu0
        %v2561 = vadd.f32 0.0, %v2560
        %2562 = vdwg.mxu0
        %v2563 = vadd.f32 %v2286, %v2420
        %v2564 = vadd.f32 %v2287, %v2423
        %v2565 = vadd.f32 %v2288, %v2426
        %v2566 = vadd.f32 %v2289, %v2429
        %v2567 = vadd.f32 %v2290, %v2432
        %v2568 = vadd.f32 %v2291, %v2435
        %v2569 = vadd.f32 %v2292, %v2438
        %v2570 = vadd.f32 %v2293, %v2441
        %v2571 = vadd.f32 %v2294, %v2444
        %v2572 = vadd.f32 %v2295, %v2447
        %v2573 = vadd.f32 %v2296, %v2450
        %v2574 = vadd.f32 %v2297, %v2453
        %v2575 = vadd.f32 %v2298, %v2456
        %v2576 = vadd.f32 %v2299, %v2459
        %v2577 = vadd.f32 %v2300, %v2462
        %v2578 = vadd.f32 %v2301, %v2465
        %v2579 = vadd.f32 %v2302, %v2468
        %v2580 = vadd.f32 %v2303, %v2471
        %v2581 = vadd.f32 %v2304, %v2474
        %v2582 = vadd.f32 %v2305, %v2477
        %v2583 = vadd.f32 %v2306, %v2480
        %v2584 = vadd.f32 %v2307, %v2483
        %v2585 = vadd.f32 %v2308, %v2486
        %v2586 = vadd.f32 %v2309, %v2489
        %v2587 = vadd.f32 %v2310, %v2492
        %v2588 = vadd.f32 %v2311, %v2495
        %v2589 = vadd.f32 %v2312, %v2498
        %v2590 = vadd.f32 %v2313, %v2501
        %v2591 = vadd.f32 %v2314, %v2504
        %v2592 = vadd.f32 %v2315, %v2507
        %v2593 = vadd.f32 %v2316, %v2510
        %v2594 = vadd.f32 %v2317, %v2513
        %v2595 = vadd.f32 %v2318, %v2516
        %v2596 = vadd.f32 %v2319, %v2519
        %v2597 = vadd.f32 %v2320, %v2522
        %v2598 = vadd.f32 %v2321, %v2525
        %v2599 = vadd.f32 %v2322, %v2528
        %v2600 = vadd.f32 %v2323, %v2531
        %v2601 = vadd.f32 %v2324, %v2534
        %v2602 = vadd.f32 %v2325, %v2537
        %v2603 = vadd.f32 %v2326, %v2540
        %v2604 = vadd.f32 %v2327, %v2543
        %v2605 = vadd.f32 %v2328, %v2546
        %v2606 = vadd.f32 %v2329, %v2549
        %v2607 = vadd.f32 %v2330, %v2552
        %v2608 = vadd.f32 %v2331, %v2555
        %v2609 = vadd.f32 %v2332, %v2558
        %v2610 = vadd.f32 %v2333, %v2561
        %s2611 = scalar_lea.vmem [#allocation5], 896
        %v2612 = vld [vmem:[%s2611] sm:$0xff]
        %v2613 = vld [vmem:[%s2611 + $0x8] sm:$0xff]
        %v2614 = vld [vmem:[%s2611 + $0x10] sm:$0xff]
        %v2615 = vld [vmem:[%s2611 + $0x18] sm:$0xff]
        %v2616 = vld [vmem:[%s2611 + $0x20] sm:$0xff]
        %v2617 = vld [vmem:[%s2611 + $0x28] sm:$0xff]
        %v2618 = vld [vmem:[%s2611 + $0x30] sm:$0xff]
        %v2619 = vld [vmem:[%s2611 + $0x38] sm:$0xff]
        %v2620 = vld [vmem:[%s2611 + $0x40] sm:$0xff]
        %v2621 = vld [vmem:[%s2611 + $0x48] sm:$0xff]
        %v2622 = vld [vmem:[%s2611 + $0x50] sm:$0xff]
        %v2623 = vld [vmem:[%s2611 + $0x58] sm:$0xff]
        %v2624 = vld [vmem:[%s2611 + $0x60] sm:$0xff]
        %v2625 = vld [vmem:[%s2611 + $0x68] sm:$0xff]
        %v2626 = vld [vmem:[%s2611 + $0x70] sm:$0xff]
        %v2627 = vld [vmem:[%s2611 + $0x78] sm:$0xff]
        %v2677 = vrot.slane %v2336, 1
        %v2678 = vrot.slane %v2337, 1
        %v2679 = vsel %vm426, %v2677, %v2678
        %v2680 = vrot.slane %v2338, 1
        %v2681 = vsel %vm426, %v2678, %v2680
        %v2682 = vrot.slane %v2339, 1
        %v2683 = vsel %vm426, %v2680, %v2682
        %v2684 = vrot.slane %v2340, 1
        %v2685 = vsel %vm426, %v2682, %v2684
        %v2686 = vrot.slane %v2341, 1
        %v2687 = vsel %vm426, %v2684, %v2686
        %v2688 = vrot.slane %v2342, 1
        %v2689 = vsel %vm426, %v2686, %v2688
        %v2690 = vrot.slane %v2343, 1
        %v2691 = vsel %vm426, %v2688, %v2690
        %v2692 = vrot.slane %v2344, 1
        %v2693 = vsel %vm426, %v2690, %v2692
        %v2694 = vrot.slane %v2345, 1
        %v2695 = vsel %vm426, %v2692, %v2694
        %v2696 = vrot.slane %v2346, 1
        %v2697 = vsel %vm426, %v2694, %v2696
        %v2698 = vrot.slane %v2347, 1
        %v2699 = vsel %vm426, %v2696, %v2698
        %v2700 = vrot.slane %v2348, 1
        %v2701 = vsel %vm426, %v2698, %v2700
        %v2702 = vrot.slane %v2349, 1
        %v2703 = vsel %vm426, %v2700, %v2702
        %v2704 = vrot.slane %v2350, 1
        %v2705 = vsel %vm426, %v2702, %v2704
        %v2706 = vrot.slane %v2351, 1
        %v2707 = vsel %vm426, %v2704, %v2706
        %v2708 = vrot.slane %v2352, 1
        %v2709 = vsel %vm426, %v2706, %v2708
        %v2710 = vrot.slane %v2353, 1
        %v2711 = vsel %vm426, %v2708, %v2710
        %v2712 = vrot.slane %v2354, 1
        %v2713 = vsel %vm426, %v2710, %v2712
        %v2714 = vrot.slane %v2355, 1
        %v2715 = vsel %vm426, %v2712, %v2714
        %v2716 = vrot.slane %v2356, 1
        %v2717 = vsel %vm426, %v2714, %v2716
        %v2718 = vrot.slane %v2357, 1
        %v2719 = vsel %vm426, %v2716, %v2718
        %v2720 = vrot.slane %v2358, 1
        %v2721 = vsel %vm426, %v2718, %v2720
        %v2722 = vrot.slane %v2359, 1
        %v2723 = vsel %vm426, %v2720, %v2722
        %v2724 = vrot.slane %v2360, 1
        %v2725 = vsel %vm426, %v2722, %v2724
        %v2726 = vrot.slane %v2361, 1
        %v2727 = vsel %vm426, %v2724, %v2726
        %v2728 = vrot.slane %v2362, 1
        %v2729 = vsel %vm426, %v2726, %v2728
        %v2730 = vrot.slane %v2363, 1
        %v2731 = vsel %vm426, %v2728, %v2730
        %v2732 = vrot.slane %v2364, 1
        %v2733 = vsel %vm426, %v2730, %v2732
        %v2734 = vrot.slane %v2365, 1
        %v2735 = vsel %vm426, %v2732, %v2734
        %v2736 = vrot.slane %v2366, 1
        %v2737 = vsel %vm426, %v2734, %v2736
        %v2738 = vrot.slane %v2367, 1
        %v2739 = vsel %vm426, %v2736, %v2738
        %v2740 = vrot.slane %v2368, 1
        %v2741 = vsel %vm426, %v2738, %v2740
        %v2742 = vrot.slane %v2369, 1
        %v2743 = vsel %vm426, %v2740, %v2742
        %v2744 = vrot.slane %v2370, 1
        %v2745 = vsel %vm426, %v2742, %v2744
        %v2746 = vrot.slane %v2371, 1
        %v2747 = vsel %vm426, %v2744, %v2746
        %v2748 = vrot.slane %v2372, 1
        %v2749 = vsel %vm426, %v2746, %v2748
        %v2750 = vrot.slane %v2373, 1
        %v2751 = vsel %vm426, %v2748, %v2750
        %v2752 = vrot.slane %v2374, 1
        %v2753 = vsel %vm426, %v2750, %v2752
        %v2754 = vrot.slane %v2375, 1
        %v2755 = vsel %vm426, %v2752, %v2754
        %v2756 = vrot.slane %v2376, 1
        %v2757 = vsel %vm426, %v2754, %v2756
        %v2758 = vrot.slane %v2377, 1
        %v2759 = vsel %vm426, %v2756, %v2758
        %v2760 = vrot.slane %v2378, 1
        %v2761 = vsel %vm426, %v2758, %v2760
        %v2762 = vrot.slane %v2379, 1
        %v2763 = vsel %vm426, %v2760, %v2762
        %v2764 = vrot.slane %v2380, 1
        %v2765 = vsel %vm426, %v2762, %v2764
        %v2766 = vrot.slane %v2381, 1
        %v2767 = vsel %vm426, %v2764, %v2766
        %v2768 = vrot.slane %v2382, 1
        %v2769 = vsel %vm426, %v2766, %v2768
        %v2770 = vrot.slane %v2383, 1
        %v2771 = vsel %vm426, %v2768, %v2770
        %v2772 = vrot.slane %v2384, 1
        %v2773 = vsel %vm426, %v2770, %v2772
        %2822 = vmatpush.msra.mxu0 %v2627
        %2823 = vmatpush.msra.mxu0 %v2626
        %2824 = vmatpush.msra.mxu0 %v2625
        %2825 = vmatpush.msra.mxu0 %v2624
        %2826 = vmatpush.msra.mxu0 %v2623
        %2827 = vmatpush.msra.mxu0 %v2622
        %2828 = vmatpush.msra.mxu0 %v2621
        %2829 = vmatpush.msra.mxu0 %v2620
        %2830 = vmatpush.msra.mxu0 %v2619
        %2831 = vmatpush.msra.mxu0 %v2618
        %2832 = vmatpush.msra.mxu0 %v2617
        %2833 = vmatpush.msra.mxu0 %v2616
        %2834 = vmatpush.msra.mxu0 %v2615
        %2835 = vmatpush.msra.mxu0 %v2614
        %2836 = vmatpush.msra.mxu0 %v2613
        %2837 = vmatpush.msra.mxu0 %v2612
        %2838 = vmatmul.f32.gmra.mxu0 %v2679
        %v2839 = vpop.f32.mrf.mxu0
        %v2840 = vadd.f32 0.0, %v2839
        %2841 = vmatmul.f32.gmra.mxu0 %v2681
        %v2842 = vpop.f32.mrf.mxu0
        %v2843 = vadd.f32 0.0, %v2842
        %2844 = vmatmul.f32.gmra.mxu0 %v2683
        %v2845 = vpop.f32.mrf.mxu0
        %v2846 = vadd.f32 0.0, %v2845
        %2847 = vmatmul.f32.gmra.mxu0 %v2685
        %v2848 = vpop.f32.mrf.mxu0
        %v2849 = vadd.f32 0.0, %v2848
        %2850 = vmatmul.f32.gmra.mxu0 %v2687
        %v2851 = vpop.f32.mrf.mxu0
        %v2852 = vadd.f32 0.0, %v2851
        %2853 = vmatmul.f32.gmra.mxu0 %v2689
        %v2854 = vpop.f32.mrf.mxu0
        %v2855 = vadd.f32 0.0, %v2854
        %2856 = vmatmul.f32.gmra.mxu0 %v2691
        %v2857 = vpop.f32.mrf.mxu0
        %v2858 = vadd.f32 0.0, %v2857
        %2859 = vmatmul.f32.gmra.mxu0 %v2693
        %v2860 = vpop.f32.mrf.mxu0
        %v2861 = vadd.f32 0.0, %v2860
        %2862 = vmatmul.f32.gmra.mxu0 %v2695
        %v2863 = vpop.f32.mrf.mxu0
        %v2864 = vadd.f32 0.0, %v2863
        %2865 = vmatmul.f32.gmra.mxu0 %v2697
        %v2866 = vpop.f32.mrf.mxu0
        %v2867 = vadd.f32 0.0, %v2866
        %2868 = vmatmul.f32.gmra.mxu0 %v2699
        %v2869 = vpop.f32.mrf.mxu0
        %v2870 = vadd.f32 0.0, %v2869
        %2871 = vmatmul.f32.gmra.mxu0 %v2701
        %v2872 = vpop.f32.mrf.mxu0
        %v2873 = vadd.f32 0.0, %v2872
        %2874 = vmatmul.f32.gmra.mxu0 %v2703
        %v2875 = vpop.f32.mrf.mxu0
        %v2876 = vadd.f32 0.0, %v2875
        %2877 = vmatmul.f32.gmra.mxu0 %v2705
        %v2878 = vpop.f32.mrf.mxu0
        %v2879 = vadd.f32 0.0, %v2878
        %2880 = vmatmul.f32.gmra.mxu0 %v2707
        %v2881 = vpop.f32.mrf.mxu0
        %v2882 = vadd.f32 0.0, %v2881
        %2883 = vmatmul.f32.gmra.mxu0 %v2709
        %v2884 = vpop.f32.mrf.mxu0
        %v2885 = vadd.f32 0.0, %v2884
        %2886 = vmatmul.f32.gmra.mxu0 %v2711
        %v2887 = vpop.f32.mrf.mxu0
        %v2888 = vadd.f32 0.0, %v2887
        %2889 = vmatmul.f32.gmra.mxu0 %v2713
        %v2890 = vpop.f32.mrf.mxu0
        %v2891 = vadd.f32 0.0, %v2890
        %2892 = vmatmul.f32.gmra.mxu0 %v2715
        %v2893 = vpop.f32.mrf.mxu0
        %v2894 = vadd.f32 0.0, %v2893
        %2895 = vmatmul.f32.gmra.mxu0 %v2717
        %v2896 = vpop.f32.mrf.mxu0
        %v2897 = vadd.f32 0.0, %v2896
        %2898 = vmatmul.f32.gmra.mxu0 %v2719
        %v2899 = vpop.f32.mrf.mxu0
        %v2900 = vadd.f32 0.0, %v2899
        %2901 = vmatmul.f32.gmra.mxu0 %v2721
        %v2902 = vpop.f32.mrf.mxu0
        %v2903 = vadd.f32 0.0, %v2902
        %2904 = vmatmul.f32.gmra.mxu0 %v2723
        %v2905 = vpop.f32.mrf.mxu0
        %v2906 = vadd.f32 0.0, %v2905
        %2907 = vmatmul.f32.gmra.mxu0 %v2725
        %v2908 = vpop.f32.mrf.mxu0
        %v2909 = vadd.f32 0.0, %v2908
        %2910 = vmatmul.f32.gmra.mxu0 %v2727
        %v2911 = vpop.f32.mrf.mxu0
        %v2912 = vadd.f32 0.0, %v2911
        %2913 = vmatmul.f32.gmra.mxu0 %v2729
        %v2914 = vpop.f32.mrf.mxu0
        %v2915 = vadd.f32 0.0, %v2914
        %2916 = vmatmul.f32.gmra.mxu0 %v2731
        %v2917 = vpop.f32.mrf.mxu0
        %v2918 = vadd.f32 0.0, %v2917
        %2919 = vmatmul.f32.gmra.mxu0 %v2733
        %v2920 = vpop.f32.mrf.mxu0
        %v2921 = vadd.f32 0.0, %v2920
        %2922 = vmatmul.f32.gmra.mxu0 %v2735
        %v2923 = vpop.f32.mrf.mxu0
        %v2924 = vadd.f32 0.0, %v2923
        %2925 = vmatmul.f32.gmra.mxu0 %v2737
        %v2926 = vpop.f32.mrf.mxu0
        %v2927 = vadd.f32 0.0, %v2926
        %2928 = vmatmul.f32.gmra.mxu0 %v2739
        %v2929 = vpop.f32.mrf.mxu0
        %v2930 = vadd.f32 0.0, %v2929
        %2931 = vmatmul.f32.gmra.mxu0 %v2741
        %v2932 = vpop.f32.mrf.mxu0
        %v2933 = vadd.f32 0.0, %v2932
        %2934 = vmatmul.f32.gmra.mxu0 %v2743
        %v2935 = vpop.f32.mrf.mxu0
        %v2936 = vadd.f32 0.0, %v2935
        %2937 = vmatmul.f32.gmra.mxu0 %v2745
        %v2938 = vpop.f32.mrf.mxu0
        %v2939 = vadd.f32 0.0, %v2938
        %2940 = vmatmul.f32.gmra.mxu0 %v2747
        %v2941 = vpop.f32.mrf.mxu0
        %v2942 = vadd.f32 0.0, %v2941
        %2943 = vmatmul.f32.gmra.mxu0 %v2749
        %v2944 = vpop.f32.mrf.mxu0
        %v2945 = vadd.f32 0.0, %v2944
        %2946 = vmatmul.f32.gmra.mxu0 %v2751
        %v2947 = vpop.f32.mrf.mxu0
        %v2948 = vadd.f32 0.0, %v2947
        %2949 = vmatmul.f32.gmra.mxu0 %v2753
        %v2950 = vpop.f32.mrf.mxu0
        %v2951 = vadd.f32 0.0, %v2950
        %2952 = vmatmul.f32.gmra.mxu0 %v2755
        %v2953 = vpop.f32.mrf.mxu0
        %v2954 = vadd.f32 0.0, %v2953
        %2955 = vmatmul.f32.gmra.mxu0 %v2757
        %v2956 = vpop.f32.mrf.mxu0
        %v2957 = vadd.f32 0.0, %v2956
        %2958 = vmatmul.f32.gmra.mxu0 %v2759
        %v2959 = vpop.f32.mrf.mxu0
        %v2960 = vadd.f32 0.0, %v2959
        %2961 = vmatmul.f32.gmra.mxu0 %v2761
        %v2962 = vpop.f32.mrf.mxu0
        %v2963 = vadd.f32 0.0, %v2962
        %2964 = vmatmul.f32.gmra.mxu0 %v2763
        %v2965 = vpop.f32.mrf.mxu0
        %v2966 = vadd.f32 0.0, %v2965
        %2967 = vmatmul.f32.gmra.mxu0 %v2765
        %v2968 = vpop.f32.mrf.mxu0
        %v2969 = vadd.f32 0.0, %v2968
        %2970 = vmatmul.f32.gmra.mxu0 %v2767
        %v2971 = vpop.f32.mrf.mxu0
        %v2972 = vadd.f32 0.0, %v2971
        %2973 = vmatmul.f32.gmra.mxu0 %v2769
        %v2974 = vpop.f32.mrf.mxu0
        %v2975 = vadd.f32 0.0, %v2974
        %2976 = vmatmul.f32.gmra.mxu0 %v2771
        %v2977 = vpop.f32.mrf.mxu0
        %v2978 = vadd.f32 0.0, %v2977
        %2979 = vmatmul.f32.gmra.mxu0 %v2773
        %v2980 = vpop.f32.mrf.mxu0
        %v2981 = vadd.f32 0.0, %v2980
        %2982 = vdwg.mxu0
        %v2983 = vadd.f32 %v2563, %v2840
        %v2984 = vadd.f32 %v2564, %v2843
        %v2985 = vadd.f32 %v2565, %v2846
        %v2986 = vadd.f32 %v2566, %v2849
        %v2987 = vadd.f32 %v2567, %v2852
        %v2988 = vadd.f32 %v2568, %v2855
        %v2989 = vadd.f32 %v2569, %v2858
        %v2990 = vadd.f32 %v2570, %v2861
        %v2991 = vadd.f32 %v2571, %v2864
        %v2992 = vadd.f32 %v2572, %v2867
        %v2993 = vadd.f32 %v2573, %v2870
        %v2994 = vadd.f32 %v2574, %v2873
        %v2995 = vadd.f32 %v2575, %v2876
        %v2996 = vadd.f32 %v2576, %v2879
        %v2997 = vadd.f32 %v2577, %v2882
        %v2998 = vadd.f32 %v2578, %v2885
        %v2999 = vadd.f32 %v2579, %v2888
        %v3000 = vadd.f32 %v2580, %v2891
        %v3001 = vadd.f32 %v2581, %v2894
        %v3002 = vadd.f32 %v2582, %v2897
        %v3003 = vadd.f32 %v2583, %v2900
        %v3004 = vadd.f32 %v2584, %v2903
        %v3005 = vadd.f32 %v2585, %v2906
        %v3006 = vadd.f32 %v2586, %v2909
        %v3007 = vadd.f32 %v2587, %v2912
        %v3008 = vadd.f32 %v2588, %v2915
        %v3009 = vadd.f32 %v2589, %v2918
        %v3010 = vadd.f32 %v2590, %v2921
        %v3011 = vadd.f32 %v2591, %v2924
        %v3012 = vadd.f32 %v2592, %v2927
        %v3013 = vadd.f32 %v2593, %v2930
        %v3014 = vadd.f32 %v2594, %v2933
        %v3015 = vadd.f32 %v2595, %v2936
        %v3016 = vadd.f32 %v2596, %v2939
        %v3017 = vadd.f32 %v2597, %v2942
        %v3018 = vadd.f32 %v2598, %v2945
        %v3019 = vadd.f32 %v2599, %v2948
        %v3020 = vadd.f32 %v2600, %v2951
        %v3021 = vadd.f32 %v2601, %v2954
        %v3022 = vadd.f32 %v2602, %v2957
        %v3023 = vadd.f32 %v2603, %v2960
        %v3024 = vadd.f32 %v2604, %v2963
        %v3025 = vadd.f32 %v2605, %v2966
        %v3026 = vadd.f32 %v2606, %v2969
        %v3027 = vadd.f32 %v2607, %v2972
        %v3028 = vadd.f32 %v2608, %v2975
        %v3029 = vadd.f32 %v2609, %v2978
        %v3030 = vadd.f32 %v2610, %v2981
        %s3031 = scalar_lea.vmem [#allocation5], 1024
        %v3032 = vld [vmem:[%s3031] sm:$0xff]
        %v3033 = vld [vmem:[%s3031 + $0x8] sm:$0xff]
        %v3034 = vld [vmem:[%s3031 + $0x10] sm:$0xff]
        %v3035 = vld [vmem:[%s3031 + $0x18] sm:$0xff]
        %v3036 = vld [vmem:[%s3031 + $0x20] sm:$0xff]
        %v3037 = vld [vmem:[%s3031 + $0x28] sm:$0xff]
        %v3038 = vld [vmem:[%s3031 + $0x30] sm:$0xff]
        %v3039 = vld [vmem:[%s3031 + $0x38] sm:$0xff]
        %v3040 = vld [vmem:[%s3031 + $0x40] sm:$0xff]
        %v3041 = vld [vmem:[%s3031 + $0x48] sm:$0xff]
        %v3042 = vld [vmem:[%s3031 + $0x50] sm:$0xff]
        %v3043 = vld [vmem:[%s3031 + $0x58] sm:$0xff]
        %v3044 = vld [vmem:[%s3031 + $0x60] sm:$0xff]
        %v3045 = vld [vmem:[%s3031 + $0x68] sm:$0xff]
        %v3046 = vld [vmem:[%s3031 + $0x70] sm:$0xff]
        %v3047 = vld [vmem:[%s3031 + $0x78] sm:$0xff]
        %v3048 = vrot.slane %v2336, 2
        %v3049 = vrot.slane %v2337, 2
        %v3050 = vsel %vm911, %v3048, %v3049
        %v3051 = vrot.slane %v2338, 2
        %v3052 = vsel %vm911, %v3049, %v3051
        %v3053 = vrot.slane %v2339, 2
        %v3054 = vsel %vm911, %v3051, %v3053
        %v3055 = vrot.slane %v2340, 2
        %v3056 = vsel %vm911, %v3053, %v3055
        %v3057 = vrot.slane %v2341, 2
        %v3058 = vsel %vm911, %v3055, %v3057
        %v3059 = vrot.slane %v2342, 2
        %v3060 = vsel %vm911, %v3057, %v3059
        %v3061 = vrot.slane %v2343, 2
        %v3062 = vsel %vm911, %v3059, %v3061
        %v3063 = vrot.slane %v2344, 2
        %v3064 = vsel %vm911, %v3061, %v3063
        %v3065 = vrot.slane %v2345, 2
        %v3066 = vsel %vm911, %v3063, %v3065
        %v3067 = vrot.slane %v2346, 2
        %v3068 = vsel %vm911, %v3065, %v3067
        %v3069 = vrot.slane %v2347, 2
        %v3070 = vsel %vm911, %v3067, %v3069
        %v3071 = vrot.slane %v2348, 2
        %v3072 = vsel %vm911, %v3069, %v3071
        %v3073 = vrot.slane %v2349, 2
        %v3074 = vsel %vm911, %v3071, %v3073
        %v3075 = vrot.slane %v2350, 2
        %v3076 = vsel %vm911, %v3073, %v3075
        %v3077 = vrot.slane %v2351, 2
        %v3078 = vsel %vm911, %v3075, %v3077
        %v3079 = vrot.slane %v2352, 2
        %v3080 = vsel %vm911, %v3077, %v3079
        %v3081 = vrot.slane %v2353, 2
        %v3082 = vsel %vm911, %v3079, %v3081
        %v3083 = vrot.slane %v2354, 2
        %v3084 = vsel %vm911, %v3081, %v3083
        %v3085 = vrot.slane %v2355, 2
        %v3086 = vsel %vm911, %v3083, %v3085
        %v3087 = vrot.slane %v2356, 2
        %v3088 = vsel %vm911, %v3085, %v3087
        %v3089 = vrot.slane %v2357, 2
        %v3090 = vsel %vm911, %v3087, %v3089
        %v3091 = vrot.slane %v2358, 2
        %v3092 = vsel %vm911, %v3089, %v3091
        %v3093 = vrot.slane %v2359, 2
        %v3094 = vsel %vm911, %v3091, %v3093
        %v3095 = vrot.slane %v2360, 2
        %v3096 = vsel %vm911, %v3093, %v3095
        %v3097 = vrot.slane %v2361, 2
        %v3098 = vsel %vm911, %v3095, %v3097
        %v3099 = vrot.slane %v2362, 2
        %v3100 = vsel %vm911, %v3097, %v3099
        %v3101 = vrot.slane %v2363, 2
        %v3102 = vsel %vm911, %v3099, %v3101
        %v3103 = vrot.slane %v2364, 2
        %v3104 = vsel %vm911, %v3101, %v3103
        %v3105 = vrot.slane %v2365, 2
        %v3106 = vsel %vm911, %v3103, %v3105
        %v3107 = vrot.slane %v2366, 2
        %v3108 = vsel %vm911, %v3105, %v3107
        %v3109 = vrot.slane %v2367, 2
        %v3110 = vsel %vm911, %v3107, %v3109
        %v3111 = vrot.slane %v2368, 2
        %v3112 = vsel %vm911, %v3109, %v3111
        %v3113 = vrot.slane %v2369, 2
        %v3114 = vsel %vm911, %v3111, %v3113
        %v3115 = vrot.slane %v2370, 2
        %v3116 = vsel %vm911, %v3113, %v3115
        %v3117 = vrot.slane %v2371, 2
        %v3118 = vsel %vm911, %v3115, %v3117
        %v3119 = vrot.slane %v2372, 2
        %v3120 = vsel %vm911, %v3117, %v3119
        %v3121 = vrot.slane %v2373, 2
        %v3122 = vsel %vm911, %v3119, %v3121
        %v3123 = vrot.slane %v2374, 2
        %v3124 = vsel %vm911, %v3121, %v3123
        %v3125 = vrot.slane %v2375, 2
        %v3126 = vsel %vm911, %v3123, %v3125
        %v3127 = vrot.slane %v2376, 2
        %v3128 = vsel %vm911, %v3125, %v3127
        %v3129 = vrot.slane %v2377, 2
        %v3130 = vsel %vm911, %v3127, %v3129
        %v3131 = vrot.slane %v2378, 2
        %v3132 = vsel %vm911, %v3129, %v3131
        %v3133 = vrot.slane %v2379, 2
        %v3134 = vsel %vm911, %v3131, %v3133
        %v3135 = vrot.slane %v2380, 2
        %v3136 = vsel %vm911, %v3133, %v3135
        %v3137 = vrot.slane %v2381, 2
        %v3138 = vsel %vm911, %v3135, %v3137
        %v3139 = vrot.slane %v2382, 2
        %v3140 = vsel %vm911, %v3137, %v3139
        %v3141 = vrot.slane %v2383, 2
        %v3142 = vsel %vm911, %v3139, %v3141
        %v3143 = vrot.slane %v2384, 2
        %v3144 = vsel %vm911, %v3141, %v3143
        %3193 = vmatpush.msra.mxu0 %v3047
        %3194 = vmatpush.msra.mxu0 %v3046
        %3195 = vmatpush.msra.mxu0 %v3045
        %3196 = vmatpush.msra.mxu0 %v3044
        %3197 = vmatpush.msra.mxu0 %v3043
        %3198 = vmatpush.msra.mxu0 %v3042
        %3199 = vmatpush.msra.mxu0 %v3041
        %3200 = vmatpush.msra.mxu0 %v3040
        %3201 = vmatpush.msra.mxu0 %v3039
        %3202 = vmatpush.msra.mxu0 %v3038
        %3203 = vmatpush.msra.mxu0 %v3037
        %3204 = vmatpush.msra.mxu0 %v3036
        %3205 = vmatpush.msra.mxu0 %v3035
        %3206 = vmatpush.msra.mxu0 %v3034
        %3207 = vmatpush.msra.mxu0 %v3033
        %3208 = vmatpush.msra.mxu0 %v3032
        %3209 = vmatmul.f32.gmra.mxu0 %v3050
        %v3210 = vpop.f32.mrf.mxu0
        %v3211 = vadd.f32 0.0, %v3210
        %3212 = vmatmul.f32.gmra.mxu0 %v3052
        %v3213 = vpop.f32.mrf.mxu0
        %v3214 = vadd.f32 0.0, %v3213
        %3215 = vmatmul.f32.gmra.mxu0 %v3054
        %v3216 = vpop.f32.mrf.mxu0
        %v3217 = vadd.f32 0.0, %v3216
        %3218 = vmatmul.f32.gmra.mxu0 %v3056
        %v3219 = vpop.f32.mrf.mxu0
        %v3220 = vadd.f32 0.0, %v3219
        %3221 = vmatmul.f32.gmra.mxu0 %v3058
        %v3222 = vpop.f32.mrf.mxu0
        %v3223 = vadd.f32 0.0, %v3222
        %3224 = vmatmul.f32.gmra.mxu0 %v3060
        %v3225 = vpop.f32.mrf.mxu0
        %v3226 = vadd.f32 0.0, %v3225
        %3227 = vmatmul.f32.gmra.mxu0 %v3062
        %v3228 = vpop.f32.mrf.mxu0
        %v3229 = vadd.f32 0.0, %v3228
        %3230 = vmatmul.f32.gmra.mxu0 %v3064
        %v3231 = vpop.f32.mrf.mxu0
        %v3232 = vadd.f32 0.0, %v3231
        %3233 = vmatmul.f32.gmra.mxu0 %v3066
        %v3234 = vpop.f32.mrf.mxu0
        %v3235 = vadd.f32 0.0, %v3234
        %3236 = vmatmul.f32.gmra.mxu0 %v3068
        %v3237 = vpop.f32.mrf.mxu0
        %v3238 = vadd.f32 0.0, %v3237
        %3239 = vmatmul.f32.gmra.mxu0 %v3070
        %v3240 = vpop.f32.mrf.mxu0
        %v3241 = vadd.f32 0.0, %v3240
        %3242 = vmatmul.f32.gmra.mxu0 %v3072
        %v3243 = vpop.f32.mrf.mxu0
        %v3244 = vadd.f32 0.0, %v3243
        %3245 = vmatmul.f32.gmra.mxu0 %v3074
        %v3246 = vpop.f32.mrf.mxu0
        %v3247 = vadd.f32 0.0, %v3246
        %3248 = vmatmul.f32.gmra.mxu0 %v3076
        %v3249 = vpop.f32.mrf.mxu0
        %v3250 = vadd.f32 0.0, %v3249
        %3251 = vmatmul.f32.gmra.mxu0 %v3078
        %v3252 = vpop.f32.mrf.mxu0
        %v3253 = vadd.f32 0.0, %v3252
        %3254 = vmatmul.f32.gmra.mxu0 %v3080
        %v3255 = vpop.f32.mrf.mxu0
        %v3256 = vadd.f32 0.0, %v3255
        %3257 = vmatmul.f32.gmra.mxu0 %v3082
        %v3258 = vpop.f32.mrf.mxu0
        %v3259 = vadd.f32 0.0, %v3258
        %3260 = vmatmul.f32.gmra.mxu0 %v3084
        %v3261 = vpop.f32.mrf.mxu0
        %v3262 = vadd.f32 0.0, %v3261
        %3263 = vmatmul.f32.gmra.mxu0 %v3086
        %v3264 = vpop.f32.mrf.mxu0
        %v3265 = vadd.f32 0.0, %v3264
        %3266 = vmatmul.f32.gmra.mxu0 %v3088
        %v3267 = vpop.f32.mrf.mxu0
        %v3268 = vadd.f32 0.0, %v3267
        %3269 = vmatmul.f32.gmra.mxu0 %v3090
        %v3270 = vpop.f32.mrf.mxu0
        %v3271 = vadd.f32 0.0, %v3270
        %3272 = vmatmul.f32.gmra.mxu0 %v3092
        %v3273 = vpop.f32.mrf.mxu0
        %v3274 = vadd.f32 0.0, %v3273
        %3275 = vmatmul.f32.gmra.mxu0 %v3094
        %v3276 = vpop.f32.mrf.mxu0
        %v3277 = vadd.f32 0.0, %v3276
        %3278 = vmatmul.f32.gmra.mxu0 %v3096
        %v3279 = vpop.f32.mrf.mxu0
        %v3280 = vadd.f32 0.0, %v3279
        %3281 = vmatmul.f32.gmra.mxu0 %v3098
        %v3282 = vpop.f32.mrf.mxu0
        %v3283 = vadd.f32 0.0, %v3282
        %3284 = vmatmul.f32.gmra.mxu0 %v3100
        %v3285 = vpop.f32.mrf.mxu0
        %v3286 = vadd.f32 0.0, %v3285
        %3287 = vmatmul.f32.gmra.mxu0 %v3102
        %v3288 = vpop.f32.mrf.mxu0
        %v3289 = vadd.f32 0.0, %v3288
        %3290 = vmatmul.f32.gmra.mxu0 %v3104
        %v3291 = vpop.f32.mrf.mxu0
        %v3292 = vadd.f32 0.0, %v3291
        %3293 = vmatmul.f32.gmra.mxu0 %v3106
        %v3294 = vpop.f32.mrf.mxu0
        %v3295 = vadd.f32 0.0, %v3294
        %3296 = vmatmul.f32.gmra.mxu0 %v3108
        %v3297 = vpop.f32.mrf.mxu0
        %v3298 = vadd.f32 0.0, %v3297
        %3299 = vmatmul.f32.gmra.mxu0 %v3110
        %v3300 = vpop.f32.mrf.mxu0
        %v3301 = vadd.f32 0.0, %v3300
        %3302 = vmatmul.f32.gmra.mxu0 %v3112
        %v3303 = vpop.f32.mrf.mxu0
        %v3304 = vadd.f32 0.0, %v3303
        %3305 = vmatmul.f32.gmra.mxu0 %v3114
        %v3306 = vpop.f32.mrf.mxu0
        %v3307 = vadd.f32 0.0, %v3306
        %3308 = vmatmul.f32.gmra.mxu0 %v3116
        %v3309 = vpop.f32.mrf.mxu0
        %v3310 = vadd.f32 0.0, %v3309
        %3311 = vmatmul.f32.gmra.mxu0 %v3118
        %v3312 = vpop.f32.mrf.mxu0
        %v3313 = vadd.f32 0.0, %v3312
        %3314 = vmatmul.f32.gmra.mxu0 %v3120
        %v3315 = vpop.f32.mrf.mxu0
        %v3316 = vadd.f32 0.0, %v3315
        %3317 = vmatmul.f32.gmra.mxu0 %v3122
        %v3318 = vpop.f32.mrf.mxu0
        %v3319 = vadd.f32 0.0, %v3318
        %3320 = vmatmul.f32.gmra.mxu0 %v3124
        %v3321 = vpop.f32.mrf.mxu0
        %v3322 = vadd.f32 0.0, %v3321
        %3323 = vmatmul.f32.gmra.mxu0 %v3126
        %v3324 = vpop.f32.mrf.mxu0
        %v3325 = vadd.f32 0.0, %v3324
        %3326 = vmatmul.f32.gmra.mxu0 %v3128
        %v3327 = vpop.f32.mrf.mxu0
        %v3328 = vadd.f32 0.0, %v3327
        %3329 = vmatmul.f32.gmra.mxu0 %v3130
        %v3330 = vpop.f32.mrf.mxu0
        %v3331 = vadd.f32 0.0, %v3330
        %3332 = vmatmul.f32.gmra.mxu0 %v3132
        %v3333 = vpop.f32.mrf.mxu0
        %v3334 = vadd.f32 0.0, %v3333
        %3335 = vmatmul.f32.gmra.mxu0 %v3134
        %v3336 = vpop.f32.mrf.mxu0
        %v3337 = vadd.f32 0.0, %v3336
        %3338 = vmatmul.f32.gmra.mxu0 %v3136
        %v3339 = vpop.f32.mrf.mxu0
        %v3340 = vadd.f32 0.0, %v3339
        %3341 = vmatmul.f32.gmra.mxu0 %v3138
        %v3342 = vpop.f32.mrf.mxu0
        %v3343 = vadd.f32 0.0, %v3342
        %3344 = vmatmul.f32.gmra.mxu0 %v3140
        %v3345 = vpop.f32.mrf.mxu0
        %v3346 = vadd.f32 0.0, %v3345
        %3347 = vmatmul.f32.gmra.mxu0 %v3142
        %v3348 = vpop.f32.mrf.mxu0
        %v3349 = vadd.f32 0.0, %v3348
        %3350 = vmatmul.f32.gmra.mxu0 %v3144
        %v3351 = vpop.f32.mrf.mxu0
        %v3352 = vadd.f32 0.0, %v3351
        %3353 = vdwg.mxu0
        %v3354 = vadd.f32 %v2983, %v3211
        %v3355 = vadd.f32 %v2984, %v3214
        %v3356 = vadd.f32 %v2985, %v3217
        %v3357 = vadd.f32 %v2986, %v3220
        %v3358 = vadd.f32 %v2987, %v3223
        %v3359 = vadd.f32 %v2988, %v3226
        %v3360 = vadd.f32 %v2989, %v3229
        %v3361 = vadd.f32 %v2990, %v3232
        %v3362 = vadd.f32 %v2991, %v3235
        %v3363 = vadd.f32 %v2992, %v3238
        %v3364 = vadd.f32 %v2993, %v3241
        %v3365 = vadd.f32 %v2994, %v3244
        %v3366 = vadd.f32 %v2995, %v3247
        %v3367 = vadd.f32 %v2996, %v3250
        %v3368 = vadd.f32 %v2997, %v3253
        %v3369 = vadd.f32 %v2998, %v3256
        %v3370 = vadd.f32 %v2999, %v3259
        %v3371 = vadd.f32 %v3000, %v3262
        %v3372 = vadd.f32 %v3001, %v3265
        %v3373 = vadd.f32 %v3002, %v3268
        %v3374 = vadd.f32 %v3003, %v3271
        %v3375 = vadd.f32 %v3004, %v3274
        %v3376 = vadd.f32 %v3005, %v3277
        %v3377 = vadd.f32 %v3006, %v3280
        %v3378 = vadd.f32 %v3007, %v3283
        %v3379 = vadd.f32 %v3008, %v3286
        %v3380 = vadd.f32 %v3009, %v3289
        %v3381 = vadd.f32 %v3010, %v3292
        %v3382 = vadd.f32 %v3011, %v3295
        %v3383 = vadd.f32 %v3012, %v3298
        %v3384 = vadd.f32 %v3013, %v3301
        %v3385 = vadd.f32 %v3014, %v3304
        %v3386 = vadd.f32 %v3015, %v3307
        %v3387 = vadd.f32 %v3016, %v3310
        %v3388 = vadd.f32 %v3017, %v3313
        %v3389 = vadd.f32 %v3018, %v3316
        %v3390 = vadd.f32 %v3019, %v3319
        %v3391 = vadd.f32 %v3020, %v3322
        %v3392 = vadd.f32 %v3021, %v3325
        %v3393 = vadd.f32 %v3022, %v3328
        %v3394 = vadd.f32 %v3023, %v3331
        %v3395 = vadd.f32 %v3024, %v3334
        %v3396 = vadd.f32 %v3025, %v3337
        %v3397 = vadd.f32 %v3026, %v3340
        %v3398 = vadd.f32 %v3027, %v3343
        %v3399 = vadd.f32 %v3028, %v3346
        %v3400 = vadd.f32 %v3029, %v3349
        %v3401 = vadd.f32 %v3030, %v3352
        %v3402 = vld [vmem:[%s2] sm:$0x1]
        %v3404 = vperm.slane %v3402, 0
        %v3406 = vadd.f32 %v3354, %v3404
        %v3407 = vadd.f32 %v3355, %v3404
        %v3408 = vadd.f32 %v3356, %v3404
        %v3409 = vadd.f32 %v3357, %v3404
        %v3410 = vadd.f32 %v3358, %v3404
        %v3411 = vadd.f32 %v3359, %v3404
        %v3412 = vadd.f32 %v3360, %v3404
        %v3413 = vadd.f32 %v3361, %v3404
        %v3414 = vadd.f32 %v3362, %v3404
        %v3415 = vadd.f32 %v3363, %v3404
        %v3416 = vadd.f32 %v3364, %v3404
        %v3417 = vadd.f32 %v3365, %v3404
        %v3418 = vadd.f32 %v3366, %v3404
        %v3419 = vadd.f32 %v3367, %v3404
        %v3420 = vadd.f32 %v3368, %v3404
        %v3421 = vadd.f32 %v3369, %v3404
        %v3422 = vadd.f32 %v3370, %v3404
        %v3423 = vadd.f32 %v3371, %v3404
        %v3424 = vadd.f32 %v3372, %v3404
        %v3425 = vadd.f32 %v3373, %v3404
        %v3426 = vadd.f32 %v3374, %v3404
        %v3427 = vadd.f32 %v3375, %v3404
        %v3428 = vadd.f32 %v3376, %v3404
        %v3429 = vadd.f32 %v3377, %v3404
        %v3430 = vadd.f32 %v3378, %v3404
        %v3431 = vadd.f32 %v3379, %v3404
        %v3432 = vadd.f32 %v3380, %v3404
        %v3433 = vadd.f32 %v3381, %v3404
        %v3434 = vadd.f32 %v3382, %v3404
        %v3435 = vadd.f32 %v3383, %v3404
        %v3436 = vadd.f32 %v3384, %v3404
        %v3437 = vadd.f32 %v3385, %v3404
        %v3438 = vadd.f32 %v3386, %v3404
        %v3439 = vadd.f32 %v3387, %v3404
        %v3440 = vadd.f32 %v3388, %v3404
        %v3441 = vadd.f32 %v3389, %v3404
        %v3442 = vadd.f32 %v3390, %v3404
        %v3443 = vadd.f32 %v3391, %v3404
        %v3444 = vadd.f32 %v3392, %v3404
        %v3445 = vadd.f32 %v3393, %v3404
        %v3446 = vadd.f32 %v3394, %v3404
        %v3447 = vadd.f32 %v3395, %v3404
        %v3448 = vadd.f32 %v3396, %v3404
        %v3449 = vadd.f32 %v3397, %v3404
        %v3450 = vadd.f32 %v3398, %v3404
        %v3451 = vadd.f32 %v3399, %v3404
        %v3452 = vadd.f32 %v3400, %v3404
        %v3453 = vadd.f32 %v3401, %v3404
        %v3454 = vmax.f32 %v3406, 0.0
        %v3455 = vmax.f32 %v3407, 0.0
        %v3456 = vmax.f32 %v3408, 0.0
        %v3457 = vmax.f32 %v3409, 0.0
        %v3458 = vmax.f32 %v3410, 0.0
        %v3459 = vmax.f32 %v3411, 0.0
        %v3460 = vmax.f32 %v3412, 0.0
        %v3461 = vmax.f32 %v3413, 0.0
        %v3462 = vmax.f32 %v3414, 0.0
        %v3463 = vmax.f32 %v3415, 0.0
        %v3464 = vmax.f32 %v3416, 0.0
        %v3465 = vmax.f32 %v3417, 0.0
        %v3466 = vmax.f32 %v3418, 0.0
        %v3467 = vmax.f32 %v3419, 0.0
        %v3468 = vmax.f32 %v3420, 0.0
        %v3469 = vmax.f32 %v3421, 0.0
        %v3470 = vmax.f32 %v3422, 0.0
        %v3471 = vmax.f32 %v3423, 0.0
        %v3472 = vmax.f32 %v3424, 0.0
        %v3473 = vmax.f32 %v3425, 0.0
        %v3474 = vmax.f32 %v3426, 0.0
        %v3475 = vmax.f32 %v3427, 0.0
        %v3476 = vmax.f32 %v3428, 0.0
        %v3477 = vmax.f32 %v3429, 0.0
        %v3478 = vmax.f32 %v3430, 0.0
        %v3479 = vmax.f32 %v3431, 0.0
        %v3480 = vmax.f32 %v3432, 0.0
        %v3481 = vmax.f32 %v3433, 0.0
        %v3482 = vmax.f32 %v3434, 0.0
        %v3483 = vmax.f32 %v3435, 0.0
        %v3484 = vmax.f32 %v3436, 0.0
        %v3485 = vmax.f32 %v3437, 0.0
        %v3486 = vmax.f32 %v3438, 0.0
        %v3487 = vmax.f32 %v3439, 0.0
        %v3488 = vmax.f32 %v3440, 0.0
        %v3489 = vmax.f32 %v3441, 0.0
        %v3490 = vmax.f32 %v3442, 0.0
        %v3491 = vmax.f32 %v3443, 0.0
        %v3492 = vmax.f32 %v3444, 0.0
        %v3493 = vmax.f32 %v3445, 0.0
        %v3494 = vmax.f32 %v3446, 0.0
        %v3495 = vmax.f32 %v3447, 0.0
        %v3496 = vmax.f32 %v3448, 0.0
        %v3497 = vmax.f32 %v3449, 0.0
        %v3498 = vmax.f32 %v3450, 0.0
        %v3499 = vmax.f32 %v3451, 0.0
        %v3500 = vmax.f32 %v3452, 0.0
        %v3501 = vmax.f32 %v3453, 0.0
        %v3502 = vld [vmem:[#allocation7] sm:$0xff]
        %v3503 = vld [vmem:[#allocation7 + $0x8] sm:$0xff]
        %v3504 = vld [vmem:[#allocation7 + $0x10] sm:$0xff]
        %v3505 = vld [vmem:[#allocation7 + $0x18] sm:$0xff]
        %v3506 = vld [vmem:[#allocation7 + $0x20] sm:$0xff]
        %v3507 = vld [vmem:[#allocation7 + $0x28] sm:$0xff]
        %v3508 = vld [vmem:[#allocation7 + $0x30] sm:$0xff]
        %v3509 = vld [vmem:[#allocation7 + $0x38] sm:$0xff]
        %v3510 = vld [vmem:[#allocation7 + $0x40] sm:$0xff]
        %v3511 = vld [vmem:[#allocation7 + $0x48] sm:$0xff]
        %v3512 = vld [vmem:[#allocation7 + $0x50] sm:$0xff]
        %v3513 = vld [vmem:[#allocation7 + $0x58] sm:$0xff]
        %v3514 = vld [vmem:[#allocation7 + $0x60] sm:$0xff]
        %v3515 = vld [vmem:[#allocation7 + $0x68] sm:$0xff]
        %v3516 = vld [vmem:[#allocation7 + $0x70] sm:$0xff]
        %v3517 = vld [vmem:[#allocation7 + $0x78] sm:$0xff]
        %v3518 = vld [vmem:[%s4] sm:$0x1]
        %v3520 = vperm.slane %v3518, 0
        %3522 = vmatpush.msra.mxu0 %v3517
        %3523 = vmatpush.msra.mxu0 %v3516
        %3524 = vmatpush.msra.mxu0 %v3515
        %3525 = vmatpush.msra.mxu0 %v3514
        %3526 = vmatpush.msra.mxu0 %v3513
        %3527 = vmatpush.msra.mxu0 %v3512
        %3528 = vmatpush.msra.mxu0 %v3511
        %3529 = vmatpush.msra.mxu0 %v3510
        %3530 = vmatpush.msra.mxu0 %v3509
        %3531 = vmatpush.msra.mxu0 %v3508
        %3532 = vmatpush.msra.mxu0 %v3507
        %3533 = vmatpush.msra.mxu0 %v3506
        %3534 = vmatpush.msra.mxu0 %v3505
        %3535 = vmatpush.msra.mxu0 %v3504
        %3536 = vmatpush.msra.mxu0 %v3503
        %3537 = vmatpush.msra.mxu0 %v3502
        %3538 = vmatmul.f32.gmra.mxu0 %v3454
        %v3539 = vpop.f32.mrf.mxu0
        %v3540 = vadd.f32 %v3520, %v3539
        %3541 = vmatmul.f32.gmra.mxu0 %v3455
        %v3542 = vpop.f32.mrf.mxu0
        %v3543 = vadd.f32 %v3520, %v3542
        %3544 = vmatmul.f32.gmra.mxu0 %v3456
        %v3545 = vpop.f32.mrf.mxu0
        %v3546 = vadd.f32 %v3520, %v3545
        %3547 = vmatmul.f32.gmra.mxu0 %v3457
        %v3548 = vpop.f32.mrf.mxu0
        %v3549 = vadd.f32 %v3520, %v3548
        %3550 = vmatmul.f32.gmra.mxu0 %v3458
        %v3551 = vpop.f32.mrf.mxu0
        %v3552 = vadd.f32 %v3520, %v3551
        %3553 = vmatmul.f32.gmra.mxu0 %v3459
        %v3554 = vpop.f32.mrf.mxu0
        %v3555 = vadd.f32 %v3520, %v3554
        %3556 = vmatmul.f32.gmra.mxu0 %v3460
        %v3557 = vpop.f32.mrf.mxu0
        %v3558 = vadd.f32 %v3520, %v3557
        %3559 = vmatmul.f32.gmra.mxu0 %v3461
        %v3560 = vpop.f32.mrf.mxu0
        %v3561 = vadd.f32 %v3520, %v3560
        %3562 = vmatmul.f32.gmra.mxu0 %v3462
        %v3563 = vpop.f32.mrf.mxu0
        %v3564 = vadd.f32 %v3520, %v3563
        %3565 = vmatmul.f32.gmra.mxu0 %v3463
        %v3566 = vpop.f32.mrf.mxu0
        %v3567 = vadd.f32 %v3520, %v3566
        %3568 = vmatmul.f32.gmra.mxu0 %v3464
        %v3569 = vpop.f32.mrf.mxu0
        %v3570 = vadd.f32 %v3520, %v3569
        %3571 = vmatmul.f32.gmra.mxu0 %v3465
        %v3572 = vpop.f32.mrf.mxu0
        %v3573 = vadd.f32 %v3520, %v3572
        %3574 = vmatmul.f32.gmra.mxu0 %v3466
        %v3575 = vpop.f32.mrf.mxu0
        %v3576 = vadd.f32 %v3520, %v3575
        %3577 = vmatmul.f32.gmra.mxu0 %v3467
        %v3578 = vpop.f32.mrf.mxu0
        %v3579 = vadd.f32 %v3520, %v3578
        %3580 = vmatmul.f32.gmra.mxu0 %v3468
        %v3581 = vpop.f32.mrf.mxu0
        %v3582 = vadd.f32 %v3520, %v3581
        %3583 = vmatmul.f32.gmra.mxu0 %v3469
        %v3584 = vpop.f32.mrf.mxu0
        %v3585 = vadd.f32 %v3520, %v3584
        %3586 = vmatmul.f32.gmra.mxu0 %v3470
        %v3587 = vpop.f32.mrf.mxu0
        %v3588 = vadd.f32 %v3520, %v3587
        %3589 = vmatmul.f32.gmra.mxu0 %v3471
        %v3590 = vpop.f32.mrf.mxu0
        %v3591 = vadd.f32 %v3520, %v3590
        %3592 = vmatmul.f32.gmra.mxu0 %v3472
        %v3593 = vpop.f32.mrf.mxu0
        %v3594 = vadd.f32 %v3520, %v3593
        %3595 = vmatmul.f32.gmra.mxu0 %v3473
        %v3596 = vpop.f32.mrf.mxu0
        %v3597 = vadd.f32 %v3520, %v3596
        %3598 = vmatmul.f32.gmra.mxu0 %v3474
        %v3599 = vpop.f32.mrf.mxu0
        %v3600 = vadd.f32 %v3520, %v3599
        %3601 = vmatmul.f32.gmra.mxu0 %v3475
        %v3602 = vpop.f32.mrf.mxu0
        %v3603 = vadd.f32 %v3520, %v3602
        %3604 = vmatmul.f32.gmra.mxu0 %v3476
        %v3605 = vpop.f32.mrf.mxu0
        %v3606 = vadd.f32 %v3520, %v3605
        %3607 = vmatmul.f32.gmra.mxu0 %v3477
        %v3608 = vpop.f32.mrf.mxu0
        %v3609 = vadd.f32 %v3520, %v3608
        %3610 = vmatmul.f32.gmra.mxu0 %v3478
        %v3611 = vpop.f32.mrf.mxu0
        %v3612 = vadd.f32 %v3520, %v3611
        %3613 = vmatmul.f32.gmra.mxu0 %v3479
        %v3614 = vpop.f32.mrf.mxu0
        %v3615 = vadd.f32 %v3520, %v3614
        %3616 = vmatmul.f32.gmra.mxu0 %v3480
        %v3617 = vpop.f32.mrf.mxu0
        %v3618 = vadd.f32 %v3520, %v3617
        %3619 = vmatmul.f32.gmra.mxu0 %v3481
        %v3620 = vpop.f32.mrf.mxu0
        %v3621 = vadd.f32 %v3520, %v3620
        %3622 = vmatmul.f32.gmra.mxu0 %v3482
        %v3623 = vpop.f32.mrf.mxu0
        %v3624 = vadd.f32 %v3520, %v3623
        %3625 = vmatmul.f32.gmra.mxu0 %v3483
        %v3626 = vpop.f32.mrf.mxu0
        %v3627 = vadd.f32 %v3520, %v3626
        %3628 = vmatmul.f32.gmra.mxu0 %v3484
        %v3629 = vpop.f32.mrf.mxu0
        %v3630 = vadd.f32 %v3520, %v3629
        %3631 = vmatmul.f32.gmra.mxu0 %v3485
        %v3632 = vpop.f32.mrf.mxu0
        %v3633 = vadd.f32 %v3520, %v3632
        %3634 = vmatmul.f32.gmra.mxu0 %v3486
        %v3635 = vpop.f32.mrf.mxu0
        %v3636 = vadd.f32 %v3520, %v3635
        %3637 = vmatmul.f32.gmra.mxu0 %v3487
        %v3638 = vpop.f32.mrf.mxu0
        %v3639 = vadd.f32 %v3520, %v3638
        %3640 = vmatmul.f32.gmra.mxu0 %v3488
        %v3641 = vpop.f32.mrf.mxu0
        %v3642 = vadd.f32 %v3520, %v3641
        %3643 = vmatmul.f32.gmra.mxu0 %v3489
        %v3644 = vpop.f32.mrf.mxu0
        %v3645 = vadd.f32 %v3520, %v3644
        %3646 = vmatmul.f32.gmra.mxu0 %v3490
        %v3647 = vpop.f32.mrf.mxu0
        %v3648 = vadd.f32 %v3520, %v3647
        %3649 = vmatmul.f32.gmra.mxu0 %v3491
        %v3650 = vpop.f32.mrf.mxu0
        %v3651 = vadd.f32 %v3520, %v3650
        %3652 = vmatmul.f32.gmra.mxu0 %v3492
        %v3653 = vpop.f32.mrf.mxu0
        %v3654 = vadd.f32 %v3520, %v3653
        %3655 = vmatmul.f32.gmra.mxu0 %v3493
        %v3656 = vpop.f32.mrf.mxu0
        %v3657 = vadd.f32 %v3520, %v3656
        %3658 = vmatmul.f32.gmra.mxu0 %v3494
        %v3659 = vpop.f32.mrf.mxu0
        %v3660 = vadd.f32 %v3520, %v3659
        %3661 = vmatmul.f32.gmra.mxu0 %v3495
        %v3662 = vpop.f32.mrf.mxu0
        %v3663 = vadd.f32 %v3520, %v3662
        %3664 = vmatmul.f32.gmra.mxu0 %v3496
        %v3665 = vpop.f32.mrf.mxu0
        %v3666 = vadd.f32 %v3520, %v3665
        %3667 = vmatmul.f32.gmra.mxu0 %v3497
        %v3668 = vpop.f32.mrf.mxu0
        %v3669 = vadd.f32 %v3520, %v3668
        %3670 = vmatmul.f32.gmra.mxu0 %v3498
        %v3671 = vpop.f32.mrf.mxu0
        %v3672 = vadd.f32 %v3520, %v3671
        %3673 = vmatmul.f32.gmra.mxu0 %v3499
        %v3674 = vpop.f32.mrf.mxu0
        %v3675 = vadd.f32 %v3520, %v3674
        %3676 = vmatmul.f32.gmra.mxu0 %v3500
        %v3677 = vpop.f32.mrf.mxu0
        %v3678 = vadd.f32 %v3520, %v3677
        %3679 = vmatmul.f32.gmra.mxu0 %v3501
        %v3680 = vpop.f32.mrf.mxu0
        %v3681 = vadd.f32 %v3520, %v3680
        %3682 = vdwg.mxu0
        %3683 = vst [vmem:[%s291] sm:$0xff] %v3540
        %3684 = vst [vmem:[%s291 + $0x8] sm:$0xff] %v3543
        %3685 = vst [vmem:[%s291 + $0x10] sm:$0xff] %v3546
        %3686 = vst [vmem:[%s291 + $0x18] sm:$0xff] %v3549
        %3687 = vst [vmem:[%s291 + $0x20] sm:$0xff] %v3552
        %3688 = vst [vmem:[%s291 + $0x28] sm:$0xff] %v3555
        %3689 = vst [vmem:[%s291 + $0x30] sm:$0xff] %v3558
        %3690 = vst [vmem:[%s291 + $0x38] sm:$0xff] %v3561
        %3691 = vst [vmem:[%s291 + $0x40] sm:$0xff] %v3564
        %3692 = vst [vmem:[%s291 + $0x48] sm:$0xff] %v3567
        %3693 = vst [vmem:[%s291 + $0x50] sm:$0xff] %v3570
        %3694 = vst [vmem:[%s291 + $0x58] sm:$0xff] %v3573
        %3695 = vst [vmem:[%s291 + $0x60] sm:$0xff] %v3576
        %3696 = vst [vmem:[%s291 + $0x68] sm:$0xff] %v3579
        %3697 = vst [vmem:[%s291 + $0x70] sm:$0xff] %v3582
        %3698 = vst [vmem:[%s291 + $0x78] sm:$0xff] %v3585
        %3699 = vst [vmem:[%s291 + $0x80] sm:$0xff] %v3588
        %3700 = vst [vmem:[%s291 + $0x88] sm:$0xff] %v3591
        %3701 = vst [vmem:[%s291 + $0x90] sm:$0xff] %v3594
        %3702 = vst [vmem:[%s291 + $0x98] sm:$0xff] %v3597
        %3703 = vst [vmem:[%s291 + $0xa0] sm:$0xff] %v3600
        %3704 = vst [vmem:[%s291 + $0xa8] sm:$0xff] %v3603
        %3705 = vst [vmem:[%s291 + $0xb0] sm:$0xff] %v3606
        %3706 = vst [vmem:[%s291 + $0xb8] sm:$0xff] %v3609
        %3707 = vst [vmem:[%s291 + $0xc0] sm:$0xff] %v3612
        %3708 = vst [vmem:[%s291 + $0xc8] sm:$0xff] %v3615
        %3709 = vst [vmem:[%s291 + $0xd0] sm:$0xff] %v3618
        %3710 = vst [vmem:[%s291 + $0xd8] sm:$0xff] %v3621
        %3711 = vst [vmem:[%s291 + $0xe0] sm:$0xff] %v3624
        %3712 = vst [vmem:[%s291 + $0xe8] sm:$0xff] %v3627
        %3713 = vst [vmem:[%s291 + $0xf0] sm:$0xff] %v3630
        %3714 = vst [vmem:[%s291 + $0xf8] sm:$0xff] %v3633
        %3715 = vst [vmem:[%s291 + $0x100] sm:$0xff] %v3636
        %3716 = vst [vmem:[%s291 + $0x108] sm:$0xff] %v3639
        %3717 = vst [vmem:[%s291 + $0x110] sm:$0xff] %v3642
        %3718 = vst [vmem:[%s291 + $0x118] sm:$0xff] %v3645
        %3719 = vst [vmem:[%s291 + $0x120] sm:$0xff] %v3648
        %3720 = vst [vmem:[%s291 + $0x128] sm:$0xff] %v3651
        %3721 = vst [vmem:[%s291 + $0x130] sm:$0xff] %v3654
        %3722 = vst [vmem:[%s291 + $0x138] sm:$0xff] %v3657
        %3723 = vst [vmem:[%s291 + $0x140] sm:$0xff] %v3660
        %3724 = vst [vmem:[%s291 + $0x148] sm:$0xff] %v3663
        %3725 = vst [vmem:[%s291 + $0x150] sm:$0xff] %v3666
        %3726 = vst [vmem:[%s291 + $0x158] sm:$0xff] %v3669
        %3727 = vst [vmem:[%s291 + $0x160] sm:$0xff] %v3672
        %3728 = vst [vmem:[%s291 + $0x168] sm:$0xff] %v3675
        %3729 = vst [vmem:[%s291 + $0x170] sm:$0xff] %v3678
        %3730 = vst [vmem:[%s291 + $0x178] sm:$0xff] %v3681
        %s3731 = sand.u32 %s155, 1
        %s3732 = scalar_lea.sflag [#allocation4], %s3731
        %s3733 = sand.u32 %s155, 1
        %s3734 = smul.addr %s3733, 384
        %s3735 = scalar_lea.vmem [#allocation8], %s3734
        // Predicated region
        $region53: #{tpu_custom_call.1} parent=39 // pred_check
          %p3736 = pneg %p165
        $region54: #{tpu_custom_call.1} parent=39 // pred_check_branch
          %3738 = sbr.rel (%p3736) target = $region56
        $region55: #{tpu_custom_call.1} parent=39 // pred_region
          %s3739 = smul.u32 48, %s28
          %3741 = vsyncadd %s3732, 0
          %s3742 = smul.addr %s27, 48
          %s3743 = sadd.s32 %s3739, %s3742
          %s3744 = smul.addr %s3743, 8
          %s3745 = scalar_lea.hbm %s5, %s3744
          %s3746 = sshll.u32 %s3735, 4
          %s3747 = int_to_ptr.vmem [resolvable:$true] %s3746
          %s3748 = sshll.u32 %s3745, 4
          %s3749 = int_to_ptr.hbm [resolvable:$true] %s3748
          %3754 = dma.vmem_to_hbm [thread:$0]  %s3747, 6144, %s3749, %s3732, 128, 128, 8
        $region56: #{tpu_custom_call.1} parent=39 // pred_fallthru
          _
      $region40: #{tpu_custom_call.1} parent=5 // pred_fallthru
        _
      %p3755 = scmp.le.s32.totalorder 2, %s18
      // Predicated region
      $region57: #{tpu_custom_call.1} parent=5 // pred_check
        %p3756 = pneg %p3755
      $region58: #{tpu_custom_call.1} parent=5 // pred_check_branch
        %3758 = sbr.rel (%p3756) target = $region60
      $region59: #{tpu_custom_call.1} parent=5 // pred_region
        %s3759 = ssub.s32 %s18, 2
        // Predicated region
        $region61: #{tpu_custom_call.1} parent=59 // pred_check
          %p3760 = pneg %p171
        $region62: #{tpu_custom_call.1} parent=59 // pred_check_branch
          %3762 = sbr.rel (%p3760) target = $region64
        $region63: #{tpu_custom_call.1} parent=59 // pred_region
          %s3763 = sand.u32 %s156, 1
          %s3764 = scalar_lea.sflag [#allocation4], %s3763
          %s3765 = sand.u32 %s156, 1
          %s3766 = smul.addr %s3765, 384
          %s3767 = scalar_lea.vmem [#allocation8], %s3766
          %3769 = dma.done %s3764, 6144
        $region64: #{tpu_custom_call.1} parent=59 // pred_fallthru
          _
      $region60: #{tpu_custom_call.1} parent=5 // pred_fallthru
        _
    $region6: #{tpu_custom_call.1} parent=1 // loop_footer
      %s22 = sadd.s32 1, %s18
    $region7: #{tpu_custom_call.1} parent=1 // loop_footer_branch
      %17 = sbr.rel target = $region3
    $region8: #{tpu_custom_call.1} parent=1 // loop_exit
      _
    %3770 = vsyncpa [#allocation3], 1
    %s3771 = scalar_lea.sflag [#allocation3], 1
    %3772 = vsyncpa %s3771, 1
    %3773 = vsyncpa [#allocation6], 1
    %3774 = vsyncpa [#allocation4], 1
    %s3775 = scalar_lea.sflag [#allocation4], 1
    %3776 = vsyncpa %s3775, 1

</llo_original>
